<compile_context>
chip_gen: v7x
topology: tpu7x:2x2x1
jax: 0.10.0
libtpu: 0.0.40
codegen_flags: <defaults>
</compile_context>

<pallas_src>
import jax
import jax.numpy as jnp
from jax import lax
from jax.experimental import pallas as pl
from jax.experimental.pallas import tpu as pltpu


def _ru(x, m):
    return ((x + m - 1) // m) * m


def _fold_bn(gamma, beta, mean, var, eps=1e-5):
    scale = gamma / jnp.sqrt(var + eps)
    return scale, beta - mean * scale


def _make_depthwise_kernel(*, NB, H, W, Cin, G, Cout, KH, KW,
                           sh, sw, ph, pw, Ho, Wo, Wf, residual):
    Hp, Wp = H + 2 * ph, W + 2 * pw
    n_w2 = KH * KW
    S = Ho * Wo

    def kernel(x_ref, pk_ref, b3_ref, *rest):
        if residual:
            xres_ref, o_ref, pad_ref, dec_ref = rest
        else:
            o_ref, pad_ref, dec_ref = rest

        # Zero only the halo border of the padded scratch.  The interior is
        # fully overwritten for every image.  Done every grid step (not only
        # step 0) so it stays correct when the batch axis is sharded across
        # TensorCores ("parallel") and each core has its own scratch instance.
        if ph > 0:
            zrow = jnp.zeros((ph, Wp, G), jnp.float32)
            pad_ref[pl.ds(0, ph), pl.ds(0, Wp), :] = zrow
            pad_ref[pl.ds(Hp - ph, ph), pl.ds(0, Wp), :] = zrow
        if pw > 0:
            zcol = jnp.zeros((Hp, pw, G), jnp.float32)
            pad_ref[pl.ds(0, Hp), pl.ds(0, pw), :] = zcol
            pad_ref[pl.ds(0, Hp), pl.ds(Wp - pw, pw), :] = zcol

        # Packed per-channel parameters (every row is G lanes wide).
        pk = pk_ref[...]
        r = 0
        w1s = pk[r:r + Cin, :]; r += Cin        # (Cin, G)    BN1 scale folded
        w2s = pk[r:r + n_w2, :]; r += n_w2      # (KH*KW, G)  BN2 scale folded
        w3s = pk[r:r + Cout, :]; r += Cout      # (Cout, G)   BN3 scale folded
        b1 = pk[r:r + 1, :]; r += 1             # (1, G)
        a1 = pk[r:r + 1, :]; r += 1             # (1, G)  PReLU slope
        b2 = pk[r:r + 1, :]; r += 1             # (1, G)
        a2 = pk[r:r + 1, :]; r += 1             # (1, G)  PReLU slope
        b3 = b3_ref[...]                        # (Cout, 1) column bias

        # Static unroll over the (VMEM-capped, small) batch tile.  Per-image
        # fusion keeps at most one image's intermediates live (no spill).
        for n in range(NB):
            # ---- Stage 1: 1x1 conv (+BN) + PReLU --------------------------
            x2d = x_ref[n].astype(jnp.float32).reshape(H * W, Cin)
            y1 = jnp.dot(x2d, w1s, preferred_element_type=jnp.float32) + b1
            y1 = jnp.where(y1 >= 0.0, y1, a1 * y1)
            pad_ref[pl.ds(ph, H), pl.ds(pw, W), :] = y1.reshape(H, W, G)

            # ---- Stage 2: depthwise KHxKW conv (+BN) + PReLU ---------------
            # Per kh: one row-slab load (stride only on the leading axis),
            # then KW unit-stride slices of it, accumulated at full W
            # resolution; decimate along W ONCE per image afterwards.
            acc = jnp.zeros((Ho, Wf, G), jnp.float32)
            for kh in range(KH):
                rows = pad_ref[pl.ds(kh, Ho, sh), pl.ds(0, Wp), :]  # (Ho,Wp,G)
                for kw in range(KW):
                    acc = acc + rows[:, kw:kw + Wf, :] * w2s[kh * KW + kw, :]
            if sw > 1:
                dec_ref[...] = acc
                y2 = dec_ref[:, pl.ds(0, Wo, sw), :]    # single strided load
            else:
                y2 = acc
            y2 = y2.reshape(S, G) + b2
            y2 = jnp.where(y2 >= 0.0, y2, a2 * y2)      # (Ho*Wo, G)

            # ---- Stage 3: 1x1 conv (+BN), computed as A @ B^T so the output
            # columns are lane-dense; written straight to this image's slice.
            y3t = lax.dot_general(w3s, y2, (((1,), (1,)), ((), ())),
                                  preferred_element_type=jnp.float32) + b3
            if residual:
                y3t = y3t + xres_ref[:, pl.ds(n * S, S)].astype(jnp.float32)
            o_ref[:, pl.ds(n * S, S)] = y3t.astype(o_ref.dtype)

    return kernel


def _block_vmem_bytes(nb, H, W, Cin, Ho, Wo, Cout, residual):
    # Double-buffered input/output blocks, (sublane, lane)-padded, conservative.
    xin = 2 * nb * H * _ru(W, 8) * _ru(Cin, 128) * 2                 # bf16 x
    out = 2 * _ru(Cout, 8) * _ru(nb * Ho * Wo, 128) * 4              # f32 out
    res = 2 * _ru(Cout, 8) * _ru(nb * Ho * Wo, 128) * 2 if residual else 0
    return xin + out + res


def _pick_batch_tile(N, H, W, Cin, Ho, Wo, Cout, residual,
                     budget_bytes=24 * 1024 * 1024):
    """Pick NB: lane-aligned output block, VMEM-capped, >=2 grid steps if we can."""
    divs = [d for d in range(1, N + 1) if N % d == 0]
    aligned = [d for d in divs if (d * Ho * Wo) % 128 == 0]

    def fits(d):
        return _block_vmem_bytes(d, H, W, Cin, Ho, Wo, Cout,
                                 residual) <= budget_bytes

    pools = [
        [d for d in aligned if fits(d) and N // d >= 2 and d <= 8],  # megacore
        [d for d in aligned if fits(d) and d <= 8],
        [d for d in aligned if fits(d)],
    ]
    for pool in pools:
        if pool:
            return max(pool)
    if aligned:
        return min(aligned)     # nothing fits the budget: smallest aligned tile
    # Last resort: whole batch in one step (block == full extent, always legal).
    return N


def _vmem_limit_bytes(NB, H, W, Cin, G, Cout, Ho, Wo, Hp, Wp, Wf,
                      pk_rows, residual):
    est = _block_vmem_bytes(NB, H, W, Cin, Ho, Wo, Cout, residual)
    est += 2 * _ru(pk_rows, 8) * _ru(G, 128) * 4          # packed params
    est += 2 * _ru(Cout, 8) * 128 * 4                     # b3 column
    est += Hp * _ru(Wp, 8) * _ru(G, 128) * 4              # pad scratch
    est += Ho * _ru(Wf, 8) * _ru(G, 128) * 4              # decimation scratch
    est += 8 * 1024 * 1024                                # spill / pipeline headroom
    # Floor keeps a deep pipeline on v5e/v6e; cap keeps it legal on v7x (64 MiB).
    return int(min(64 * 1024 * 1024, max(32 * 1024 * 1024, est)))


def depthwise_forward(x_nchw, params, *, kernel=(3, 3), stride=(2, 2),
                      padding=(1, 1), residual=False):
    N, Cin, H, W = x_nchw.shape
    KH, KW = kernel
    sh, sw = stride
    ph, pw = padding
    G = params["w1"].shape[0]
    Cout = params["w3"].shape[0]
    Ho = (H + 2 * ph - KH) // sh + 1
    Wo = (W + 2 * pw - KW) // sw + 1
    Hp, Wp = H + 2 * ph, W + 2 * pw
    Wf = sw * (Wo - 1) + 1           # full-resolution depthwise accumulator width
    if residual:
        assert Cin == Cout and Ho == H and Wo == W

    NB = _pick_batch_tile(N, H, W, Cin, Ho, Wo, Cout, residual)

    # NCHW -> NHWC, streamed to the kernel in bf16 (mem-bound path).
    # TODO(synk): drop this transpose (and the output one below) if adjacent
    # layers can consume/produce the kernel's layouts; each is a full HBM pass.
    x = jnp.transpose(x_nchw, (0, 2, 3, 1)).astype(jnp.bfloat16)

    # Inference-mode BN folded to (scale, bias); scales folded into the weights.
    s1, b1 = _fold_bn(params["g1"], params["b1"], params["m1"], params["v1"])
    s2, b2 = _fold_bn(params["g2"], params["b2"], params["m2"], params["v2"])
    s3, b3 = _fold_bn(params["g3"], params["b3"], params["m3"], params["v3"])

    w1s = jnp.transpose(params["w1"][:, :, 0, 0], (1, 0)) * s1[None, :]   # (Cin, G)
    w2s = (jnp.transpose(params["w2"][:, 0, :, :].reshape(G, KH * KW), (1, 0))
           * s2[None, :])                                                 # (KH*KW, G)
    w3s = params["w3"][:, :, 0, 0] * s3[:, None]                          # (Cout, G)

    pk = jnp.concatenate(
        [w1s, w2s, w3s,
         b1[None, :], params["a1"][None, :],
         b2[None, :], params["a2"][None, :]], axis=0).astype(jnp.float32)
    b3c = b3.reshape(Cout, 1).astype(jnp.float32)

    inputs = [x, pk, b3c]
    in_specs = [
        pl.BlockSpec((NB, H, W, Cin), lambda t: (t, 0, 0, 0)),
        pl.BlockSpec(pk.shape, lambda t: (0, 0)),
        pl.BlockSpec((Cout, 1), lambda t: (0, 0)),
    ]
    if residual:
        # TODO(synk): reconstruct the shortcut in-kernel from the already
        # loaded x block (needs an in-kernel (H*W,C)->(C,H*W) transpose) so the
        # input is not read from HBM twice; shipped as bf16 for now.
        xres = jnp.transpose(x_nchw, (1, 0, 2, 3)).reshape(
            Cout, N * Ho * Wo).astype(jnp.bfloat16)
        inputs.append(xres)
        in_specs.append(pl.BlockSpec((Cout, NB * Ho * Wo), lambda t: (0, t)))

    kern = _make_depthwise_kernel(
        NB=NB, H=H, W=W, Cin=Cin, G=G, Cout=Cout, KH=KH, KW=KW,
        sh=sh, sw=sw, ph=ph, pw=pw, Ho=Ho, Wo=Wo, Wf=Wf, residual=residual)

    vmem_limit = _vmem_limit_bytes(NB, H, W, Cin, G, Cout, Ho, Wo, Hp, Wp, Wf,
                                   pk.shape[0], residual)

    out_t = pl.pallas_call(
        kern,
        out_shape=jax.ShapeDtypeStruct((Cout, N * Ho * Wo), jnp.float32),
        grid_spec=pltpu.PrefetchScalarGridSpec(
            num_scalar_prefetch=0,
            grid=(N // NB,),
            in_specs=in_specs,
            out_specs=pl.BlockSpec((Cout, NB * Ho * Wo), lambda t: (0, t)),
            scratch_shapes=[
                pltpu.VMEM((Hp, Wp, G), jnp.float32),
                pltpu.VMEM((Ho, Wf, G), jnp.float32)],
        ),
        compiler_params=pltpu.CompilerParams(
            dimension_semantics=("parallel",),
            vmem_limit_bytes=vmem_limit),
    )(*inputs)

    # Lane-dense (Cout, N*Ho*Wo) -> NCHW
    return jnp.transpose(out_t.reshape(Cout, N, Ho, Wo), (1, 0, 2, 3))


def depthwise_reference(x, p, *, kernel, stride, padding, residual, eps=1e-5):
    # Pure-JAX reference mirroring the PyTorch module (inference-mode BN).
    def bn(y, g, b, m, v):
        sc = g / jnp.sqrt(v + eps)
        return y * sc[None, :, None, None] + (b - m * sc)[None, :, None, None]

    def prelu(y, a):
        return jnp.where(y >= 0, y, a[None, :, None, None] * y)

    dn = ("NCHW", "OIHW", "NCHW")
    hp = lax.Precision.HIGHEST
    G = p["w1"].shape[0]
    y = lax.conv_general_dilated(x, p["w1"], (1, 1), [(0, 0), (0, 0)],
                                 dimension_numbers=dn, precision=hp)
    y = prelu(bn(y, p["g1"], p["b1"], p["m1"], p["v1"]), p["a1"])
    y = lax.conv_general_dilated(
        y, p["w2"], stride,
        [(padding[0], padding[0]), (padding[1], padding[1])],
        dimension_numbers=dn, feature_group_count=G, precision=hp)
    y = prelu(bn(y, p["g2"], p["b2"], p["m2"], p["v2"]), p["a2"])
    y = lax.conv_general_dilated(y, p["w3"], (1, 1), [(0, 0), (0, 0)],
                                 dimension_numbers=dn, precision=hp)
    y = bn(y, p["g3"], p["b3"], p["m3"], p["v3"])
    if residual:
        y = y + x
    return y


if __name__ == "__main__":
    # DepthWise(in_c=4, out_c=8, residual=False, kernel=(3,3), stride=(2,2),
    #           padding=(1,1), groups=16)
    N, Cin, H, W = 2, 4, 16, 16
    G, Cout = 16, 8
    kernel, stride, padding, residual = (3, 3), (2, 2), (1, 1), False

    key = jax.random.PRNGKey(0)
    ks = jax.random.split(key, 16)
    params = {
        "w1": jax.random.normal(ks[0], (G, Cin, 1, 1), jnp.float32) * 0.2,
        "g1": 1.0 + 0.1 * jax.random.normal(ks[1], (G,), jnp.float32),
        "b1": 0.1 * jax.random.normal(ks[2], (G,), jnp.float32),
        "m1": 0.1 * jax.random.normal(ks[3], (G,), jnp.float32),
        "v1": 1.0 + 0.1 * jax.random.uniform(ks[4], (G,), jnp.float32),
        "a1": 0.25 * jnp.ones((G,), jnp.float32),      # PReLU default init
        "w2": jax.random.normal(ks[5], (G, 1, 3, 3), jnp.float32) * 0.2,
        "g2": 1.0 + 0.1 * jax.random.normal(ks[6], (G,), jnp.float32),
        "b2": 0.1 * jax.random.normal(ks[7], (G,), jnp.float32),
        "m2": 0.1 * jax.random.normal(ks[8], (G,), jnp.float32),
        "v2": 1.0 + 0.1 * jax.random.uniform(ks[9], (G,), jnp.float32),
        "a2": 0.25 * jnp.ones((G,), jnp.float32),
        "w3": jax.random.normal(ks[10], (Cout, G, 1, 1), jnp.float32) * 0.2,
        "g3": 1.0 + 0.1 * jax.random.normal(ks[11], (Cout,), jnp.float32),
        "b3": 0.1 * jax.random.normal(ks[12], (Cout,), jnp.float32),
        "m3": 0.1 * jax.random.normal(ks[13], (Cout,), jnp.float32),
        "v3": 1.0 + 0.1 * jax.random.uniform(ks[14], (Cout,), jnp.float32),
    }
    x = jax.random.normal(ks[15], (N, Cin, H, W), jnp.float32)

    out = depthwise_forward(x, params, kernel=kernel, stride=stride,
                            padding=padding, residual=residual)
    out = jax.block_until_ready(out)

    ref = depthwise_reference(x, params, kernel=kernel, stride=stride,
                              padding=padding, residual=residual)
    assert out.shape == ref.shape == (N, Cout, 8, 8), (out.shape, ref.shape)
    # Kernel streams x in bf16 and uses default (bf16 MXU) matmul precision;
    # reference runs f32 at HIGHEST precision.
    max_err = float(jnp.max(jnp.abs(out - ref)))
    assert jnp.allclose(out, ref, atol=3e-2, rtol=3e-2), max_err
    print("KERNEL_OK")
</pallas_src>

<mosaic_0001>
module attributes {stable_mosaic.version = 11 : i64} {
  func.func @kernel(%arg0: i32, %arg1: memref<2x16x16x4xbf16, #tpu.memory_space<vmem>>, %arg2: memref<25x16xf32, #tpu.memory_space<vmem>>, %arg3: memref<8x1xf32, #tpu.memory_space<vmem>>, %arg4: memref<8x128xf32, #tpu.memory_space<vmem>>, %arg5: memref<18x18x16xf32, #tpu.memory_space<vmem>>, %arg6: memref<8x15x16xf32, #tpu.memory_space<vmem>>) attributes {dimension_semantics = [#tpu.dimension_semantics<parallel>], iteration_bounds = array<i64: 1>, scalar_prefetch = 0 : i64, scratch_operands = 2 : i64, tpu.core_type = #tpu.core_type<tc>, window_params = [{transform_indices = @transform_0, window_bounds = array<i64: 2, 16, 16, 4>}, {pipeline_mode = #tpu.pipeline_mode<synchronous>, transform_indices = @transform_1, window_bounds = array<i64: 25, 16>}, {pipeline_mode = #tpu.pipeline_mode<synchronous>, transform_indices = @transform_2, window_bounds = array<i64: 8, 1>}, {transform_indices = @transform_3, window_bounds = array<i64: 8, 128>}]} {
    %cst = arith.constant 0.000000e+00 : f32
    %0 = vector.broadcast %cst : f32 to vector<1x18x16xf32>
    %c0 = arith.constant 0 : index
    %c0_0 = arith.constant 0 : index
    %c0_1 = arith.constant 0 : index
    %1 = vector.load %arg5[%c0, %c0_0, %c0_1] : memref<18x18x16xf32, #tpu.memory_space<vmem>>, vector<1x18x16xf32>
    tpu.vector_store %arg5[%c0, %c0_0, %c0_1], %0 {strides = array<i32>} : memref<18x18x16xf32, #tpu.memory_space<vmem>>, vector<1x18x16xf32>,
    %c17 = arith.constant 17 : index
    %c0_2 = arith.constant 0 : index
    %c0_3 = arith.constant 0 : index
    %2 = vector.load %arg5[%c17, %c0_2, %c0_3] : memref<18x18x16xf32, #tpu.memory_space<vmem>>, vector<1x18x16xf32>
    tpu.vector_store %arg5[%c17, %c0_2, %c0_3], %0 {strides = array<i32>} : memref<18x18x16xf32, #tpu.memory_space<vmem>>, vector<1x18x16xf32>,
    %cst_4 = arith.constant 0.000000e+00 : f32
    %3 = vector.broadcast %cst_4 : f32 to vector<18x1x16xf32>
    %c0_5 = arith.constant 0 : index
    %c0_6 = arith.constant 0 : index
    %c0_7 = arith.constant 0 : index
    %4 = vector.load %arg5[%c0_5, %c0_6, %c0_7] : memref<18x18x16xf32, #tpu.memory_space<vmem>>, vector<18x1x16xf32>
    tpu.vector_store %arg5[%c0_5, %c0_6, %c0_7], %3 {strides = array<i32>} : memref<18x18x16xf32, #tpu.memory_space<vmem>>, vector<18x1x16xf32>,
    %c0_8 = arith.constant 0 : index
    %c17_9 = arith.constant 17 : index
    %c0_10 = arith.constant 0 : index
    %5 = vector.load %arg5[%c0_8, %c17_9, %c0_10] : memref<18x18x16xf32, #tpu.memory_space<vmem>>, vector<18x1x16xf32>
    tpu.vector_store %arg5[%c0_8, %c17_9, %c0_10], %3 {strides = array<i32>} : memref<18x18x16xf32, #tpu.memory_space<vmem>>, vector<18x1x16xf32>,
    %c0_11 = arith.constant 0 : index
    %c0_12 = arith.constant 0 : index
    %6 = vector.load %arg2[%c0_11, %c0_12] : memref<25x16xf32, #tpu.memory_space<vmem>>, vector<25x16xf32>
    %7 = vector.extract_strided_slice %6 {offsets = [0, 0], sizes = [4, 16], strides = [1, 1]} : vector<25x16xf32> to vector<4x16xf32>
    %8 = vector.extract_strided_slice %6 {offsets = [4, 0], sizes = [9, 16], strides = [1, 1]} : vector<25x16xf32> to vector<9x16xf32>
    %9 = vector.extract_strided_slice %6 {offsets = [13, 0], sizes = [8, 16], strides = [1, 1]} : vector<25x16xf32> to vector<8x16xf32>
    %10 = vector.extract_strided_slice %6 {offsets = [21, 0], sizes = [1, 16], strides = [1, 1]} : vector<25x16xf32> to vector<1x16xf32>
    %11 = vector.extract_strided_slice %6 {offsets = [22, 0], sizes = [1, 16], strides = [1, 1]} : vector<25x16xf32> to vector<1x16xf32>
    %12 = vector.extract_strided_slice %6 {offsets = [23, 0], sizes = [1, 16], strides = [1, 1]} : vector<25x16xf32> to vector<1x16xf32>
    %13 = vector.extract_strided_slice %6 {offsets = [24, 0], sizes = [1, 16], strides = [1, 1]} : vector<25x16xf32> to vector<1x16xf32>
    %c0_13 = arith.constant 0 : index
    %c0_14 = arith.constant 0 : index
    %14 = vector.load %arg3[%c0_13, %c0_14] : memref<8x1xf32, #tpu.memory_space<vmem>>, vector<8x1xf32>
    %c0_15 = arith.constant 0 : index
    %c0_16 = arith.constant 0 : index
    %c0_17 = arith.constant 0 : index
    %c0_18 = arith.constant 0 : index
    %15 = vector.load %arg1[%c0_15, %c0_16, %c0_17, %c0_18] : memref<2x16x16x4xbf16, #tpu.memory_space<vmem>>, vector<1x16x16x4xbf16>
    %16 = vector.shape_cast %15 : vector<1x16x16x4xbf16> to vector<16x16x4xbf16>
    %17 = arith.extf %16 : vector<16x16x4xbf16> to vector<16x16x4xf32>
    %18 = vector.shape_cast %17 : vector<16x16x4xf32> to vector<256x4xf32>
    %cst_19 = arith.constant dense<0.000000e+00> : vector<256x16xf32>
    %19 = tpu.matmul %18, %7, %cst_19 {dimension_numbers = #tpu.dot_dimension_numbers<[1], [0], [0], [1], [0, 0, 1, 1], [], []>} : vector<256x4xf32>, vector<4x16xf32>, vector<256x16xf32> -> vector<256x16xf32>
    %20 = vector.broadcast %10 : vector<1x16xf32> to vector<256x16xf32>
    %21 = arith.addf %19, %20 : vector<256x16xf32>
    %cst_20 = arith.constant 0.000000e+00 : f32
    %22 = vector.broadcast %cst_20 : f32 to vector<256x16xf32>
    %23 = arith.cmpf oge, %21, %22 : vector<256x16xf32>
    %24 = vector.broadcast %11 : vector<1x16xf32> to vector<256x16xf32>
    %25 = arith.mulf %24, %21 : vector<256x16xf32>
    %26 = arith.select %23, %21, %25 : vector<256x16xi1>, vector<256x16xf32>
    %27 = vector.shape_cast %26 : vector<256x16xf32> to vector<16x16x16xf32>
    %c1 = arith.constant 1 : index
    %c1_21 = arith.constant 1 : index
    %c0_22 = arith.constant 0 : index
    %28 = vector.load %arg5[%c1, %c1_21, %c0_22] : memref<18x18x16xf32, #tpu.memory_space<vmem>>, vector<16x16x16xf32>
    tpu.vector_store %arg5[%c1, %c1_21, %c0_22], %27 {strides = array<i32>} : memref<18x18x16xf32, #tpu.memory_space<vmem>>, vector<16x16x16xf32>,
    %cst_23 = arith.constant 0.000000e+00 : f32
    %29 = vector.broadcast %cst_23 : f32 to vector<8x15x16xf32>
    %c0_24 = arith.constant 0 : index
    %c0_25 = arith.constant 0 : index
    %c0_26 = arith.constant 0 : index
    %30 = tpu.strided_load %arg5[%c0_24, %c0_25, %c0_26] {strides = array<i32: 2, 1, 1>} : memref<18x18x16xf32, #tpu.memory_space<vmem>>, vector<8x18x16xf32>
    %31 = vector.extract_strided_slice %30 {offsets = [0, 0, 0], sizes = [8, 15, 16], strides = [1, 1, 1]} : vector<8x18x16xf32> to vector<8x15x16xf32>
    %32 = vector.extract_strided_slice %8 {offsets = [0, 0], sizes = [1, 16], strides = [1, 1]} : vector<9x16xf32> to vector<1x16xf32>
    %33 = vector.shape_cast %32 : vector<1x16xf32> to vector<16xf32>
    %34 = vector.shape_cast %33 : vector<16xf32> to vector<1x1x16xf32>
    %35 = vector.broadcast %34 : vector<1x1x16xf32> to vector<8x15x16xf32>
    %36 = arith.mulf %31, %35 : vector<8x15x16xf32>
    %37 = arith.addf %29, %36 : vector<8x15x16xf32>
    %38 = vector.extract_strided_slice %30 {offsets = [0, 1, 0], sizes = [8, 15, 16], strides = [1, 1, 1]} : vector<8x18x16xf32> to vector<8x15x16xf32>
    %39 = vector.extract_strided_slice %8 {offsets = [1, 0], sizes = [1, 16], strides = [1, 1]} : vector<9x16xf32> to vector<1x16xf32>
    %40 = vector.shape_cast %39 : vector<1x16xf32> to vector<16xf32>
    %41 = vector.shape_cast %40 : vector<16xf32> to vector<1x1x16xf32>
    %42 = vector.broadcast %41 : vector<1x1x16xf32> to vector<8x15x16xf32>
    %43 = arith.mulf %38, %42 : vector<8x15x16xf32>
    %44 = arith.addf %37, %43 : vector<8x15x16xf32>
    %45 = vector.extract_strided_slice %30 {offsets = [0, 2, 0], sizes = [8, 15, 16], strides = [1, 1, 1]} : vector<8x18x16xf32> to vector<8x15x16xf32>
    %46 = vector.extract_strided_slice %8 {offsets = [2, 0], sizes = [1, 16], strides = [1, 1]} : vector<9x16xf32> to vector<1x16xf32>
    %47 = vector.shape_cast %46 : vector<1x16xf32> to vector<16xf32>
    %48 = vector.shape_cast %47 : vector<16xf32> to vector<1x1x16xf32>
    %49 = vector.broadcast %48 : vector<1x1x16xf32> to vector<8x15x16xf32>
    %50 = arith.mulf %45, %49 : vector<8x15x16xf32>
    %51 = arith.addf %44, %50 : vector<8x15x16xf32>
    %c1_27 = arith.constant 1 : index
    %c0_28 = arith.constant 0 : index
    %c0_29 = arith.constant 0 : index
    %52 = tpu.strided_load %arg5[%c1_27, %c0_28, %c0_29] {strides = array<i32: 2, 1, 1>} : memref<18x18x16xf32, #tpu.memory_space<vmem>>, vector<8x18x16xf32>
    %53 = vector.extract_strided_slice %52 {offsets = [0, 0, 0], sizes = [8, 15, 16], strides = [1, 1, 1]} : vector<8x18x16xf32> to vector<8x15x16xf32>
    %54 = vector.extract_strided_slice %8 {offsets = [3, 0], sizes = [1, 16], strides = [1, 1]} : vector<9x16xf32> to vector<1x16xf32>
    %55 = vector.shape_cast %54 : vector<1x16xf32> to vector<16xf32>
    %56 = vector.shape_cast %55 : vector<16xf32> to vector<1x1x16xf32>
    %57 = vector.broadcast %56 : vector<1x1x16xf32> to vector<8x15x16xf32>
    %58 = arith.mulf %53, %57 : vector<8x15x16xf32>
    %59 = arith.addf %51, %58 : vector<8x15x16xf32>
    %60 = vector.extract_strided_slice %52 {offsets = [0, 1, 0], sizes = [8, 15, 16], strides = [1, 1, 1]} : vector<8x18x16xf32> to vector<8x15x16xf32>
    %61 = vector.extract_strided_slice %8 {offsets = [4, 0], sizes = [1, 16], strides = [1, 1]} : vector<9x16xf32> to vector<1x16xf32>
    %62 = vector.shape_cast %61 : vector<1x16xf32> to vector<16xf32>
    %63 = vector.shape_cast %62 : vector<16xf32> to vector<1x1x16xf32>
    %64 = vector.broadcast %63 : vector<1x1x16xf32> to vector<8x15x16xf32>
    %65 = arith.mulf %60, %64 : vector<8x15x16xf32>
    %66 = arith.addf %59, %65 : vector<8x15x16xf32>
    %67 = vector.extract_strided_slice %52 {offsets = [0, 2, 0], sizes = [8, 15, 16], strides = [1, 1, 1]} : vector<8x18x16xf32> to vector<8x15x16xf32>
    %68 = vector.extract_strided_slice %8 {offsets = [5, 0], sizes = [1, 16], strides = [1, 1]} : vector<9x16xf32> to vector<1x16xf32>
    %69 = vector.shape_cast %68 : vector<1x16xf32> to vector<16xf32>
    %70 = vector.shape_cast %69 : vector<16xf32> to vector<1x1x16xf32>
    %71 = vector.broadcast %70 : vector<1x1x16xf32> to vector<8x15x16xf32>
    %72 = arith.mulf %67, %71 : vector<8x15x16xf32>
    %73 = arith.addf %66, %72 : vector<8x15x16xf32>
    %c2 = arith.constant 2 : index
    %c0_30 = arith.constant 0 : index
    %c0_31 = arith.constant 0 : index
    %74 = tpu.strided_load %arg5[%c2, %c0_30, %c0_31] {strides = array<i32: 2, 1, 1>} : memref<18x18x16xf32, #tpu.memory_space<vmem>>, vector<8x18x16xf32>
    %75 = vector.extract_strided_slice %74 {offsets = [0, 0, 0], sizes = [8, 15, 16], strides = [1, 1, 1]} : vector<8x18x16xf32> to vector<8x15x16xf32>
    %76 = vector.extract_strided_slice %8 {offsets = [6, 0], sizes = [1, 16], strides = [1, 1]} : vector<9x16xf32> to vector<1x16xf32>
    %77 = vector.shape_cast %76 : vector<1x16xf32> to vector<16xf32>
    %78 = vector.shape_cast %77 : vector<16xf32> to vector<1x1x16xf32>
    %79 = vector.broadcast %78 : vector<1x1x16xf32> to vector<8x15x16xf32>
    %80 = arith.mulf %75, %79 : vector<8x15x16xf32>
    %81 = arith.addf %73, %80 : vector<8x15x16xf32>
    %82 = vector.extract_strided_slice %74 {offsets = [0, 1, 0], sizes = [8, 15, 16], strides = [1, 1, 1]} : vector<8x18x16xf32> to vector<8x15x16xf32>
    %83 = vector.extract_strided_slice %8 {offsets = [7, 0], sizes = [1, 16], strides = [1, 1]} : vector<9x16xf32> to vector<1x16xf32>
    %84 = vector.shape_cast %83 : vector<1x16xf32> to vector<16xf32>
    %85 = vector.shape_cast %84 : vector<16xf32> to vector<1x1x16xf32>
    %86 = vector.broadcast %85 : vector<1x1x16xf32> to vector<8x15x16xf32>
    %87 = arith.mulf %82, %86 : vector<8x15x16xf32>
    %88 = arith.addf %81, %87 : vector<8x15x16xf32>
    %89 = vector.extract_strided_slice %74 {offsets = [0, 2, 0], sizes = [8, 15, 16], strides = [1, 1, 1]} : vector<8x18x16xf32> to vector<8x15x16xf32>
    %90 = vector.extract_strided_slice %8 {offsets = [8, 0], sizes = [1, 16], strides = [1, 1]} : vector<9x16xf32> to vector<1x16xf32>
    %91 = vector.shape_cast %90 : vector<1x16xf32> to vector<16xf32>
    %92 = vector.shape_cast %91 : vector<16xf32> to vector<1x1x16xf32>
    %93 = vector.broadcast %92 : vector<1x1x16xf32> to vector<8x15x16xf32>
    %94 = arith.mulf %89, %93 : vector<8x15x16xf32>
    %95 = arith.addf %88, %94 : vector<8x15x16xf32>
    %c0_32 = arith.constant 0 : index
    %c0_33 = arith.constant 0 : index
    %c0_34 = arith.constant 0 : index
    %96 = vector.load %arg6[%c0_32, %c0_33, %c0_34] : memref<8x15x16xf32, #tpu.memory_space<vmem>>, vector<8x15x16xf32>
    tpu.vector_store %arg6[%c0_32, %c0_33, %c0_34], %95 {strides = array<i32>} : memref<8x15x16xf32, #tpu.memory_space<vmem>>, vector<8x15x16xf32>,
    %c0_35 = arith.constant 0 : index
    %c0_36 = arith.constant 0 : index
    %c0_37 = arith.constant 0 : index
    %97 = tpu.strided_load %arg6[%c0_35, %c0_36, %c0_37] {strides = array<i32: 1, 2, 1>} : memref<8x15x16xf32, #tpu.memory_space<vmem>>, vector<8x8x16xf32>
    %98 = vector.shape_cast %97 : vector<8x8x16xf32> to vector<64x16xf32>
    %99 = vector.broadcast %12 : vector<1x16xf32> to vector<64x16xf32>
    %100 = arith.addf %98, %99 : vector<64x16xf32>
    %cst_38 = arith.constant 0.000000e+00 : f32
    %101 = vector.broadcast %cst_38 : f32 to vector<64x16xf32>
    %102 = arith.cmpf oge, %100, %101 : vector<64x16xf32>
    %103 = vector.broadcast %13 : vector<1x16xf32> to vector<64x16xf32>
    %104 = arith.mulf %103, %100 : vector<64x16xf32>
    %105 = arith.select %102, %100, %104 : vector<64x16xi1>, vector<64x16xf32>
    %cst_39 = arith.constant dense<0.000000e+00> : vector<8x64xf32>
    %106 = tpu.matmul %9, %105, %cst_39 {dimension_numbers = #tpu.dot_dimension_numbers<[1], [1], [0], [0], [0, 0, 1, 0], [], []>} : vector<8x16xf32>, vector<64x16xf32>, vector<8x64xf32> -> vector<8x64xf32>
    %107 = vector.broadcast %14 : vector<8x1xf32> to vector<8x64xf32>
    %108 = arith.addf %106, %107 : vector<8x64xf32>
    %c0_40 = arith.constant 0 : index
    %c0_41 = arith.constant 0 : index
    %109 = vector.load %arg4[%c0_40, %c0_41] : memref<8x128xf32, #tpu.memory_space<vmem>>, vector<8x64xf32>
    tpu.vector_store %arg4[%c0_40, %c0_41], %108 {strides = array<i32>} : memref<8x128xf32, #tpu.memory_space<vmem>>, vector<8x64xf32>,
    %c1_42 = arith.constant 1 : index
    %c0_43 = arith.constant 0 : index
    %c0_44 = arith.constant 0 : index
    %c0_45 = arith.constant 0 : index
    %110 = vector.load %arg1[%c1_42, %c0_43, %c0_44, %c0_45] : memref<2x16x16x4xbf16, #tpu.memory_space<vmem>>, vector<1x16x16x4xbf16>
    %111 = vector.shape_cast %110 : vector<1x16x16x4xbf16> to vector<16x16x4xbf16>
    %112 = arith.extf %111 : vector<16x16x4xbf16> to vector<16x16x4xf32>
    %113 = vector.shape_cast %112 : vector<16x16x4xf32> to vector<256x4xf32>
    %cst_46 = arith.constant dense<0.000000e+00> : vector<256x16xf32>
    %114 = tpu.matmul %113, %7, %cst_46 {dimension_numbers = #tpu.dot_dimension_numbers<[1], [0], [0], [1], [0, 0, 1, 1], [], []>} : vector<256x4xf32>, vector<4x16xf32>, vector<256x16xf32> -> vector<256x16xf32>
    %115 = vector.broadcast %10 : vector<1x16xf32> to vector<256x16xf32>
    %116 = arith.addf %114, %115 : vector<256x16xf32>
    %cst_47 = arith.constant 0.000000e+00 : f32
    %117 = vector.broadcast %cst_47 : f32 to vector<256x16xf32>
    %118 = arith.cmpf oge, %116, %117 : vector<256x16xf32>
    %119 = vector.broadcast %11 : vector<1x16xf32> to vector<256x16xf32>
    %120 = arith.mulf %119, %116 : vector<256x16xf32>
    %121 = arith.select %118, %116, %120 : vector<256x16xi1>, vector<256x16xf32>
    %122 = vector.shape_cast %121 : vector<256x16xf32> to vector<16x16x16xf32>
    %c1_48 = arith.constant 1 : index
    %c1_49 = arith.constant 1 : index
    %c0_50 = arith.constant 0 : index
    %123 = vector.load %arg5[%c1_48, %c1_49, %c0_50] : memref<18x18x16xf32, #tpu.memory_space<vmem>>, vector<16x16x16xf32>
    tpu.vector_store %arg5[%c1_48, %c1_49, %c0_50], %122 {strides = array<i32>} : memref<18x18x16xf32, #tpu.memory_space<vmem>>, vector<16x16x16xf32>,
    %cst_51 = arith.constant 0.000000e+00 : f32
    %124 = vector.broadcast %cst_51 : f32 to vector<8x15x16xf32>
    %c0_52 = arith.constant 0 : index
    %c0_53 = arith.constant 0 : index
    %c0_54 = arith.constant 0 : index
    %125 = tpu.strided_load %arg5[%c0_52, %c0_53, %c0_54] {strides = array<i32: 2, 1, 1>} : memref<18x18x16xf32, #tpu.memory_space<vmem>>, vector<8x18x16xf32>
    %126 = vector.extract_strided_slice %125 {offsets = [0, 0, 0], sizes = [8, 15, 16], strides = [1, 1, 1]} : vector<8x18x16xf32> to vector<8x15x16xf32>
    %127 = vector.extract_strided_slice %8 {offsets = [0, 0], sizes = [1, 16], strides = [1, 1]} : vector<9x16xf32> to vector<1x16xf32>
    %128 = vector.shape_cast %127 : vector<1x16xf32> to vector<16xf32>
    %129 = vector.shape_cast %128 : vector<16xf32> to vector<1x1x16xf32>
    %130 = vector.broadcast %129 : vector<1x1x16xf32> to vector<8x15x16xf32>
    %131 = arith.mulf %126, %130 : vector<8x15x16xf32>
    %132 = arith.addf %124, %131 : vector<8x15x16xf32>
    %133 = vector.extract_strided_slice %125 {offsets = [0, 1, 0], sizes = [8, 15, 16], strides = [1, 1, 1]} : vector<8x18x16xf32> to vector<8x15x16xf32>
    %134 = vector.extract_strided_slice %8 {offsets = [1, 0], sizes = [1, 16], strides = [1, 1]} : vector<9x16xf32> to vector<1x16xf32>
    %135 = vector.shape_cast %134 : vector<1x16xf32> to vector<16xf32>
    %136 = vector.shape_cast %135 : vector<16xf32> to vector<1x1x16xf32>
    %137 = vector.broadcast %136 : vector<1x1x16xf32> to vector<8x15x16xf32>
    %138 = arith.mulf %133, %137 : vector<8x15x16xf32>
    %139 = arith.addf %132, %138 : vector<8x15x16xf32>
    %140 = vector.extract_strided_slice %125 {offsets = [0, 2, 0], sizes = [8, 15, 16], strides = [1, 1, 1]} : vector<8x18x16xf32> to vector<8x15x16xf32>
    %141 = vector.extract_strided_slice %8 {offsets = [2, 0], sizes = [1, 16], strides = [1, 1]} : vector<9x16xf32> to vector<1x16xf32>
    %142 = vector.shape_cast %141 : vector<1x16xf32> to vector<16xf32>
    %143 = vector.shape_cast %142 : vector<16xf32> to vector<1x1x16xf32>
    %144 = vector.broadcast %143 : vector<1x1x16xf32> to vector<8x15x16xf32>
    %145 = arith.mulf %140, %144 : vector<8x15x16xf32>
    %146 = arith.addf %139, %145 : vector<8x15x16xf32>
    %c1_55 = arith.constant 1 : index
    %c0_56 = arith.constant 0 : index
    %c0_57 = arith.constant 0 : index
    %147 = tpu.strided_load %arg5[%c1_55, %c0_56, %c0_57] {strides = array<i32: 2, 1, 1>} : memref<18x18x16xf32, #tpu.memory_space<vmem>>, vector<8x18x16xf32>
    %148 = vector.extract_strided_slice %147 {offsets = [0, 0, 0], sizes = [8, 15, 16], strides = [1, 1, 1]} : vector<8x18x16xf32> to vector<8x15x16xf32>
    %149 = vector.extract_strided_slice %8 {offsets = [3, 0], sizes = [1, 16], strides = [1, 1]} : vector<9x16xf32> to vector<1x16xf32>
    %150 = vector.shape_cast %149 : vector<1x16xf32> to vector<16xf32>
    %151 = vector.shape_cast %150 : vector<16xf32> to vector<1x1x16xf32>
    %152 = vector.broadcast %151 : vector<1x1x16xf32> to vector<8x15x16xf32>
    %153 = arith.mulf %148, %152 : vector<8x15x16xf32>
    %154 = arith.addf %146, %153 : vector<8x15x16xf32>
    %155 = vector.extract_strided_slice %147 {offsets = [0, 1, 0], sizes = [8, 15, 16], strides = [1, 1, 1]} : vector<8x18x16xf32> to vector<8x15x16xf32>
    %156 = vector.extract_strided_slice %8 {offsets = [4, 0], sizes = [1, 16], strides = [1, 1]} : vector<9x16xf32> to vector<1x16xf32>
    %157 = vector.shape_cast %156 : vector<1x16xf32> to vector<16xf32>
    %158 = vector.shape_cast %157 : vector<16xf32> to vector<1x1x16xf32>
    %159 = vector.broadcast %158 : vector<1x1x16xf32> to vector<8x15x16xf32>
    %160 = arith.mulf %155, %159 : vector<8x15x16xf32>
    %161 = arith.addf %154, %160 : vector<8x15x16xf32>
    %162 = vector.extract_strided_slice %147 {offsets = [0, 2, 0], sizes = [8, 15, 16], strides = [1, 1, 1]} : vector<8x18x16xf32> to vector<8x15x16xf32>
    %163 = vector.extract_strided_slice %8 {offsets = [5, 0], sizes = [1, 16], strides = [1, 1]} : vector<9x16xf32> to vector<1x16xf32>
    %164 = vector.shape_cast %163 : vector<1x16xf32> to vector<16xf32>
    %165 = vector.shape_cast %164 : vector<16xf32> to vector<1x1x16xf32>
    %166 = vector.broadcast %165 : vector<1x1x16xf32> to vector<8x15x16xf32>
    %167 = arith.mulf %162, %166 : vector<8x15x16xf32>
    %168 = arith.addf %161, %167 : vector<8x15x16xf32>
    %c2_58 = arith.constant 2 : index
    %c0_59 = arith.constant 0 : index
    %c0_60 = arith.constant 0 : index
    %169 = tpu.strided_load %arg5[%c2_58, %c0_59, %c0_60] {strides = array<i32: 2, 1, 1>} : memref<18x18x16xf32, #tpu.memory_space<vmem>>, vector<8x18x16xf32>
    %170 = vector.extract_strided_slice %169 {offsets = [0, 0, 0], sizes = [8, 15, 16], strides = [1, 1, 1]} : vector<8x18x16xf32> to vector<8x15x16xf32>
    %171 = vector.extract_strided_slice %8 {offsets = [6, 0], sizes = [1, 16], strides = [1, 1]} : vector<9x16xf32> to vector<1x16xf32>
    %172 = vector.shape_cast %171 : vector<1x16xf32> to vector<16xf32>
    %173 = vector.shape_cast %172 : vector<16xf32> to vector<1x1x16xf32>
    %174 = vector.broadcast %173 : vector<1x1x16xf32> to vector<8x15x16xf32>
    %175 = arith.mulf %170, %174 : vector<8x15x16xf32>
    %176 = arith.addf %168, %175 : vector<8x15x16xf32>
    %177 = vector.extract_strided_slice %169 {offsets = [0, 1, 0], sizes = [8, 15, 16], strides = [1, 1, 1]} : vector<8x18x16xf32> to vector<8x15x16xf32>
    %178 = vector.extract_strided_slice %8 {offsets = [7, 0], sizes = [1, 16], strides = [1, 1]} : vector<9x16xf32> to vector<1x16xf32>
    %179 = vector.shape_cast %178 : vector<1x16xf32> to vector<16xf32>
    %180 = vector.shape_cast %179 : vector<16xf32> to vector<1x1x16xf32>
    %181 = vector.broadcast %180 : vector<1x1x16xf32> to vector<8x15x16xf32>
    %182 = arith.mulf %177, %181 : vector<8x15x16xf32>
    %183 = arith.addf %176, %182 : vector<8x15x16xf32>
    %184 = vector.extract_strided_slice %169 {offsets = [0, 2, 0], sizes = [8, 15, 16], strides = [1, 1, 1]} : vector<8x18x16xf32> to vector<8x15x16xf32>
    %185 = vector.extract_strided_slice %8 {offsets = [8, 0], sizes = [1, 16], strides = [1, 1]} : vector<9x16xf32> to vector<1x16xf32>
    %186 = vector.shape_cast %185 : vector<1x16xf32> to vector<16xf32>
    %187 = vector.shape_cast %186 : vector<16xf32> to vector<1x1x16xf32>
    %188 = vector.broadcast %187 : vector<1x1x16xf32> to vector<8x15x16xf32>
    %189 = arith.mulf %184, %188 : vector<8x15x16xf32>
    %190 = arith.addf %183, %189 : vector<8x15x16xf32>
    %c0_61 = arith.constant 0 : index
    %c0_62 = arith.constant 0 : index
    %c0_63 = arith.constant 0 : index
    %191 = vector.load %arg6[%c0_61, %c0_62, %c0_63] : memref<8x15x16xf32, #tpu.memory_space<vmem>>, vector<8x15x16xf32>
    tpu.vector_store %arg6[%c0_61, %c0_62, %c0_63], %190 {strides = array<i32>} : memref<8x15x16xf32, #tpu.memory_space<vmem>>, vector<8x15x16xf32>,
    %c0_64 = arith.constant 0 : index
    %c0_65 = arith.constant 0 : index
    %c0_66 = arith.constant 0 : index
    %192 = tpu.strided_load %arg6[%c0_64, %c0_65, %c0_66] {strides = array<i32: 1, 2, 1>} : memref<8x15x16xf32, #tpu.memory_space<vmem>>, vector<8x8x16xf32>
    %193 = vector.shape_cast %192 : vector<8x8x16xf32> to vector<64x16xf32>
    %194 = vector.broadcast %12 : vector<1x16xf32> to vector<64x16xf32>
    %195 = arith.addf %193, %194 : vector<64x16xf32>
    %cst_67 = arith.constant 0.000000e+00 : f32
    %196 = vector.broadcast %cst_67 : f32 to vector<64x16xf32>
    %197 = arith.cmpf oge, %195, %196 : vector<64x16xf32>
    %198 = vector.broadcast %13 : vector<1x16xf32> to vector<64x16xf32>
    %199 = arith.mulf %198, %195 : vector<64x16xf32>
    %200 = arith.select %197, %195, %199 : vector<64x16xi1>, vector<64x16xf32>
    %cst_68 = arith.constant dense<0.000000e+00> : vector<8x64xf32>
    %201 = tpu.matmul %9, %200, %cst_68 {dimension_numbers = #tpu.dot_dimension_numbers<[1], [1], [0], [0], [0, 0, 1, 0], [], []>} : vector<8x16xf32>, vector<64x16xf32>, vector<8x64xf32> -> vector<8x64xf32>
    %202 = vector.broadcast %14 : vector<8x1xf32> to vector<8x64xf32>
    %203 = arith.addf %201, %202 : vector<8x64xf32>
    %c0_69 = arith.constant 0 : index
    %c64 = arith.constant 64 : index
    %204 = vector.load %arg4[%c0_69, %c64] : memref<8x128xf32, #tpu.memory_space<vmem>>, vector<8x64xf32>
    tpu.vector_store %arg4[%c0_69, %c64], %203 {strides = array<i32>} : memref<8x128xf32, #tpu.memory_space<vmem>>, vector<8x64xf32>,
    return
  }
  func.func @transform_0(%arg0: i32) -> (i32, i32, i32, i32) {
    %c0_i32 = arith.constant 0 : i32
    %c0_i32_0 = arith.constant 0 : i32
    %c0_i32_1 = arith.constant 0 : i32
    %c0_i32_2 = arith.constant 0 : i32
    return %arg0, %c0_i32, %c0_i32_0, %c0_i32_1 : i32, i32, i32, i32
  }
  func.func @transform_1(%arg0: i32) -> (i32, i32) {
    %c0_i32 = arith.constant 0 : i32
    %c0_i32_0 = arith.constant 0 : i32
    %c0_i32_1 = arith.constant 0 : i32
    return %c0_i32, %c0_i32_0 : i32, i32
  }
  func.func @transform_2(%arg0: i32) -> (i32, i32) {
    %c0_i32 = arith.constant 0 : i32
    %c0_i32_0 = arith.constant 0 : i32
    %c0_i32_1 = arith.constant 0 : i32
    return %c0_i32, %c0_i32_0 : i32, i32
  }
  func.func @transform_3(%arg0: i32) -> (i32, i32) {
    %c0_i32 = arith.constant 0 : i32
    %c0_i32_0 = arith.constant 0 : i32
    return %c0_i32, %arg0 : i32, i32
  }
}

</mosaic_0001>

<llo_original>
// kernel: tpu_custom_call.1
$region0: #{tpu_custom_call.1}
  #allocation0 [shape = 'u32[]', space=smem, size = 0x4, offset = 0x4, fixed_abs, tag = 'smem constant byte address 0x4 - core index']
  #allocation1 [shape = 'u32[144,128]{1,0:T(1,128)}', space=vmem, size = 0x12000, scoped, tag = 'internal scratch']
  #allocation2 [shape = 'f32[18,18,16]{2,1,0:T(8,128)}', space=vmem, size = 0x36000, scoped, tag = 'scratch operand']
  #allocation3 [shape = 'f32[8,15,16]{2,1,0:T(8,128)}', space=vmem, size = 0x10000, scoped, tag = 'scratch operand']
  %s0 = inlined_call_operand.vmem [shape: bf16[2,16,16,4], index: 0, kind: input, shape index: {}]
  %s1 = inlined_call_operand.vmem [shape: f32[25,16], index: 1, kind: input, shape index: {}]
  %s2 = inlined_call_operand.vmem [shape: f32[8,1], index: 2, kind: input, shape index: {}]
  %s3 = inlined_call_operand.hbm [shape: f32[8,128], index: 3, kind: output, shape index: {}]
  %s4 = sld [smem:[#allocation0]]
  $region22: #{tpu_custom_call.1} parent=0
    _
  %s6 = ssub.s32 1, %s4
  %s7 = scalar_select 0, %s6, %s4
  $region1: #{tpu_custom_call.1} parent=0
    #allocation4 [shape = 'u8[4096]{0}', space=vmem, size = 0x1000, scoped, tag = 'output window, operand 0, single buffered']
    #allocation5 [shape = 's32[1]{0}', space=sflag, size = 0x4, scoped, tag = 'scoped memory for tpu_custom_call.1']
    %8 = vsyncpa [#allocation5], 0
    // Predicated region
    $region2: #{tpu_custom_call.1} parent=1 // pred_check
      _
    $region3: #{tpu_custom_call.1} parent=1 // pred_check_branch
      %10 = sbr.rel (0) target = $region5
    $region4: #{tpu_custom_call.1} parent=1 // pred_region
      _
    $region5: #{tpu_custom_call.1} parent=1 // pred_fallthru
      _
    // Predicated region
    $region6: #{tpu_custom_call.1} parent=1 // pred_check
      _
    $region7: #{tpu_custom_call.1} parent=1 // pred_check_branch
      %12 = sbr.rel (0) target = $region9
    $region8: #{tpu_custom_call.1} parent=1 // pred_region
      _
    $region9: #{tpu_custom_call.1} parent=1 // pred_fallthru
      _
    // Predicated region
    $region10: #{tpu_custom_call.1} parent=1 // pred_check
      _
    $region11: #{tpu_custom_call.1} parent=1 // pred_check_branch
      %14 = sbr.rel (0) target = $region13
    $region12: #{tpu_custom_call.1} parent=1 // pred_region
      _
    $region13: #{tpu_custom_call.1} parent=1 // pred_fallthru
      _
    %vm15 = vcmask 130048
    %16 = vst.msk [vmem:[#allocation2] sm:$0xff] %vm15, 0.0
    %17 = vst.msk [vmem:[#allocation2 + $0x8] sm:$0xff] %vm15, 0.0
    %vm18 = vcmask 123904
    %19 = vst.msk [vmem:[#allocation2 + $0x10] sm:$0x3] %vm18, 0.0
    %s20 = scalar_lea.vmem [#allocation2], 408
    %21 = vst.msk [vmem:[%s20] sm:$0xff] %vm15, 0.0
    %22 = vst.msk [vmem:[%s20 + $0x8] sm:$0xff] %vm15, 0.0
    %23 = vst.msk [vmem:[%s20 + $0x10] sm:$0x3] %vm18, 0.0
    %vm24 = vcmask 122880
    %25 = vst.msk [vmem:[#allocation2] sm:$0x1] %vm24, 0.0
    %26 = vst.msk [vmem:[#allocation2 + $0x18] sm:$0x1] %vm24, 0.0
    %27 = vst.msk [vmem:[#allocation2 + $0x30] sm:$0x1] %vm24, 0.0
    %28 = vst.msk [vmem:[#allocation2 + $0x48] sm:$0x1] %vm24, 0.0
    %29 = vst.msk [vmem:[#allocation2 + $0x60] sm:$0x1] %vm24, 0.0
    %30 = vst.msk [vmem:[#allocation2 + $0x78] sm:$0x1] %vm24, 0.0
    %31 = vst.msk [vmem:[#allocation2 + $0x90] sm:$0x1] %vm24, 0.0
    %32 = vst.msk [vmem:[#allocation2 + $0xa8] sm:$0x1] %vm24, 0.0
    %33 = vst.msk [vmem:[#allocation2 + $0xc0] sm:$0x1] %vm24, 0.0
    %34 = vst.msk [vmem:[#allocation2 + $0xd8] sm:$0x1] %vm24, 0.0
    %35 = vst.msk [vmem:[#allocation2 + $0xf0] sm:$0x1] %vm24, 0.0
    %36 = vst.msk [vmem:[#allocation2 + $0x108] sm:$0x1] %vm24, 0.0
    %37 = vst.msk [vmem:[#allocation2 + $0x120] sm:$0x1] %vm24, 0.0
    %38 = vst.msk [vmem:[#allocation2 + $0x138] sm:$0x1] %vm24, 0.0
    %39 = vst.msk [vmem:[#allocation2 + $0x150] sm:$0x1] %vm24, 0.0
    %40 = vst.msk [vmem:[#allocation2 + $0x168] sm:$0x1] %vm24, 0.0
    %41 = vst.msk [vmem:[#allocation2 + $0x180] sm:$0x1] %vm24, 0.0
    %42 = vst.msk [vmem:[#allocation2 + $0x198] sm:$0x1] %vm24, 0.0
    %43 = vst.msk [vmem:[#allocation2 + $0x11] sm:$0x1] %vm24, 0.0
    %44 = vst.msk [vmem:[#allocation2 + $0x29] sm:$0x1] %vm24, 0.0
    %45 = vst.msk [vmem:[#allocation2 + $0x41] sm:$0x1] %vm24, 0.0
    %46 = vst.msk [vmem:[#allocation2 + $0x59] sm:$0x1] %vm24, 0.0
    %47 = vst.msk [vmem:[#allocation2 + $0x71] sm:$0x1] %vm24, 0.0
    %48 = vst.msk [vmem:[#allocation2 + $0x89] sm:$0x1] %vm24, 0.0
    %49 = vst.msk [vmem:[#allocation2 + $0xa1] sm:$0x1] %vm24, 0.0
    %50 = vst.msk [vmem:[#allocation2 + $0xb9] sm:$0x1] %vm24, 0.0
    %51 = vst.msk [vmem:[#allocation2 + $0xd1] sm:$0x1] %vm24, 0.0
    %52 = vst.msk [vmem:[#allocation2 + $0xe9] sm:$0x1] %vm24, 0.0
    %53 = vst.msk [vmem:[#allocation2 + $0x101] sm:$0x1] %vm24, 0.0
    %54 = vst.msk [vmem:[#allocation2 + $0x119] sm:$0x1] %vm24, 0.0
    %55 = vst.msk [vmem:[#allocation2 + $0x131] sm:$0x1] %vm24, 0.0
    %56 = vst.msk [vmem:[#allocation2 + $0x149] sm:$0x1] %vm24, 0.0
    %57 = vst.msk [vmem:[#allocation2 + $0x161] sm:$0x1] %vm24, 0.0
    %58 = vst.msk [vmem:[#allocation2 + $0x179] sm:$0x1] %vm24, 0.0
    %59 = vst.msk [vmem:[#allocation2 + $0x191] sm:$0x1] %vm24, 0.0
    %60 = vst.msk [vmem:[#allocation2 + $0x1a9] sm:$0x1] %vm24, 0.0
    %v61 = vld [vmem:[%s1] sm:$0xff]
    %v62 = vld [vmem:[%s1 + $0x8] sm:$0xff]
    %v63 = vld [vmem:[%s1 + $0x10] sm:$0xff]
    %v64 = vld [vmem:[%s1 + $0x18] sm:$0x1]
    %v65 = vld [vmem:[%s2] sm:$0xff]
    %v66 = vld [vmem:[%s0] sm:$0xf]
    %v67 = vld [vmem:[%s0 + $0x4] sm:$0xf]
    %v68 = vld [vmem:[%s0 + $0x8] sm:$0xf]
    %v69 = vld [vmem:[%s0 + $0xc] sm:$0xf]
    %v70 = vld [vmem:[%s0 + $0x10] sm:$0xf]
    %v71 = vld [vmem:[%s0 + $0x14] sm:$0xf]
    %v72 = vld [vmem:[%s0 + $0x18] sm:$0xf]
    %v73 = vld [vmem:[%s0 + $0x1c] sm:$0xf]
    %v74 = vld [vmem:[%s0 + $0x20] sm:$0xf]
    %v75 = vld [vmem:[%s0 + $0x24] sm:$0xf]
    %v76 = vld [vmem:[%s0 + $0x28] sm:$0xf]
    %v77 = vld [vmem:[%s0 + $0x2c] sm:$0xf]
    %v78 = vld [vmem:[%s0 + $0x30] sm:$0xf]
    %v79 = vld [vmem:[%s0 + $0x34] sm:$0xf]
    %v80 = vld [vmem:[%s0 + $0x38] sm:$0xf]
    %v81 = vld [vmem:[%s0 + $0x3c] sm:$0xf]
    %v82 = vld [vmem:[%s0 + $0x40] sm:$0xf]
    %v83 = vld [vmem:[%s0 + $0x44] sm:$0xf]
    %v84 = vld [vmem:[%s0 + $0x48] sm:$0xf]
    %v85 = vld [vmem:[%s0 + $0x4c] sm:$0xf]
    %v86 = vld [vmem:[%s0 + $0x50] sm:$0xf]
    %v87 = vld [vmem:[%s0 + $0x54] sm:$0xf]
    %v88 = vld [vmem:[%s0 + $0x58] sm:$0xf]
    %v89 = vld [vmem:[%s0 + $0x5c] sm:$0xf]
    %v90 = vld [vmem:[%s0 + $0x60] sm:$0xf]
    %v91 = vld [vmem:[%s0 + $0x64] sm:$0xf]
    %v92 = vld [vmem:[%s0 + $0x68] sm:$0xf]
    %v93 = vld [vmem:[%s0 + $0x6c] sm:$0xf]
    %v94 = vld [vmem:[%s0 + $0x70] sm:$0xf]
    %v95 = vld [vmem:[%s0 + $0x74] sm:$0xf]
    %v96 = vld [vmem:[%s0 + $0x78] sm:$0xf]
    %v97 = vld [vmem:[%s0 + $0x7c] sm:$0xf]
    %v98 = vunpack.c.l.bf16 %v66
    %v99 = vunpack.c.l.bf16 %v67
    %v100 = vunpack.c.l.bf16 %v68
    %v101 = vunpack.c.l.bf16 %v69
    %v102 = vunpack.c.l.bf16 %v70
    %v103 = vunpack.c.l.bf16 %v71
    %v104 = vunpack.c.l.bf16 %v72
    %v105 = vunpack.c.l.bf16 %v73
    %v106 = vunpack.c.l.bf16 %v74
    %v107 = vunpack.c.l.bf16 %v75
    %v108 = vunpack.c.l.bf16 %v76
    %v109 = vunpack.c.l.bf16 %v77
    %v110 = vunpack.c.l.bf16 %v78
    %v111 = vunpack.c.l.bf16 %v79
    %v112 = vunpack.c.l.bf16 %v80
    %v113 = vunpack.c.l.bf16 %v81
    %v114 = vunpack.c.l.bf16 %v82
    %v115 = vunpack.c.l.bf16 %v83
    %v116 = vunpack.c.l.bf16 %v84
    %v117 = vunpack.c.l.bf16 %v85
    %v118 = vunpack.c.l.bf16 %v86
    %v119 = vunpack.c.l.bf16 %v87
    %v120 = vunpack.c.l.bf16 %v88
    %v121 = vunpack.c.l.bf16 %v89
    %v122 = vunpack.c.l.bf16 %v90
    %v123 = vunpack.c.l.bf16 %v91
    %v124 = vunpack.c.l.bf16 %v92
    %v125 = vunpack.c.l.bf16 %v93
    %v126 = vunpack.c.l.bf16 %v94
    %v127 = vunpack.c.l.bf16 %v95
    %v128 = vunpack.c.l.bf16 %v96
    %v129 = vunpack.c.l.bf16 %v97
    %v130 = vlaneseq
    %v131 = vshrl.u32 %v130, 7
    %v132 = vsub.s32 5, %v131
    %v133 = vrot.slane %v63, %v132
    %vm134 = vcmask 31744
    %v136 = vsel %vm134, %v98, 0
    %v139 = vsel %vm134, %v99, 0
    %v142 = vsel %vm134, %v100, 0
    %v145 = vsel %vm134, %v101, 0
    %v148 = vsel %vm134, %v102, 0
    %v151 = vsel %vm134, %v103, 0
    %v154 = vsel %vm134, %v104, 0
    %v157 = vsel %vm134, %v105, 0
    %v160 = vsel %vm134, %v106, 0
    %v163 = vsel %vm134, %v107, 0
    %v166 = vsel %vm134, %v108, 0
    %v169 = vsel %vm134, %v109, 0
    %v172 = vsel %vm134, %v110, 0
    %v175 = vsel %vm134, %v111, 0
    %v178 = vsel %vm134, %v112, 0
    %v181 = vsel %vm134, %v113, 0
    %v184 = vsel %vm134, %v114, 0
    %v187 = vsel %vm134, %v115, 0
    %v190 = vsel %vm134, %v116, 0
    %v193 = vsel %vm134, %v117, 0
    %v196 = vsel %vm134, %v118, 0
    %v199 = vsel %vm134, %v119, 0
    %v202 = vsel %vm134, %v120, 0
    %v205 = vsel %vm134, %v121, 0
    %v208 = vsel %vm134, %v122, 0
    %v211 = vsel %vm134, %v123, 0
    %v214 = vsel %vm134, %v124, 0
    %v217 = vsel %vm134, %v125, 0
    %v220 = vsel %vm134, %v126, 0
    %v223 = vsel %vm134, %v127, 0
    %v226 = vsel %vm134, %v128, 0
    %v229 = vsel %vm134, %v129, 0
    %vm231 = vcmask 1043456
    %v233 = vsel %vm231, %v61, 0
    %235 = vmatprep.subr.mxu0 0.0
    %236 = vmatpush1.msra.mxu0 %v233
    %237 = vmatprep.subr.mxu0 0.0
    %238 = vmatpush1.msra.mxu0 0.0
    %239 = vmatprep.subr.mxu0 0.0
    %240 = vmatpush1.msra.mxu0 0.0
    %241 = vmatprep.subr.mxu0 0.0
    %242 = vmatpush1.msra.mxu0 0.0
    %243 = vmatprep.subr.mxu0 0.0
    %244 = vmatpush1.msra.mxu0 0.0
    %245 = vmatprep.subr.mxu0 0.0
    %246 = vmatpush1.msra.mxu0 0.0
    %247 = vmatprep.subr.mxu0 0.0
    %248 = vmatpush1.msra.mxu0 0.0
    %249 = vmatprep.subr.mxu0 0.0
    %250 = vmatpush1.msra.mxu0 0.0
    %251 = vmatprep.subr.mxu0 0.0
    %252 = vmatpush1.msra.mxu0 0.0
    %253 = vmatprep.subr.mxu0 0.0
    %254 = vmatpush1.msra.mxu0 0.0
    %255 = vmatprep.subr.mxu0 0.0
    %256 = vmatpush1.msra.mxu0 0.0
    %257 = vmatprep.subr.mxu0 0.0
    %258 = vmatpush1.msra.mxu0 0.0
    %259 = vmatprep.subr.mxu0 0.0
    %260 = vmatpush1.msra.mxu0 0.0
    %261 = vmatprep.subr.mxu0 0.0
    %262 = vmatpush1.msra.mxu0 0.0
    %263 = vmatprep.subr.mxu0 0.0
    %264 = vmatpush1.msra.mxu0 0.0
    %265 = vmatprep.subr.mxu0 0.0
    %266 = vmatpush1.msra.mxu0 0.0
    %267 = vmatprep.subr.mxu0 0.0
    %268 = vmatpush1.msra.mxu0 0.0
    %269 = vmatprep.subr.mxu0 0.0
    %270 = vmatpush1.msra.mxu0 0.0
    %271 = vmatprep.subr.mxu0 0.0
    %272 = vmatpush1.msra.mxu0 0.0
    %273 = vmatprep.subr.mxu0 0.0
    %274 = vmatpush1.msra.mxu0 0.0
    %275 = vmatprep.subr.mxu0 0.0
    %276 = vmatpush1.msra.mxu0 0.0
    %277 = vmatprep.subr.mxu0 0.0
    %278 = vmatpush1.msra.mxu0 0.0
    %279 = vmatprep.subr.mxu0 0.0
    %280 = vmatpush1.msra.mxu0 0.0
    %281 = vmatprep.subr.mxu0 0.0
    %282 = vmatpush1.msra.mxu0 0.0
    %283 = vmatprep.subr.mxu0 0.0
    %284 = vmatpush1.msra.mxu0 0.0
    %285 = vmatprep.subr.mxu0 0.0
    %286 = vmatpush1.msra.mxu0 0.0
    %287 = vmatprep.subr.mxu0 0.0
    %288 = vmatpush1.msra.mxu0 0.0
    %289 = vmatprep.subr.mxu0 0.0
    %290 = vmatpush1.msra.mxu0 0.0
    %291 = vmatprep.subr.mxu0 0.0
    %292 = vmatpush1.msra.mxu0 0.0
    %293 = vmatprep.subr.mxu0 0.0
    %294 = vmatpush1.msra.mxu0 0.0
    %295 = vmatprep.subr.mxu0 0.0
    %296 = vmatpush1.msra.mxu0 0.0
    %297 = vmatprep.subr.mxu0 0.0
    %298 = vmatpush1.msra.mxu0 0.0
    %299 = vmatprep.mubr.f32.mxu0 0.0
    %300 = vmatmul.mubr.f32.gmra.mrb[0].mxu0 %v136
    %v301 = vpop.f32.mrb[0].mxu0
    %v302 = vadd.f32 %v133, %v301
    %v303 = vpop.f32.mrb[0].mxu0
    %304 = vmatprep.mubr.f32.mxu0 0.0
    %305 = vmatmul.mubr.f32.gmra.mrb[0].mxu0 %v139
    %v306 = vpop.f32.mrb[0].mxu0
    %v307 = vadd.f32 %v133, %v306
    %v308 = vpop.f32.mrb[0].mxu0
    %309 = vmatprep.mubr.f32.mxu0 0.0
    %310 = vmatmul.mubr.f32.gmra.mrb[0].mxu0 %v142
    %v311 = vpop.f32.mrb[0].mxu0
    %v312 = vadd.f32 %v133, %v311
    %v313 = vpop.f32.mrb[0].mxu0
    %314 = vmatprep.mubr.f32.mxu0 0.0
    %315 = vmatmul.mubr.f32.gmra.mrb[0].mxu0 %v145
    %v316 = vpop.f32.mrb[0].mxu0
    %v317 = vadd.f32 %v133, %v316
    %v318 = vpop.f32.mrb[0].mxu0
    %319 = vmatprep.mubr.f32.mxu0 0.0
    %320 = vmatmul.mubr.f32.gmra.mrb[0].mxu0 %v148
    %v321 = vpop.f32.mrb[0].mxu0
    %v322 = vadd.f32 %v133, %v321
    %v323 = vpop.f32.mrb[0].mxu0
    %324 = vmatprep.mubr.f32.mxu0 0.0
    %325 = vmatmul.mubr.f32.gmra.mrb[0].mxu0 %v151
    %v326 = vpop.f32.mrb[0].mxu0
    %v327 = vadd.f32 %v133, %v326
    %v328 = vpop.f32.mrb[0].mxu0
    %329 = vmatprep.mubr.f32.mxu0 0.0
    %330 = vmatmul.mubr.f32.gmra.mrb[0].mxu0 %v154
    %v331 = vpop.f32.mrb[0].mxu0
    %v332 = vadd.f32 %v133, %v331
    %v333 = vpop.f32.mrb[0].mxu0
    %334 = vmatprep.mubr.f32.mxu0 0.0
    %335 = vmatmul.mubr.f32.gmra.mrb[0].mxu0 %v157
    %v336 = vpop.f32.mrb[0].mxu0
    %v337 = vadd.f32 %v133, %v336
    %v338 = vpop.f32.mrb[0].mxu0
    %339 = vmatprep.mubr.f32.mxu0 0.0
    %340 = vmatmul.mubr.f32.gmra.mrb[0].mxu0 %v160
    %v341 = vpop.f32.mrb[0].mxu0
    %v342 = vadd.f32 %v133, %v341
    %v343 = vpop.f32.mrb[0].mxu0
    %344 = vmatprep.mubr.f32.mxu0 0.0
    %345 = vmatmul.mubr.f32.gmra.mrb[0].mxu0 %v163
    %v346 = vpop.f32.mrb[0].mxu0
    %v347 = vadd.f32 %v133, %v346
    %v348 = vpop.f32.mrb[0].mxu0
    %349 = vmatprep.mubr.f32.mxu0 0.0
    %350 = vmatmul.mubr.f32.gmra.mrb[0].mxu0 %v166
    %v351 = vpop.f32.mrb[0].mxu0
    %v352 = vadd.f32 %v133, %v351
    %v353 = vpop.f32.mrb[0].mxu0
    %354 = vmatprep.mubr.f32.mxu0 0.0
    %355 = vmatmul.mubr.f32.gmra.mrb[0].mxu0 %v169
    %v356 = vpop.f32.mrb[0].mxu0
    %v357 = vadd.f32 %v133, %v356
    %v358 = vpop.f32.mrb[0].mxu0
    %359 = vmatprep.mubr.f32.mxu0 0.0
    %360 = vmatmul.mubr.f32.gmra.mrb[0].mxu0 %v172
    %v361 = vpop.f32.mrb[0].mxu0
    %v362 = vadd.f32 %v133, %v361
    %v363 = vpop.f32.mrb[0].mxu0
    %364 = vmatprep.mubr.f32.mxu0 0.0
    %365 = vmatmul.mubr.f32.gmra.mrb[0].mxu0 %v175
    %v366 = vpop.f32.mrb[0].mxu0
    %v367 = vadd.f32 %v133, %v366
    %v368 = vpop.f32.mrb[0].mxu0
    %369 = vmatprep.mubr.f32.mxu0 0.0
    %370 = vmatmul.mubr.f32.gmra.mrb[0].mxu0 %v178
    %v371 = vpop.f32.mrb[0].mxu0
    %v372 = vadd.f32 %v133, %v371
    %v373 = vpop.f32.mrb[0].mxu0
    %374 = vmatprep.mubr.f32.mxu0 0.0
    %375 = vmatmul.mubr.f32.gmra.mrb[0].mxu0 %v181
    %v376 = vpop.f32.mrb[0].mxu0
    %v377 = vadd.f32 %v133, %v376
    %v378 = vpop.f32.mrb[0].mxu0
    %379 = vmatprep.mubr.f32.mxu0 0.0
    %380 = vmatmul.mubr.f32.gmra.mrb[0].mxu0 %v184
    %v381 = vpop.f32.mrb[0].mxu0
    %v382 = vadd.f32 %v133, %v381
    %v383 = vpop.f32.mrb[0].mxu0
    %384 = vmatprep.mubr.f32.mxu0 0.0
    %385 = vmatmul.mubr.f32.gmra.mrb[0].mxu0 %v187
    %v386 = vpop.f32.mrb[0].mxu0
    %v387 = vadd.f32 %v133, %v386
    %v388 = vpop.f32.mrb[0].mxu0
    %389 = vmatprep.mubr.f32.mxu0 0.0
    %390 = vmatmul.mubr.f32.gmra.mrb[0].mxu0 %v190
    %v391 = vpop.f32.mrb[0].mxu0
    %v392 = vadd.f32 %v133, %v391
    %v393 = vpop.f32.mrb[0].mxu0
    %394 = vmatprep.mubr.f32.mxu0 0.0
    %395 = vmatmul.mubr.f32.gmra.mrb[0].mxu0 %v193
    %v396 = vpop.f32.mrb[0].mxu0
    %v397 = vadd.f32 %v133, %v396
    %v398 = vpop.f32.mrb[0].mxu0
    %399 = vmatprep.mubr.f32.mxu0 0.0
    %400 = vmatmul.mubr.f32.gmra.mrb[0].mxu0 %v196
    %v401 = vpop.f32.mrb[0].mxu0
    %v402 = vadd.f32 %v133, %v401
    %v403 = vpop.f32.mrb[0].mxu0
    %404 = vmatprep.mubr.f32.mxu0 0.0
    %405 = vmatmul.mubr.f32.gmra.mrb[0].mxu0 %v199
    %v406 = vpop.f32.mrb[0].mxu0
    %v407 = vadd.f32 %v133, %v406
    %v408 = vpop.f32.mrb[0].mxu0
    %409 = vmatprep.mubr.f32.mxu0 0.0
    %410 = vmatmul.mubr.f32.gmra.mrb[0].mxu0 %v202
    %v411 = vpop.f32.mrb[0].mxu0
    %v412 = vadd.f32 %v133, %v411
    %v413 = vpop.f32.mrb[0].mxu0
    %414 = vmatprep.mubr.f32.mxu0 0.0
    %415 = vmatmul.mubr.f32.gmra.mrb[0].mxu0 %v205
    %v416 = vpop.f32.mrb[0].mxu0
    %v417 = vadd.f32 %v133, %v416
    %v418 = vpop.f32.mrb[0].mxu0
    %419 = vmatprep.mubr.f32.mxu0 0.0
    %420 = vmatmul.mubr.f32.gmra.mrb[0].mxu0 %v208
    %v421 = vpop.f32.mrb[0].mxu0
    %v422 = vadd.f32 %v133, %v421
    %v423 = vpop.f32.mrb[0].mxu0
    %424 = vmatprep.mubr.f32.mxu0 0.0
    %425 = vmatmul.mubr.f32.gmra.mrb[0].mxu0 %v211
    %v426 = vpop.f32.mrb[0].mxu0
    %v427 = vadd.f32 %v133, %v426
    %v428 = vpop.f32.mrb[0].mxu0
    %429 = vmatprep.mubr.f32.mxu0 0.0
    %430 = vmatmul.mubr.f32.gmra.mrb[0].mxu0 %v214
    %v431 = vpop.f32.mrb[0].mxu0
    %v432 = vadd.f32 %v133, %v431
    %v433 = vpop.f32.mrb[0].mxu0
    %434 = vmatprep.mubr.f32.mxu0 0.0
    %435 = vmatmul.mubr.f32.gmra.mrb[0].mxu0 %v217
    %v436 = vpop.f32.mrb[0].mxu0
    %v437 = vadd.f32 %v133, %v436
    %v438 = vpop.f32.mrb[0].mxu0
    %439 = vmatprep.mubr.f32.mxu0 0.0
    %440 = vmatmul.mubr.f32.gmra.mrb[0].mxu0 %v220
    %v441 = vpop.f32.mrb[0].mxu0
    %v442 = vadd.f32 %v133, %v441
    %v443 = vpop.f32.mrb[0].mxu0
    %444 = vmatprep.mubr.f32.mxu0 0.0
    %445 = vmatmul.mubr.f32.gmra.mrb[0].mxu0 %v223
    %v446 = vpop.f32.mrb[0].mxu0
    %v447 = vadd.f32 %v133, %v446
    %v448 = vpop.f32.mrb[0].mxu0
    %449 = vmatprep.mubr.f32.mxu0 0.0
    %450 = vmatmul.mubr.f32.gmra.mrb[0].mxu0 %v226
    %v451 = vpop.f32.mrb[0].mxu0
    %v452 = vadd.f32 %v133, %v451
    %v453 = vpop.f32.mrb[0].mxu0
    %454 = vmatprep.mubr.f32.mxu0 0.0
    %455 = vmatmul.mubr.f32.gmra.mrb[0].mxu0 %v229
    %v456 = vpop.f32.mrb[0].mxu0
    %v457 = vadd.f32 %v133, %v456
    %v458 = vpop.f32.mrb[0].mxu0
    %459 = vdwg.mxu0
    %vm460 = vcmp.ge.f32.partialorder %v302, 0.0
    %vm461 = vcmp.ge.f32.partialorder %v307, 0.0
    %vm462 = vcmp.ge.f32.partialorder %v312, 0.0
    %vm463 = vcmp.ge.f32.partialorder %v317, 0.0
    %vm464 = vcmp.ge.f32.partialorder %v322, 0.0
    %vm465 = vcmp.ge.f32.partialorder %v327, 0.0
    %vm466 = vcmp.ge.f32.partialorder %v332, 0.0
    %vm467 = vcmp.ge.f32.partialorder %v337, 0.0
    %vm468 = vcmp.ge.f32.partialorder %v342, 0.0
    %vm469 = vcmp.ge.f32.partialorder %v347, 0.0
    %vm470 = vcmp.ge.f32.partialorder %v352, 0.0
    %vm471 = vcmp.ge.f32.partialorder %v357, 0.0
    %vm472 = vcmp.ge.f32.partialorder %v362, 0.0
    %vm473 = vcmp.ge.f32.partialorder %v367, 0.0
    %vm474 = vcmp.ge.f32.partialorder %v372, 0.0
    %vm475 = vcmp.ge.f32.partialorder %v377, 0.0
    %vm476 = vcmp.ge.f32.partialorder %v382, 0.0
    %vm477 = vcmp.ge.f32.partialorder %v387, 0.0
    %vm478 = vcmp.ge.f32.partialorder %v392, 0.0
    %vm479 = vcmp.ge.f32.partialorder %v397, 0.0
    %vm480 = vcmp.ge.f32.partialorder %v402, 0.0
    %vm481 = vcmp.ge.f32.partialorder %v407, 0.0
    %vm482 = vcmp.ge.f32.partialorder %v412, 0.0
    %vm483 = vcmp.ge.f32.partialorder %v417, 0.0
    %vm484 = vcmp.ge.f32.partialorder %v422, 0.0
    %vm485 = vcmp.ge.f32.partialorder %v427, 0.0
    %vm486 = vcmp.ge.f32.partialorder %v432, 0.0
    %vm487 = vcmp.ge.f32.partialorder %v437, 0.0
    %vm488 = vcmp.ge.f32.partialorder %v442, 0.0
    %vm489 = vcmp.ge.f32.partialorder %v447, 0.0
    %vm490 = vcmp.ge.f32.partialorder %v452, 0.0
    %vm491 = vcmp.ge.f32.partialorder %v457, 0.0
    %v492 = vlaneseq
    %v493 = vshrl.u32 %v492, 7
    %v494 = vsub.s32 6, %v493
    %v495 = vrot.slane %v63, %v494
    %v496 = vmul.f32 %v495, %v302
    %v497 = vmul.f32 %v495, %v307
    %v498 = vmul.f32 %v495, %v312
    %v499 = vmul.f32 %v495, %v317
    %v500 = vmul.f32 %v495, %v322
    %v501 = vmul.f32 %v495, %v327
    %v502 = vmul.f32 %v495, %v332
    %v503 = vmul.f32 %v495, %v337
    %v504 = vmul.f32 %v495, %v342
    %v505 = vmul.f32 %v495, %v347
    %v506 = vmul.f32 %v495, %v352
    %v507 = vmul.f32 %v495, %v357
    %v508 = vmul.f32 %v495, %v362
    %v509 = vmul.f32 %v495, %v367
    %v510 = vmul.f32 %v495, %v372
    %v511 = vmul.f32 %v495, %v377
    %v512 = vmul.f32 %v495, %v382
    %v513 = vmul.f32 %v495, %v387
    %v514 = vmul.f32 %v495, %v392
    %v515 = vmul.f32 %v495, %v397
    %v516 = vmul.f32 %v495, %v402
    %v517 = vmul.f32 %v495, %v407
    %v518 = vmul.f32 %v495, %v412
    %v519 = vmul.f32 %v495, %v417
    %v520 = vmul.f32 %v495, %v422
    %v521 = vmul.f32 %v495, %v427
    %v522 = vmul.f32 %v495, %v432
    %v523 = vmul.f32 %v495, %v437
    %v524 = vmul.f32 %v495, %v442
    %v525 = vmul.f32 %v495, %v447
    %v526 = vmul.f32 %v495, %v452
    %v527 = vmul.f32 %v495, %v457
    %v528 = vsel %vm460, %v302, %v496
    %v529 = vsel %vm461, %v307, %v497
    %v530 = vsel %vm462, %v312, %v498
    %v531 = vsel %vm463, %v317, %v499
    %v532 = vsel %vm464, %v322, %v500
    %v533 = vsel %vm465, %v327, %v501
    %v534 = vsel %vm466, %v332, %v502
    %v535 = vsel %vm467, %v337, %v503
    %v536 = vsel %vm468, %v342, %v504
    %v537 = vsel %vm469, %v347, %v505
    %v538 = vsel %vm470, %v352, %v506
    %v539 = vsel %vm471, %v357, %v507
    %v540 = vsel %vm472, %v362, %v508
    %v541 = vsel %vm473, %v367, %v509
    %v542 = vsel %vm474, %v372, %v510
    %v543 = vsel %vm475, %v377, %v511
    %v544 = vsel %vm476, %v382, %v512
    %v545 = vsel %vm477, %v387, %v513
    %v546 = vsel %vm478, %v392, %v514
    %v547 = vsel %vm479, %v397, %v515
    %v548 = vsel %vm480, %v402, %v516
    %v549 = vsel %vm481, %v407, %v517
    %v550 = vsel %vm482, %v412, %v518
    %v551 = vsel %vm483, %v417, %v519
    %v552 = vsel %vm484, %v422, %v520
    %v553 = vsel %vm485, %v427, %v521
    %v554 = vsel %vm486, %v432, %v522
    %v555 = vsel %vm487, %v437, %v523
    %v556 = vsel %vm488, %v442, %v524
    %v557 = vsel %vm489, %v447, %v525
    %v558 = vsel %vm490, %v452, %v526
    %v559 = vsel %vm491, %v457, %v527
    %s560 = scalar_lea.vmem [#allocation2], 24
    %561 = vst.msk [vmem:[%s560 + $0x1] sm:$0xff] %vm15, %v528
    %562 = vst.msk [vmem:[%s560 + $0x9] sm:$0xff] %vm15, %v529
    %563 = vst.msk [vmem:[%s560 + $0x19] sm:$0xff] %vm15, %v530
    %564 = vst.msk [vmem:[%s560 + $0x21] sm:$0xff] %vm15, %v531
    %565 = vst.msk [vmem:[%s560 + $0x31] sm:$0xff] %vm15, %v532
    %566 = vst.msk [vmem:[%s560 + $0x39] sm:$0xff] %vm15, %v533
    %567 = vst.msk [vmem:[%s560 + $0x49] sm:$0xff] %vm15, %v534
    %568 = vst.msk [vmem:[%s560 + $0x51] sm:$0xff] %vm15, %v535
    %569 = vst.msk [vmem:[%s560 + $0x61] sm:$0xff] %vm15, %v536
    %570 = vst.msk [vmem:[%s560 + $0x69] sm:$0xff] %vm15, %v537
    %571 = vst.msk [vmem:[%s560 + $0x79] sm:$0xff] %vm15, %v538
    %572 = vst.msk [vmem:[%s560 + $0x81] sm:$0xff] %vm15, %v539
    %573 = vst.msk [vmem:[%s560 + $0x91] sm:$0xff] %vm15, %v540
    %574 = vst.msk [vmem:[%s560 + $0x99] sm:$0xff] %vm15, %v541
    %575 = vst.msk [vmem:[%s560 + $0xa9] sm:$0xff] %vm15, %v542
    %576 = vst.msk [vmem:[%s560 + $0xb1] sm:$0xff] %vm15, %v543
    %577 = vst.msk [vmem:[%s560 + $0xc1] sm:$0xff] %vm15, %v544
    %578 = vst.msk [vmem:[%s560 + $0xc9] sm:$0xff] %vm15, %v545
    %579 = vst.msk [vmem:[%s560 + $0xd9] sm:$0xff] %vm15, %v546
    %580 = vst.msk [vmem:[%s560 + $0xe1] sm:$0xff] %vm15, %v547
    %581 = vst.msk [vmem:[%s560 + $0xf1] sm:$0xff] %vm15, %v548
    %582 = vst.msk [vmem:[%s560 + $0xf9] sm:$0xff] %vm15, %v549
    %583 = vst.msk [vmem:[%s560 + $0x109] sm:$0xff] %vm15, %v550
    %584 = vst.msk [vmem:[%s560 + $0x111] sm:$0xff] %vm15, %v551
    %585 = vst.msk [vmem:[%s560 + $0x121] sm:$0xff] %vm15, %v552
    %586 = vst.msk [vmem:[%s560 + $0x129] sm:$0xff] %vm15, %v553
    %587 = vst.msk [vmem:[%s560 + $0x139] sm:$0xff] %vm15, %v554
    %588 = vst.msk [vmem:[%s560 + $0x141] sm:$0xff] %vm15, %v555
    %589 = vst.msk [vmem:[%s560 + $0x151] sm:$0xff] %vm15, %v556
    %590 = vst.msk [vmem:[%s560 + $0x159] sm:$0xff] %vm15, %v557
    %591 = vst.msk [vmem:[%s560 + $0x169] sm:$0xff] %vm15, %v558
    %592 = vst.msk [vmem:[%s560 + $0x171] sm:$0xff] %vm15, %v559
    %v593 = vld [vmem:[#allocation2] sm:$0xff]
    %v594 = vld [vmem:[#allocation2 + $0x8] sm:$0xff]
    %v595 = vld [vmem:[#allocation2 + $0x10] sm:$0x3]
    %v596 = vld [vmem:[#allocation2 + $0x30] sm:$0xff]
    %v597 = vld [vmem:[#allocation2 + $0x38] sm:$0xff]
    %v598 = vld [vmem:[#allocation2 + $0x40] sm:$0x3]
    %v599 = vld [vmem:[#allocation2 + $0x60] sm:$0xff]
    %v600 = vld [vmem:[#allocation2 + $0x68] sm:$0xff]
    %v601 = vld [vmem:[#allocation2 + $0x70] sm:$0x3]
    %v602 = vld [vmem:[#allocation2 + $0x90] sm:$0xff]
    %v603 = vld [vmem:[#allocation2 + $0x98] sm:$0xff]
    %v604 = vld [vmem:[#allocation2 + $0xa0] sm:$0x3]
    %v605 = vld [vmem:[#allocation2 + $0xc0] sm:$0xff]
    %v606 = vld [vmem:[#allocation2 + $0xc8] sm:$0xff]
    %v607 = vld [vmem:[#allocation2 + $0xd0] sm:$0x3]
    %v608 = vld [vmem:[#allocation2 + $0xf0] sm:$0xff]
    %v609 = vld [vmem:[#allocation2 + $0xf8] sm:$0xff]
    %v610 = vld [vmem:[#allocation2 + $0x100] sm:$0x3]
    %v611 = vld [vmem:[#allocation2 + $0x120] sm:$0xff]
    %v612 = vld [vmem:[#allocation2 + $0x128] sm:$0xff]
    %v613 = vld [vmem:[#allocation2 + $0x130] sm:$0x3]
    %v614 = vld [vmem:[#allocation2 + $0x150] sm:$0xff]
    %v615 = vld [vmem:[#allocation2 + $0x158] sm:$0xff]
    %v616 = vld [vmem:[#allocation2 + $0x160] sm:$0x3]
    %v617 = vlaneseq
    %v618 = vshrl.u32 %v617, 7
    %v619 = vsub.s32 4, %v618
    %v620 = vrot.slane %v61, %v619
    %v621 = vmul.f32 %v593, %v620
    %v622 = vmul.f32 %v594, %v620
    %v623 = vmul.f32 %v596, %v620
    %v624 = vmul.f32 %v597, %v620
    %v625 = vmul.f32 %v599, %v620
    %v626 = vmul.f32 %v600, %v620
    %v627 = vmul.f32 %v602, %v620
    %v628 = vmul.f32 %v603, %v620
    %v629 = vmul.f32 %v605, %v620
    %v630 = vmul.f32 %v606, %v620
    %v631 = vmul.f32 %v608, %v620
    %v632 = vmul.f32 %v609, %v620
    %v633 = vmul.f32 %v611, %v620
    %v634 = vmul.f32 %v612, %v620
    %v635 = vmul.f32 %v614, %v620
    %v636 = vmul.f32 %v615, %v620
    %v637 = vadd.f32 %v621, 0.0
    %v638 = vadd.f32 %v622, 0.0
    %v639 = vadd.f32 %v623, 0.0
    %v640 = vadd.f32 %v624, 0.0
    %v641 = vadd.f32 %v625, 0.0
    %v642 = vadd.f32 %v626, 0.0
    %v643 = vadd.f32 %v627, 0.0
    %v644 = vadd.f32 %v628, 0.0
    %v645 = vadd.f32 %v629, 0.0
    %v646 = vadd.f32 %v630, 0.0
    %v647 = vadd.f32 %v631, 0.0
    %v648 = vadd.f32 %v632, 0.0
    %v649 = vadd.f32 %v633, 0.0
    %v650 = vadd.f32 %v634, 0.0
    %v651 = vadd.f32 %v635, 0.0
    %v652 = vadd.f32 %v636, 0.0
    %v653 = vlaneseq
    %v654 = vshrl.u32 %v653, 7
    %v655 = vsub.s32 5, %v654
    %v656 = vrot.slane %v61, %v655
    %v657 = vmul.f32 %v593, %v656
    %v658 = vmul.f32 %v594, %v656
    %v659 = vmul.f32 %v596, %v656
    %v660 = vmul.f32 %v597, %v656
    %v661 = vmul.f32 %v599, %v656
    %v662 = vmul.f32 %v600, %v656
    %v663 = vmul.f32 %v602, %v656
    %v664 = vmul.f32 %v603, %v656
    %v665 = vmul.f32 %v605, %v656
    %v666 = vmul.f32 %v606, %v656
    %v667 = vmul.f32 %v608, %v656
    %v668 = vmul.f32 %v609, %v656
    %v669 = vmul.f32 %v611, %v656
    %v670 = vmul.f32 %v612, %v656
    %v671 = vmul.f32 %v614, %v656
    %v672 = vmul.f32 %v615, %v656
    %vm689 = vcmask 1046528
    %v690 = vrot.slane %v657, 1
    %v691 = vrot.slane %v658, 1
    %v692 = vsel %vm689, %v690, %v691
    %v693 = vrot.slane %v659, 1
    %v694 = vrot.slane %v660, 1
    %v695 = vsel %vm689, %v693, %v694
    %v696 = vrot.slane %v661, 1
    %v697 = vrot.slane %v662, 1
    %v698 = vsel %vm689, %v696, %v697
    %v699 = vrot.slane %v663, 1
    %v700 = vrot.slane %v664, 1
    %v701 = vsel %vm689, %v699, %v700
    %v702 = vrot.slane %v665, 1
    %v703 = vrot.slane %v666, 1
    %v704 = vsel %vm689, %v702, %v703
    %v705 = vrot.slane %v667, 1
    %v706 = vrot.slane %v668, 1
    %v707 = vsel %vm689, %v705, %v706
    %v708 = vrot.slane %v669, 1
    %v709 = vrot.slane %v670, 1
    %v710 = vsel %vm689, %v708, %v709
    %v711 = vrot.slane %v671, 1
    %v712 = vrot.slane %v672, 1
    %v713 = vsel %vm689, %v711, %v712
    %v730 = vadd.f32 %v637, %v692
    %v731 = vadd.f32 %v638, %v691
    %v732 = vadd.f32 %v639, %v695
    %v733 = vadd.f32 %v640, %v694
    %v734 = vadd.f32 %v641, %v698
    %v735 = vadd.f32 %v642, %v697
    %v736 = vadd.f32 %v643, %v701
    %v737 = vadd.f32 %v644, %v700
    %v738 = vadd.f32 %v645, %v704
    %v739 = vadd.f32 %v646, %v703
    %v740 = vadd.f32 %v647, %v707
    %v741 = vadd.f32 %v648, %v706
    %v742 = vadd.f32 %v649, %v710
    %v743 = vadd.f32 %v650, %v709
    %v744 = vadd.f32 %v651, %v713
    %v745 = vadd.f32 %v652, %v712
    %v746 = vlaneseq
    %v747 = vshrl.u32 %v746, 7
    %v748 = vsub.s32 6, %v747
    %v749 = vrot.slane %v61, %v748
    %v750 = vmul.f32 %v593, %v749
    %v751 = vmul.f32 %v594, %v749
    %v752 = vmul.f32 %v595, %v749
    %v753 = vmul.f32 %v596, %v749
    %v754 = vmul.f32 %v597, %v749
    %v755 = vmul.f32 %v598, %v749
    %v756 = vmul.f32 %v599, %v749
    %v757 = vmul.f32 %v600, %v749
    %v758 = vmul.f32 %v601, %v749
    %v759 = vmul.f32 %v602, %v749
    %v760 = vmul.f32 %v603, %v749
    %v761 = vmul.f32 %v604, %v749
    %v762 = vmul.f32 %v605, %v749
    %v763 = vmul.f32 %v606, %v749
    %v764 = vmul.f32 %v607, %v749
    %v765 = vmul.f32 %v608, %v749
    %v766 = vmul.f32 %v609, %v749
    %v767 = vmul.f32 %v610, %v749
    %v768 = vmul.f32 %v611, %v749
    %v769 = vmul.f32 %v612, %v749
    %v770 = vmul.f32 %v613, %v749
    %v771 = vmul.f32 %v614, %v749
    %v772 = vmul.f32 %v615, %v749
    %v773 = vmul.f32 %v616, %v749
    %vm798 = vcmask 1045504
    %v799 = vrot.slane %v750, 2
    %v800 = vrot.slane %v751, 2
    %v801 = vsel %vm798, %v799, %v800
    %v802 = vrot.slane %v752, 2
    %v803 = vsel %vm798, %v800, %v802
    %v804 = vrot.slane %v753, 2
    %v805 = vrot.slane %v754, 2
    %v806 = vsel %vm798, %v804, %v805
    %v807 = vrot.slane %v755, 2
    %v808 = vsel %vm798, %v805, %v807
    %v809 = vrot.slane %v756, 2
    %v810 = vrot.slane %v757, 2
    %v811 = vsel %vm798, %v809, %v810
    %v812 = vrot.slane %v758, 2
    %v813 = vsel %vm798, %v810, %v812
    %v814 = vrot.slane %v759, 2
    %v815 = vrot.slane %v760, 2
    %v816 = vsel %vm798, %v814, %v815
    %v817 = vrot.slane %v761, 2
    %v818 = vsel %vm798, %v815, %v817
    %v819 = vrot.slane %v762, 2
    %v820 = vrot.slane %v763, 2
    %v821 = vsel %vm798, %v819, %v820
    %v822 = vrot.slane %v764, 2
    %v823 = vsel %vm798, %v820, %v822
    %v824 = vrot.slane %v765, 2
    %v825 = vrot.slane %v766, 2
    %v826 = vsel %vm798, %v824, %v825
    %v827 = vrot.slane %v767, 2
    %v828 = vsel %vm798, %v825, %v827
    %v829 = vrot.slane %v768, 2
    %v830 = vrot.slane %v769, 2
    %v831 = vsel %vm798, %v829, %v830
    %v832 = vrot.slane %v770, 2
    %v833 = vsel %vm798, %v830, %v832
    %v834 = vrot.slane %v771, 2
    %v835 = vrot.slane %v772, 2
    %v836 = vsel %vm798, %v834, %v835
    %v837 = vrot.slane %v773, 2
    %v838 = vsel %vm798, %v835, %v837
    %v855 = vadd.f32 %v730, %v801
    %v856 = vadd.f32 %v731, %v803
    %v857 = vadd.f32 %v732, %v806
    %v858 = vadd.f32 %v733, %v808
    %v859 = vadd.f32 %v734, %v811
    %v860 = vadd.f32 %v735, %v813
    %v861 = vadd.f32 %v736, %v816
    %v862 = vadd.f32 %v737, %v818
    %v863 = vadd.f32 %v738, %v821
    %v864 = vadd.f32 %v739, %v823
    %v865 = vadd.f32 %v740, %v826
    %v866 = vadd.f32 %v741, %v828
    %v867 = vadd.f32 %v742, %v831
    %v868 = vadd.f32 %v743, %v833
    %v869 = vadd.f32 %v744, %v836
    %v870 = vadd.f32 %v745, %v838
    %v871 = vld [vmem:[%s560] sm:$0xff]
    %v872 = vld [vmem:[%s560 + $0x8] sm:$0xff]
    %v873 = vld [vmem:[%s560 + $0x10] sm:$0x3]
    %v874 = vld [vmem:[%s560 + $0x30] sm:$0xff]
    %v875 = vld [vmem:[%s560 + $0x38] sm:$0xff]
    %v876 = vld [vmem:[%s560 + $0x40] sm:$0x3]
    %v877 = vld [vmem:[%s560 + $0x60] sm:$0xff]
    %v878 = vld [vmem:[%s560 + $0x68] sm:$0xff]
    %v879 = vld [vmem:[%s560 + $0x70] sm:$0x3]
    %v880 = vld [vmem:[%s560 + $0x90] sm:$0xff]
    %v881 = vld [vmem:[%s560 + $0x98] sm:$0xff]
    %v882 = vld [vmem:[%s560 + $0xa0] sm:$0x3]
    %v883 = vld [vmem:[%s560 + $0xc0] sm:$0xff]
    %v884 = vld [vmem:[%s560 + $0xc8] sm:$0xff]
    %v885 = vld [vmem:[%s560 + $0xd0] sm:$0x3]
    %v886 = vld [vmem:[%s560 + $0xf0] sm:$0xff]
    %v887 = vld [vmem:[%s560 + $0xf8] sm:$0xff]
    %v888 = vld [vmem:[%s560 + $0x100] sm:$0x3]
    %v889 = vld [vmem:[%s560 + $0x120] sm:$0xff]
    %v890 = vld [vmem:[%s560 + $0x128] sm:$0xff]
    %v891 = vld [vmem:[%s560 + $0x130] sm:$0x3]
    %v892 = vld [vmem:[%s560 + $0x150] sm:$0xff]
    %v893 = vld [vmem:[%s560 + $0x158] sm:$0xff]
    %v894 = vld [vmem:[%s560 + $0x160] sm:$0x3]
    %v895 = vlaneseq
    %v896 = vshrl.u32 %v895, 7
    %v897 = vsub.s32 7, %v896
    %v898 = vrot.slane %v61, %v897
    %v899 = vmul.f32 %v871, %v898
    %v900 = vmul.f32 %v872, %v898
    %v901 = vmul.f32 %v874, %v898
    %v902 = vmul.f32 %v875, %v898
    %v903 = vmul.f32 %v877, %v898
    %v904 = vmul.f32 %v878, %v898
    %v905 = vmul.f32 %v880, %v898
    %v906 = vmul.f32 %v881, %v898
    %v907 = vmul.f32 %v883, %v898
    %v908 = vmul.f32 %v884, %v898
    %v909 = vmul.f32 %v886, %v898
    %v910 = vmul.f32 %v887, %v898
    %v911 = vmul.f32 %v889, %v898
    %v912 = vmul.f32 %v890, %v898
    %v913 = vmul.f32 %v892, %v898
    %v914 = vmul.f32 %v893, %v898
    %v915 = vadd.f32 %v855, %v899
    %v916 = vadd.f32 %v856, %v900
    %v917 = vadd.f32 %v857, %v901
    %v918 = vadd.f32 %v858, %v902
    %v919 = vadd.f32 %v859, %v903
    %v920 = vadd.f32 %v860, %v904
    %v921 = vadd.f32 %v861, %v905
    %v922 = vadd.f32 %v862, %v906
    %v923 = vadd.f32 %v863, %v907
    %v924 = vadd.f32 %v864, %v908
    %v925 = vadd.f32 %v865, %v909
    %v926 = vadd.f32 %v866, %v910
    %v927 = vadd.f32 %v867, %v911
    %v928 = vadd.f32 %v868, %v912
    %v929 = vadd.f32 %v869, %v913
    %v930 = vadd.f32 %v870, %v914
    %v931 = vlaneseq
    %v932 = vshrl.u32 %v931, 7
    %v933 = vsub.s32 0, %v932
    %v934 = vrot.slane %v62, %v933
    %v935 = vmul.f32 %v871, %v934
    %v936 = vmul.f32 %v872, %v934
    %v937 = vmul.f32 %v874, %v934
    %v938 = vmul.f32 %v875, %v934
    %v939 = vmul.f32 %v877, %v934
    %v940 = vmul.f32 %v878, %v934
    %v941 = vmul.f32 %v880, %v934
    %v942 = vmul.f32 %v881, %v934
    %v943 = vmul.f32 %v883, %v934
    %v944 = vmul.f32 %v884, %v934
    %v945 = vmul.f32 %v886, %v934
    %v946 = vmul.f32 %v887, %v934
    %v947 = vmul.f32 %v889, %v934
    %v948 = vmul.f32 %v890, %v934
    %v949 = vmul.f32 %v892, %v934
    %v950 = vmul.f32 %v893, %v934
    %v967 = vrot.slane %v935, 1
    %v968 = vrot.slane %v936, 1
    %v969 = vsel %vm689, %v967, %v968
    %v970 = vrot.slane %v937, 1
    %v971 = vrot.slane %v938, 1
    %v972 = vsel %vm689, %v970, %v971
    %v973 = vrot.slane %v939, 1
    %v974 = vrot.slane %v940, 1
    %v975 = vsel %vm689, %v973, %v974
    %v976 = vrot.slane %v941, 1
    %v977 = vrot.slane %v942, 1
    %v978 = vsel %vm689, %v976, %v977
    %v979 = vrot.slane %v943, 1
    %v980 = vrot.slane %v944, 1
    %v981 = vsel %vm689, %v979, %v980
    %v982 = vrot.slane %v945, 1
    %v983 = vrot.slane %v946, 1
    %v984 = vsel %vm689, %v982, %v983
    %v985 = vrot.slane %v947, 1
    %v986 = vrot.slane %v948, 1
    %v987 = vsel %vm689, %v985, %v986
    %v988 = vrot.slane %v949, 1
    %v989 = vrot.slane %v950, 1
    %v990 = vsel %vm689, %v988, %v989
    %v1007 = vadd.f32 %v915, %v969
    %v1008 = vadd.f32 %v916, %v968
    %v1009 = vadd.f32 %v917, %v972
    %v1010 = vadd.f32 %v918, %v971
    %v1011 = vadd.f32 %v919, %v975
    %v1012 = vadd.f32 %v920, %v974
    %v1013 = vadd.f32 %v921, %v978
    %v1014 = vadd.f32 %v922, %v977
    %v1015 = vadd.f32 %v923, %v981
    %v1016 = vadd.f32 %v924, %v980
    %v1017 = vadd.f32 %v925, %v984
    %v1018 = vadd.f32 %v926, %v983
    %v1019 = vadd.f32 %v927, %v987
    %v1020 = vadd.f32 %v928, %v986
    %v1021 = vadd.f32 %v929, %v990
    %v1022 = vadd.f32 %v930, %v989
    %v1023 = vlaneseq
    %v1024 = vshrl.u32 %v1023, 7
    %v1025 = vsub.s32 1, %v1024
    %v1026 = vrot.slane %v62, %v1025
    %v1027 = vmul.f32 %v871, %v1026
    %v1028 = vmul.f32 %v872, %v1026
    %v1029 = vmul.f32 %v873, %v1026
    %v1030 = vmul.f32 %v874, %v1026
    %v1031 = vmul.f32 %v875, %v1026
    %v1032 = vmul.f32 %v876, %v1026
    %v1033 = vmul.f32 %v877, %v1026
    %v1034 = vmul.f32 %v878, %v1026
    %v1035 = vmul.f32 %v879, %v1026
    %v1036 = vmul.f32 %v880, %v1026
    %v1037 = vmul.f32 %v881, %v1026
    %v1038 = vmul.f32 %v882, %v1026
    %v1039 = vmul.f32 %v883, %v1026
    %v1040 = vmul.f32 %v884, %v1026
    %v1041 = vmul.f32 %v885, %v1026
    %v1042 = vmul.f32 %v886, %v1026
    %v1043 = vmul.f32 %v887, %v1026
    %v1044 = vmul.f32 %v888, %v1026
    %v1045 = vmul.f32 %v889, %v1026
    %v1046 = vmul.f32 %v890, %v1026
    %v1047 = vmul.f32 %v891, %v1026
    %v1048 = vmul.f32 %v892, %v1026
    %v1049 = vmul.f32 %v893, %v1026
    %v1050 = vmul.f32 %v894, %v1026
    %v1075 = vrot.slane %v1027, 2
    %v1076 = vrot.slane %v1028, 2
    %v1077 = vsel %vm798, %v1075, %v1076
    %v1078 = vrot.slane %v1029, 2
    %v1079 = vsel %vm798, %v1076, %v1078
    %v1080 = vrot.slane %v1030, 2
    %v1081 = vrot.slane %v1031, 2
    %v1082 = vsel %vm798, %v1080, %v1081
    %v1083 = vrot.slane %v1032, 2
    %v1084 = vsel %vm798, %v1081, %v1083
    %v1085 = vrot.slane %v1033, 2
    %v1086 = vrot.slane %v1034, 2
    %v1087 = vsel %vm798, %v1085, %v1086
    %v1088 = vrot.slane %v1035, 2
    %v1089 = vsel %vm798, %v1086, %v1088
    %v1090 = vrot.slane %v1036, 2
    %v1091 = vrot.slane %v1037, 2
    %v1092 = vsel %vm798, %v1090, %v1091
    %v1093 = vrot.slane %v1038, 2
    %v1094 = vsel %vm798, %v1091, %v1093
    %v1095 = vrot.slane %v1039, 2
    %v1096 = vrot.slane %v1040, 2
    %v1097 = vsel %vm798, %v1095, %v1096
    %v1098 = vrot.slane %v1041, 2
    %v1099 = vsel %vm798, %v1096, %v1098
    %v1100 = vrot.slane %v1042, 2
    %v1101 = vrot.slane %v1043, 2
    %v1102 = vsel %vm798, %v1100, %v1101
    %v1103 = vrot.slane %v1044, 2
    %v1104 = vsel %vm798, %v1101, %v1103
    %v1105 = vrot.slane %v1045, 2
    %v1106 = vrot.slane %v1046, 2
    %v1107 = vsel %vm798, %v1105, %v1106
    %v1108 = vrot.slane %v1047, 2
    %v1109 = vsel %vm798, %v1106, %v1108
    %v1110 = vrot.slane %v1048, 2
    %v1111 = vrot.slane %v1049, 2
    %v1112 = vsel %vm798, %v1110, %v1111
    %v1113 = vrot.slane %v1050, 2
    %v1114 = vsel %vm798, %v1111, %v1113
    %v1131 = vadd.f32 %v1007, %v1077
    %v1132 = vadd.f32 %v1008, %v1079
    %v1133 = vadd.f32 %v1009, %v1082
    %v1134 = vadd.f32 %v1010, %v1084
    %v1135 = vadd.f32 %v1011, %v1087
    %v1136 = vadd.f32 %v1012, %v1089
    %v1137 = vadd.f32 %v1013, %v1092
    %v1138 = vadd.f32 %v1014, %v1094
    %v1139 = vadd.f32 %v1015, %v1097
    %v1140 = vadd.f32 %v1016, %v1099
    %v1141 = vadd.f32 %v1017, %v1102
    %v1142 = vadd.f32 %v1018, %v1104
    %v1143 = vadd.f32 %v1019, %v1107
    %v1144 = vadd.f32 %v1020, %v1109
    %v1145 = vadd.f32 %v1021, %v1112
    %v1146 = vadd.f32 %v1022, %v1114
    %s1147 = scalar_lea.vmem [#allocation2], 48
    %v1148 = vld [vmem:[%s1147] sm:$0xff]
    %v1149 = vld [vmem:[%s1147 + $0x8] sm:$0xff]
    %v1150 = vld [vmem:[%s1147 + $0x10] sm:$0x3]
    %v1151 = vld [vmem:[%s1147 + $0x30] sm:$0xff]
    %v1152 = vld [vmem:[%s1147 + $0x38] sm:$0xff]
    %v1153 = vld [vmem:[%s1147 + $0x40] sm:$0x3]
    %v1154 = vld [vmem:[%s1147 + $0x60] sm:$0xff]
    %v1155 = vld [vmem:[%s1147 + $0x68] sm:$0xff]
    %v1156 = vld [vmem:[%s1147 + $0x70] sm:$0x3]
    %v1157 = vld [vmem:[%s1147 + $0x90] sm:$0xff]
    %v1158 = vld [vmem:[%s1147 + $0x98] sm:$0xff]
    %v1159 = vld [vmem:[%s1147 + $0xa0] sm:$0x3]
    %v1160 = vld [vmem:[%s1147 + $0xc0] sm:$0xff]
    %v1161 = vld [vmem:[%s1147 + $0xc8] sm:$0xff]
    %v1162 = vld [vmem:[%s1147 + $0xd0] sm:$0x3]
    %v1163 = vld [vmem:[%s1147 + $0xf0] sm:$0xff]
    %v1164 = vld [vmem:[%s1147 + $0xf8] sm:$0xff]
    %v1165 = vld [vmem:[%s1147 + $0x100] sm:$0x3]
    %v1166 = vld [vmem:[%s1147 + $0x120] sm:$0xff]
    %v1167 = vld [vmem:[%s1147 + $0x128] sm:$0xff]
    %v1168 = vld [vmem:[%s1147 + $0x130] sm:$0x3]
    %v1169 = vld [vmem:[%s1147 + $0x150] sm:$0xff]
    %v1170 = vld [vmem:[%s1147 + $0x158] sm:$0xff]
    %v1171 = vld [vmem:[%s1147 + $0x160] sm:$0x3]
    %v1172 = vlaneseq
    %v1173 = vshrl.u32 %v1172, 7
    %v1174 = vsub.s32 2, %v1173
    %v1175 = vrot.slane %v62, %v1174
    %v1176 = vmul.f32 %v1148, %v1175
    %v1177 = vmul.f32 %v1149, %v1175
    %v1178 = vmul.f32 %v1151, %v1175
    %v1179 = vmul.f32 %v1152, %v1175
    %v1180 = vmul.f32 %v1154, %v1175
    %v1181 = vmul.f32 %v1155, %v1175
    %v1182 = vmul.f32 %v1157, %v1175
    %v1183 = vmul.f32 %v1158, %v1175
    %v1184 = vmul.f32 %v1160, %v1175
    %v1185 = vmul.f32 %v1161, %v1175
    %v1186 = vmul.f32 %v1163, %v1175
    %v1187 = vmul.f32 %v1164, %v1175
    %v1188 = vmul.f32 %v1166, %v1175
    %v1189 = vmul.f32 %v1167, %v1175
    %v1190 = vmul.f32 %v1169, %v1175
    %v1191 = vmul.f32 %v1170, %v1175
    %v1192 = vadd.f32 %v1131, %v1176
    %v1193 = vadd.f32 %v1132, %v1177
    %v1194 = vadd.f32 %v1133, %v1178
    %v1195 = vadd.f32 %v1134, %v1179
    %v1196 = vadd.f32 %v1135, %v1180
    %v1197 = vadd.f32 %v1136, %v1181
    %v1198 = vadd.f32 %v1137, %v1182
    %v1199 = vadd.f32 %v1138, %v1183
    %v1200 = vadd.f32 %v1139, %v1184
    %v1201 = vadd.f32 %v1140, %v1185
    %v1202 = vadd.f32 %v1141, %v1186
    %v1203 = vadd.f32 %v1142, %v1187
    %v1204 = vadd.f32 %v1143, %v1188
    %v1205 = vadd.f32 %v1144, %v1189
    %v1206 = vadd.f32 %v1145, %v1190
    %v1207 = vadd.f32 %v1146, %v1191
    %v1208 = vlaneseq
    %v1209 = vshrl.u32 %v1208, 7
    %v1210 = vsub.s32 3, %v1209
    %v1211 = vrot.slane %v62, %v1210
    %v1212 = vmul.f32 %v1148, %v1211
    %v1213 = vmul.f32 %v1149, %v1211
    %v1214 = vmul.f32 %v1151, %v1211
    %v1215 = vmul.f32 %v1152, %v1211
    %v1216 = vmul.f32 %v1154, %v1211
    %v1217 = vmul.f32 %v1155, %v1211
    %v1218 = vmul.f32 %v1157, %v1211
    %v1219 = vmul.f32 %v1158, %v1211
    %v1220 = vmul.f32 %v1160, %v1211
    %v1221 = vmul.f32 %v1161, %v1211
    %v1222 = vmul.f32 %v1163, %v1211
    %v1223 = vmul.f32 %v1164, %v1211
    %v1224 = vmul.f32 %v1166, %v1211
    %v1225 = vmul.f32 %v1167, %v1211
    %v1226 = vmul.f32 %v1169, %v1211
    %v1227 = vmul.f32 %v1170, %v1211
    %v1244 = vrot.slane %v1212, 1
    %v1245 = vrot.slane %v1213, 1
    %v1246 = vsel %vm689, %v1244, %v1245
    %v1247 = vrot.slane %v1214, 1
    %v1248 = vrot.slane %v1215, 1
    %v1249 = vsel %vm689, %v1247, %v1248
    %v1250 = vrot.slane %v1216, 1
    %v1251 = vrot.slane %v1217, 1
    %v1252 = vsel %vm689, %v1250, %v1251
    %v1253 = vrot.slane %v1218, 1
    %v1254 = vrot.slane %v1219, 1
    %v1255 = vsel %vm689, %v1253, %v1254
    %v1256 = vrot.slane %v1220, 1
    %v1257 = vrot.slane %v1221, 1
    %v1258 = vsel %vm689, %v1256, %v1257
    %v1259 = vrot.slane %v1222, 1
    %v1260 = vrot.slane %v1223, 1
    %v1261 = vsel %vm689, %v1259, %v1260
    %v1262 = vrot.slane %v1224, 1
    %v1263 = vrot.slane %v1225, 1
    %v1264 = vsel %vm689, %v1262, %v1263
    %v1265 = vrot.slane %v1226, 1
    %v1266 = vrot.slane %v1227, 1
    %v1267 = vsel %vm689, %v1265, %v1266
    %v1284 = vadd.f32 %v1192, %v1246
    %v1285 = vadd.f32 %v1193, %v1245
    %v1286 = vadd.f32 %v1194, %v1249
    %v1287 = vadd.f32 %v1195, %v1248
    %v1288 = vadd.f32 %v1196, %v1252
    %v1289 = vadd.f32 %v1197, %v1251
    %v1290 = vadd.f32 %v1198, %v1255
    %v1291 = vadd.f32 %v1199, %v1254
    %v1292 = vadd.f32 %v1200, %v1258
    %v1293 = vadd.f32 %v1201, %v1257
    %v1294 = vadd.f32 %v1202, %v1261
    %v1295 = vadd.f32 %v1203, %v1260
    %v1296 = vadd.f32 %v1204, %v1264
    %v1297 = vadd.f32 %v1205, %v1263
    %v1298 = vadd.f32 %v1206, %v1267
    %v1299 = vadd.f32 %v1207, %v1266
    %v1300 = vlaneseq
    %v1301 = vshrl.u32 %v1300, 7
    %v1302 = vsub.s32 4, %v1301
    %v1303 = vrot.slane %v62, %v1302
    %v1304 = vmul.f32 %v1148, %v1303
    %v1305 = vmul.f32 %v1149, %v1303
    %v1306 = vmul.f32 %v1150, %v1303
    %v1307 = vmul.f32 %v1151, %v1303
    %v1308 = vmul.f32 %v1152, %v1303
    %v1309 = vmul.f32 %v1153, %v1303
    %v1310 = vmul.f32 %v1154, %v1303
    %v1311 = vmul.f32 %v1155, %v1303
    %v1312 = vmul.f32 %v1156, %v1303
    %v1313 = vmul.f32 %v1157, %v1303
    %v1314 = vmul.f32 %v1158, %v1303
    %v1315 = vmul.f32 %v1159, %v1303
    %v1316 = vmul.f32 %v1160, %v1303
    %v1317 = vmul.f32 %v1161, %v1303
    %v1318 = vmul.f32 %v1162, %v1303
    %v1319 = vmul.f32 %v1163, %v1303
    %v1320 = vmul.f32 %v1164, %v1303
    %v1321 = vmul.f32 %v1165, %v1303
    %v1322 = vmul.f32 %v1166, %v1303
    %v1323 = vmul.f32 %v1167, %v1303
    %v1324 = vmul.f32 %v1168, %v1303
    %v1325 = vmul.f32 %v1169, %v1303
    %v1326 = vmul.f32 %v1170, %v1303
    %v1327 = vmul.f32 %v1171, %v1303
    %v1352 = vrot.slane %v1304, 2
    %v1353 = vrot.slane %v1305, 2
    %v1354 = vsel %vm798, %v1352, %v1353
    %v1355 = vrot.slane %v1306, 2
    %v1356 = vsel %vm798, %v1353, %v1355
    %v1357 = vrot.slane %v1307, 2
    %v1358 = vrot.slane %v1308, 2
    %v1359 = vsel %vm798, %v1357, %v1358
    %v1360 = vrot.slane %v1309, 2
    %v1361 = vsel %vm798, %v1358, %v1360
    %v1362 = vrot.slane %v1310, 2
    %v1363 = vrot.slane %v1311, 2
    %v1364 = vsel %vm798, %v1362, %v1363
    %v1365 = vrot.slane %v1312, 2
    %v1366 = vsel %vm798, %v1363, %v1365
    %v1367 = vrot.slane %v1313, 2
    %v1368 = vrot.slane %v1314, 2
    %v1369 = vsel %vm798, %v1367, %v1368
    %v1370 = vrot.slane %v1315, 2
    %v1371 = vsel %vm798, %v1368, %v1370
    %v1372 = vrot.slane %v1316, 2
    %v1373 = vrot.slane %v1317, 2
    %v1374 = vsel %vm798, %v1372, %v1373
    %v1375 = vrot.slane %v1318, 2
    %v1376 = vsel %vm798, %v1373, %v1375
    %v1377 = vrot.slane %v1319, 2
    %v1378 = vrot.slane %v1320, 2
    %v1379 = vsel %vm798, %v1377, %v1378
    %v1380 = vrot.slane %v1321, 2
    %v1381 = vsel %vm798, %v1378, %v1380
    %v1382 = vrot.slane %v1322, 2
    %v1383 = vrot.slane %v1323, 2
    %v1384 = vsel %vm798, %v1382, %v1383
    %v1385 = vrot.slane %v1324, 2
    %v1386 = vsel %vm798, %v1383, %v1385
    %v1387 = vrot.slane %v1325, 2
    %v1388 = vrot.slane %v1326, 2
    %v1389 = vsel %vm798, %v1387, %v1388
    %v1390 = vrot.slane %v1327, 2
    %v1391 = vsel %vm798, %v1388, %v1390
    %v1408 = vadd.f32 %v1284, %v1354
    %v1409 = vadd.f32 %v1285, %v1356
    %v1410 = vadd.f32 %v1286, %v1359
    %v1411 = vadd.f32 %v1287, %v1361
    %v1412 = vadd.f32 %v1288, %v1364
    %v1413 = vadd.f32 %v1289, %v1366
    %v1414 = vadd.f32 %v1290, %v1369
    %v1415 = vadd.f32 %v1291, %v1371
    %v1416 = vadd.f32 %v1292, %v1374
    %v1417 = vadd.f32 %v1293, %v1376
    %v1418 = vadd.f32 %v1294, %v1379
    %v1419 = vadd.f32 %v1295, %v1381
    %v1420 = vadd.f32 %v1296, %v1384
    %v1421 = vadd.f32 %v1297, %v1386
    %v1422 = vadd.f32 %v1298, %v1389
    %v1423 = vadd.f32 %v1299, %v1391
    %1424 = vst.msk [vmem:[#allocation3] sm:$0xff] %vm15, %v1408
    %vm1425 = vcmask 129024
    %1426 = vst.msk [vmem:[#allocation3 + $0x8] sm:$0x7f] %vm1425, %v1409
    %1427 = vst.msk [vmem:[#allocation3 + $0x10] sm:$0xff] %vm15, %v1410
    %1428 = vst.msk [vmem:[#allocation3 + $0x18] sm:$0x7f] %vm1425, %v1411
    %1429 = vst.msk [vmem:[#allocation3 + $0x20] sm:$0xff] %vm15, %v1412
    %1430 = vst.msk [vmem:[#allocation3 + $0x28] sm:$0x7f] %vm1425, %v1413
    %1431 = vst.msk [vmem:[#allocation3 + $0x30] sm:$0xff] %vm15, %v1414
    %1432 = vst.msk [vmem:[#allocation3 + $0x38] sm:$0x7f] %vm1425, %v1415
    %1433 = vst.msk [vmem:[#allocation3 + $0x40] sm:$0xff] %vm15, %v1416
    %1434 = vst.msk [vmem:[#allocation3 + $0x48] sm:$0x7f] %vm1425, %v1417
    %1435 = vst.msk [vmem:[#allocation3 + $0x50] sm:$0xff] %vm15, %v1418
    %1436 = vst.msk [vmem:[#allocation3 + $0x58] sm:$0x7f] %vm1425, %v1419
    %1437 = vst.msk [vmem:[#allocation3 + $0x60] sm:$0xff] %vm15, %v1420
    %1438 = vst.msk [vmem:[#allocation3 + $0x68] sm:$0x7f] %vm1425, %v1421
    %1439 = vst.msk [vmem:[#allocation3 + $0x70] sm:$0xff] %vm15, %v1422
    %1440 = vst.msk [vmem:[#allocation3 + $0x78] sm:$0x7f] %vm1425, %v1423
    %v1441 = vld [vmem:[#allocation3] ss:$2 sm:$0xff]
    %s1442 = scalar_lea.vmem [#allocation3], 16
    %v1443 = vld [vmem:[%s1442] ss:$2 sm:$0xff]
    %s1444 = scalar_lea.vmem [#allocation3], 32
    %v1445 = vld [vmem:[%s1444] ss:$2 sm:$0xff]
    %s1446 = scalar_lea.vmem [#allocation3], 48
    %v1447 = vld [vmem:[%s1446] ss:$2 sm:$0xff]
    %s1448 = scalar_lea.vmem [#allocation3], 64
    %v1449 = vld [vmem:[%s1448] ss:$2 sm:$0xff]
    %s1450 = scalar_lea.vmem [#allocation3], 80
    %v1451 = vld [vmem:[%s1450] ss:$2 sm:$0xff]
    %s1452 = scalar_lea.vmem [#allocation3], 96
    %v1453 = vld [vmem:[%s1452] ss:$2 sm:$0xff]
    %s1454 = scalar_lea.vmem [#allocation3], 112
    %v1455 = vld [vmem:[%s1454] ss:$2 sm:$0xff]
    %v1456 = vlaneseq
    %v1457 = vshrl.u32 %v1456, 7
    %v1458 = vsub.s32 7, %v1457
    %v1459 = vrot.slane %v63, %v1458
    %v1460 = vadd.f32 %v1441, %v1459
    %v1461 = vadd.f32 %v1443, %v1459
    %v1462 = vadd.f32 %v1445, %v1459
    %v1463 = vadd.f32 %v1447, %v1459
    %v1464 = vadd.f32 %v1449, %v1459
    %v1465 = vadd.f32 %v1451, %v1459
    %v1466 = vadd.f32 %v1453, %v1459
    %v1467 = vadd.f32 %v1455, %v1459
    %vm1468 = vcmp.ge.f32.partialorder %v1460, 0.0
    %vm1469 = vcmp.ge.f32.partialorder %v1461, 0.0
    %vm1470 = vcmp.ge.f32.partialorder %v1462, 0.0
    %vm1471 = vcmp.ge.f32.partialorder %v1463, 0.0
    %vm1472 = vcmp.ge.f32.partialorder %v1464, 0.0
    %vm1473 = vcmp.ge.f32.partialorder %v1465, 0.0
    %vm1474 = vcmp.ge.f32.partialorder %v1466, 0.0
    %vm1475 = vcmp.ge.f32.partialorder %v1467, 0.0
    %v1476 = vlaneseq
    %v1477 = vshrl.u32 %v1476, 7
    %v1478 = vsub.s32 0, %v1477
    %v1479 = vrot.slane %v64, %v1478
    %v1480 = vmul.f32 %v1479, %v1460
    %v1481 = vmul.f32 %v1479, %v1461
    %v1482 = vmul.f32 %v1479, %v1462
    %v1483 = vmul.f32 %v1479, %v1463
    %v1484 = vmul.f32 %v1479, %v1464
    %v1485 = vmul.f32 %v1479, %v1465
    %v1486 = vmul.f32 %v1479, %v1466
    %v1487 = vmul.f32 %v1479, %v1467
    %v1488 = vsel %vm1468, %v1460, %v1480
    %v1489 = vsel %vm1469, %v1461, %v1481
    %v1490 = vsel %vm1470, %v1462, %v1482
    %v1491 = vsel %vm1471, %v1463, %v1483
    %v1492 = vsel %vm1472, %v1464, %v1484
    %v1493 = vsel %vm1473, %v1465, %v1485
    %v1494 = vsel %vm1474, %v1466, %v1486
    %v1495 = vsel %vm1475, %v1467, %v1487
    %1497 = vset.pattern.permute.xlu0 0
    %1498 = vperm.xlu0 %1497, %v65
    %v1499 = vpop.permute.xlu0 %1498
    %vm1503 = vcmask 1042432
    %v1504 = vrot.slane %v62, 5
    %v1505 = vrot.slane %v63, 5
    %v1506 = vsel %vm1503, %v1504, %v1505
    %v1507 = vsel %vm15, %v1506, 0
    %v1510 = vsel %vm15, %v1488, 0
    %v1513 = vsel %vm15, %v1489, 0
    %v1516 = vsel %vm15, %v1490, 0
    %v1519 = vsel %vm15, %v1491, 0
    %v1522 = vsel %vm15, %v1492, 0
    %v1525 = vsel %vm15, %v1493, 0
    %v1528 = vsel %vm15, %v1494, 0
    %v1531 = vsel %vm15, %v1495, 0
    %1533 = vmatprep.subr.mxu0 0.0
    %1534 = vmatpush1.xpose.msra.mxu0 %v1510
    %1535 = vmatprep.subr.mxu0 0.0
    %1536 = vmatpush1.xpose.msra.mxu0 %v1513
    %1537 = vmatprep.subr.mxu0 0.0
    %1538 = vmatpush1.xpose.msra.mxu0 %v1516
    %1539 = vmatprep.subr.mxu0 0.0
    %1540 = vmatpush1.xpose.msra.mxu0 %v1519
    %1541 = vmatprep.subr.mxu0 0.0
    %1542 = vmatpush1.xpose.msra.mxu0 %v1522
    %1543 = vmatprep.subr.mxu0 0.0
    %1544 = vmatpush1.xpose.msra.mxu0 %v1525
    %1545 = vmatprep.subr.mxu0 0.0
    %1546 = vmatpush1.xpose.msra.mxu0 %v1528
    %1547 = vmatprep.subr.mxu0 0.0
    %1548 = vmatpush1.xpose.msra.mxu0 %v1531
    %1549 = vmatprep.subr.mxu0 0.0
    %1550 = vmatpush1.xpose.msra.mxu0 0.0
    %1551 = vmatprep.subr.mxu0 0.0
    %1552 = vmatpush1.xpose.msra.mxu0 0.0
    %1553 = vmatprep.subr.mxu0 0.0
    %1554 = vmatpush1.xpose.msra.mxu0 0.0
    %1555 = vmatprep.subr.mxu0 0.0
    %1556 = vmatpush1.xpose.msra.mxu0 0.0
    %1557 = vmatprep.subr.mxu0 0.0
    %1558 = vmatpush1.xpose.msra.mxu0 0.0
    %1559 = vmatprep.subr.mxu0 0.0
    %1560 = vmatpush1.xpose.msra.mxu0 0.0
    %1561 = vmatprep.subr.mxu0 0.0
    %1562 = vmatpush1.xpose.msra.mxu0 0.0
    %1563 = vmatprep.subr.mxu0 0.0
    %1564 = vmatpush1.xpose.msra.mxu0 0.0
    %1565 = vmatprep.subr.mxu0 0.0
    %1566 = vmatpush1.xpose.msra.mxu0 0.0
    %1567 = vmatprep.subr.mxu0 0.0
    %1568 = vmatpush1.xpose.msra.mxu0 0.0
    %1569 = vmatprep.subr.mxu0 0.0
    %1570 = vmatpush1.xpose.msra.mxu0 0.0
    %1571 = vmatprep.subr.mxu0 0.0
    %1572 = vmatpush1.xpose.msra.mxu0 0.0
    %1573 = vmatprep.subr.mxu0 0.0
    %1574 = vmatpush1.xpose.msra.mxu0 0.0
    %1575 = vmatprep.subr.mxu0 0.0
    %1576 = vmatpush1.xpose.msra.mxu0 0.0
    %1577 = vmatprep.subr.mxu0 0.0
    %1578 = vmatpush1.xpose.msra.mxu0 0.0
    %1579 = vmatprep.subr.mxu0 0.0
    %1580 = vmatpush1.xpose.msra.mxu0 0.0
    %1581 = vmatprep.subr.mxu0 0.0
    %1582 = vmatpush1.xpose.msra.mxu0 0.0
    %1583 = vmatprep.subr.mxu0 0.0
    %1584 = vmatpush1.xpose.msra.mxu0 0.0
    %1585 = vmatprep.subr.mxu0 0.0
    %1586 = vmatpush1.xpose.msra.mxu0 0.0
    %1587 = vmatprep.subr.mxu0 0.0
    %1588 = vmatpush1.xpose.msra.mxu0 0.0
    %1589 = vmatprep.subr.mxu0 0.0
    %1590 = vmatpush1.xpose.msra.mxu0 0.0
    %1591 = vmatprep.subr.mxu0 0.0
    %1592 = vmatpush1.xpose.msra.mxu0 0.0
    %1593 = vmatprep.subr.mxu0 0.0
    %1594 = vmatpush1.xpose.msra.mxu0 0.0
    %1595 = vmatprep.subr.mxu0 0.0
    %1596 = vmatpush1.xpose.msra.mxu0 0.0
    %1597 = vmatprep.mubr.f32.mxu0 0.0
    %1598 = vmatmul.mubr.f32.gmra.mrb[0].mxu0 %v1507
    %v1599 = vpop.f32.mrb[0].mxu0
    %v1600 = vadd.f32 %v1499, %v1599
    %v1601 = vpop.f32.mrb[0].mxu0
    %1602 = vdwg.mxu0
    %vm1603 = vcmask 523264
    %1604 = vst.msk [vmem:[#allocation4] sm:$0xff] %vm1603, %v1600
    %s1605 = scalar_lea.vmem %s0, 128
    %v1606 = vld [vmem:[%s1605] sm:$0xf]
    %v1607 = vld [vmem:[%s1605 + $0x4] sm:$0xf]
    %v1608 = vld [vmem:[%s1605 + $0x8] sm:$0xf]
    %v1609 = vld [vmem:[%s1605 + $0xc] sm:$0xf]
    %v1610 = vld [vmem:[%s1605 + $0x10] sm:$0xf]
    %v1611 = vld [vmem:[%s1605 + $0x14] sm:$0xf]
    %v1612 = vld [vmem:[%s1605 + $0x18] sm:$0xf]
    %v1613 = vld [vmem:[%s1605 + $0x1c] sm:$0xf]
    %v1614 = vld [vmem:[%s1605 + $0x20] sm:$0xf]
    %v1615 = vld [vmem:[%s1605 + $0x24] sm:$0xf]
    %v1616 = vld [vmem:[%s1605 + $0x28] sm:$0xf]
    %v1617 = vld [vmem:[%s1605 + $0x2c] sm:$0xf]
    %v1618 = vld [vmem:[%s1605 + $0x30] sm:$0xf]
    %v1619 = vld [vmem:[%s1605 + $0x34] sm:$0xf]
    %v1620 = vld [vmem:[%s1605 + $0x38] sm:$0xf]
    %v1621 = vld [vmem:[%s1605 + $0x3c] sm:$0xf]
    %v1622 = vld [vmem:[%s1605 + $0x40] sm:$0xf]
    %v1623 = vld [vmem:[%s1605 + $0x44] sm:$0xf]
    %v1624 = vld [vmem:[%s1605 + $0x48] sm:$0xf]
    %v1625 = vld [vmem:[%s1605 + $0x4c] sm:$0xf]
    %v1626 = vld [vmem:[%s1605 + $0x50] sm:$0xf]
    %v1627 = vld [vmem:[%s1605 + $0x54] sm:$0xf]
    %v1628 = vld [vmem:[%s1605 + $0x58] sm:$0xf]
    %v1629 = vld [vmem:[%s1605 + $0x5c] sm:$0xf]
    %v1630 = vld [vmem:[%s1605 + $0x60] sm:$0xf]
    %v1631 = vld [vmem:[%s1605 + $0x64] sm:$0xf]
    %v1632 = vld [vmem:[%s1605 + $0x68] sm:$0xf]
    %v1633 = vld [vmem:[%s1605 + $0x6c] sm:$0xf]
    %v1634 = vld [vmem:[%s1605 + $0x70] sm:$0xf]
    %v1635 = vld [vmem:[%s1605 + $0x74] sm:$0xf]
    %v1636 = vld [vmem:[%s1605 + $0x78] sm:$0xf]
    %v1637 = vld [vmem:[%s1605 + $0x7c] sm:$0xf]
    %v1638 = vunpack.c.l.bf16 %v1606
    %v1639 = vunpack.c.l.bf16 %v1607
    %v1640 = vunpack.c.l.bf16 %v1608
    %v1641 = vunpack.c.l.bf16 %v1609
    %v1642 = vunpack.c.l.bf16 %v1610
    %v1643 = vunpack.c.l.bf16 %v1611
    %v1644 = vunpack.c.l.bf16 %v1612
    %v1645 = vunpack.c.l.bf16 %v1613
    %v1646 = vunpack.c.l.bf16 %v1614
    %v1647 = vunpack.c.l.bf16 %v1615
    %v1648 = vunpack.c.l.bf16 %v1616
    %v1649 = vunpack.c.l.bf16 %v1617
    %v1650 = vunpack.c.l.bf16 %v1618
    %v1651 = vunpack.c.l.bf16 %v1619
    %v1652 = vunpack.c.l.bf16 %v1620
    %v1653 = vunpack.c.l.bf16 %v1621
    %v1654 = vunpack.c.l.bf16 %v1622
    %v1655 = vunpack.c.l.bf16 %v1623
    %v1656 = vunpack.c.l.bf16 %v1624
    %v1657 = vunpack.c.l.bf16 %v1625
    %v1658 = vunpack.c.l.bf16 %v1626
    %v1659 = vunpack.c.l.bf16 %v1627
    %v1660 = vunpack.c.l.bf16 %v1628
    %v1661 = vunpack.c.l.bf16 %v1629
    %v1662 = vunpack.c.l.bf16 %v1630
    %v1663 = vunpack.c.l.bf16 %v1631
    %v1664 = vunpack.c.l.bf16 %v1632
    %v1665 = vunpack.c.l.bf16 %v1633
    %v1666 = vunpack.c.l.bf16 %v1634
    %v1667 = vunpack.c.l.bf16 %v1635
    %v1668 = vunpack.c.l.bf16 %v1636
    %v1669 = vunpack.c.l.bf16 %v1637
    %v1671 = vsel %vm134, %v1638, 0
    %v1674 = vsel %vm134, %v1639, 0
    %v1677 = vsel %vm134, %v1640, 0
    %v1680 = vsel %vm134, %v1641, 0
    %v1683 = vsel %vm134, %v1642, 0
    %v1686 = vsel %vm134, %v1643, 0
    %v1689 = vsel %vm134, %v1644, 0
    %v1692 = vsel %vm134, %v1645, 0
    %v1695 = vsel %vm134, %v1646, 0
    %v1698 = vsel %vm134, %v1647, 0
    %v1701 = vsel %vm134, %v1648, 0
    %v1704 = vsel %vm134, %v1649, 0
    %v1707 = vsel %vm134, %v1650, 0
    %v1710 = vsel %vm134, %v1651, 0
    %v1713 = vsel %vm134, %v1652, 0
    %v1716 = vsel %vm134, %v1653, 0
    %v1719 = vsel %vm134, %v1654, 0
    %v1722 = vsel %vm134, %v1655, 0
    %v1725 = vsel %vm134, %v1656, 0
    %v1728 = vsel %vm134, %v1657, 0
    %v1731 = vsel %vm134, %v1658, 0
    %v1734 = vsel %vm134, %v1659, 0
    %v1737 = vsel %vm134, %v1660, 0
    %v1740 = vsel %vm134, %v1661, 0
    %v1743 = vsel %vm134, %v1662, 0
    %v1746 = vsel %vm134, %v1663, 0
    %v1749 = vsel %vm134, %v1664, 0
    %v1752 = vsel %vm134, %v1665, 0
    %v1755 = vsel %vm134, %v1666, 0
    %v1758 = vsel %vm134, %v1667, 0
    %v1761 = vsel %vm134, %v1668, 0
    %v1764 = vsel %vm134, %v1669, 0
    %1766 = vmatprep.subr.mxu0 0.0
    %1767 = vmatpush1.msra.mxu0 %v233
    %1768 = vmatprep.subr.mxu0 0.0
    %1769 = vmatpush1.msra.mxu0 0.0
    %1770 = vmatprep.subr.mxu0 0.0
    %1771 = vmatpush1.msra.mxu0 0.0
    %1772 = vmatprep.subr.mxu0 0.0
    %1773 = vmatpush1.msra.mxu0 0.0
    %1774 = vmatprep.subr.mxu0 0.0
    %1775 = vmatpush1.msra.mxu0 0.0
    %1776 = vmatprep.subr.mxu0 0.0
    %1777 = vmatpush1.msra.mxu0 0.0
    %1778 = vmatprep.subr.mxu0 0.0
    %1779 = vmatpush1.msra.mxu0 0.0
    %1780 = vmatprep.subr.mxu0 0.0
    %1781 = vmatpush1.msra.mxu0 0.0
    %1782 = vmatprep.subr.mxu0 0.0
    %1783 = vmatpush1.msra.mxu0 0.0
    %1784 = vmatprep.subr.mxu0 0.0
    %1785 = vmatpush1.msra.mxu0 0.0
    %1786 = vmatprep.subr.mxu0 0.0
    %1787 = vmatpush1.msra.mxu0 0.0
    %1788 = vmatprep.subr.mxu0 0.0
    %1789 = vmatpush1.msra.mxu0 0.0
    %1790 = vmatprep.subr.mxu0 0.0
    %1791 = vmatpush1.msra.mxu0 0.0
    %1792 = vmatprep.subr.mxu0 0.0
    %1793 = vmatpush1.msra.mxu0 0.0
    %1794 = vmatprep.subr.mxu0 0.0
    %1795 = vmatpush1.msra.mxu0 0.0
    %1796 = vmatprep.subr.mxu0 0.0
    %1797 = vmatpush1.msra.mxu0 0.0
    %1798 = vmatprep.subr.mxu0 0.0
    %1799 = vmatpush1.msra.mxu0 0.0
    %1800 = vmatprep.subr.mxu0 0.0
    %1801 = vmatpush1.msra.mxu0 0.0
    %1802 = vmatprep.subr.mxu0 0.0
    %1803 = vmatpush1.msra.mxu0 0.0
    %1804 = vmatprep.subr.mxu0 0.0
    %1805 = vmatpush1.msra.mxu0 0.0
    %1806 = vmatprep.subr.mxu0 0.0
    %1807 = vmatpush1.msra.mxu0 0.0
    %1808 = vmatprep.subr.mxu0 0.0
    %1809 = vmatpush1.msra.mxu0 0.0
    %1810 = vmatprep.subr.mxu0 0.0
    %1811 = vmatpush1.msra.mxu0 0.0
    %1812 = vmatprep.subr.mxu0 0.0
    %1813 = vmatpush1.msra.mxu0 0.0
    %1814 = vmatprep.subr.mxu0 0.0
    %1815 = vmatpush1.msra.mxu0 0.0
    %1816 = vmatprep.subr.mxu0 0.0
    %1817 = vmatpush1.msra.mxu0 0.0
    %1818 = vmatprep.subr.mxu0 0.0
    %1819 = vmatpush1.msra.mxu0 0.0
    %1820 = vmatprep.subr.mxu0 0.0
    %1821 = vmatpush1.msra.mxu0 0.0
    %1822 = vmatprep.subr.mxu0 0.0
    %1823 = vmatpush1.msra.mxu0 0.0
    %1824 = vmatprep.subr.mxu0 0.0
    %1825 = vmatpush1.msra.mxu0 0.0
    %1826 = vmatprep.subr.mxu0 0.0
    %1827 = vmatpush1.msra.mxu0 0.0
    %1828 = vmatprep.subr.mxu0 0.0
    %1829 = vmatpush1.msra.mxu0 0.0
    %1830 = vmatprep.mubr.f32.mxu0 0.0
    %1831 = vmatmul.mubr.f32.gmra.mrb[0].mxu0 %v1671
    %v1832 = vpop.f32.mrb[0].mxu0
    %v1833 = vadd.f32 %v133, %v1832
    %v1834 = vpop.f32.mrb[0].mxu0
    %1835 = vmatprep.mubr.f32.mxu0 0.0
    %1836 = vmatmul.mubr.f32.gmra.mrb[0].mxu0 %v1674
    %v1837 = vpop.f32.mrb[0].mxu0
    %v1838 = vadd.f32 %v133, %v1837
    %v1839 = vpop.f32.mrb[0].mxu0
    %1840 = vmatprep.mubr.f32.mxu0 0.0
    %1841 = vmatmul.mubr.f32.gmra.mrb[0].mxu0 %v1677
    %v1842 = vpop.f32.mrb[0].mxu0
    %v1843 = vadd.f32 %v133, %v1842
    %v1844 = vpop.f32.mrb[0].mxu0
    %1845 = vmatprep.mubr.f32.mxu0 0.0
    %1846 = vmatmul.mubr.f32.gmra.mrb[0].mxu0 %v1680
    %v1847 = vpop.f32.mrb[0].mxu0
    %v1848 = vadd.f32 %v133, %v1847
    %v1849 = vpop.f32.mrb[0].mxu0
    %1850 = vmatprep.mubr.f32.mxu0 0.0
    %1851 = vmatmul.mubr.f32.gmra.mrb[0].mxu0 %v1683
    %v1852 = vpop.f32.mrb[0].mxu0
    %v1853 = vadd.f32 %v133, %v1852
    %v1854 = vpop.f32.mrb[0].mxu0
    %1855 = vmatprep.mubr.f32.mxu0 0.0
    %1856 = vmatmul.mubr.f32.gmra.mrb[0].mxu0 %v1686
    %v1857 = vpop.f32.mrb[0].mxu0
    %v1858 = vadd.f32 %v133, %v1857
    %v1859 = vpop.f32.mrb[0].mxu0
    %1860 = vmatprep.mubr.f32.mxu0 0.0
    %1861 = vmatmul.mubr.f32.gmra.mrb[0].mxu0 %v1689
    %v1862 = vpop.f32.mrb[0].mxu0
    %v1863 = vadd.f32 %v133, %v1862
    %v1864 = vpop.f32.mrb[0].mxu0
    %1865 = vmatprep.mubr.f32.mxu0 0.0
    %1866 = vmatmul.mubr.f32.gmra.mrb[0].mxu0 %v1692
    %v1867 = vpop.f32.mrb[0].mxu0
    %v1868 = vadd.f32 %v133, %v1867
    %v1869 = vpop.f32.mrb[0].mxu0
    %1870 = vmatprep.mubr.f32.mxu0 0.0
    %1871 = vmatmul.mubr.f32.gmra.mrb[0].mxu0 %v1695
    %v1872 = vpop.f32.mrb[0].mxu0
    %v1873 = vadd.f32 %v133, %v1872
    %v1874 = vpop.f32.mrb[0].mxu0
    %1875 = vmatprep.mubr.f32.mxu0 0.0
    %1876 = vmatmul.mubr.f32.gmra.mrb[0].mxu0 %v1698
    %v1877 = vpop.f32.mrb[0].mxu0
    %v1878 = vadd.f32 %v133, %v1877
    %v1879 = vpop.f32.mrb[0].mxu0
    %1880 = vmatprep.mubr.f32.mxu0 0.0
    %1881 = vmatmul.mubr.f32.gmra.mrb[0].mxu0 %v1701
    %v1882 = vpop.f32.mrb[0].mxu0
    %v1883 = vadd.f32 %v133, %v1882
    %v1884 = vpop.f32.mrb[0].mxu0
    %1885 = vmatprep.mubr.f32.mxu0 0.0
    %1886 = vmatmul.mubr.f32.gmra.mrb[0].mxu0 %v1704
    %v1887 = vpop.f32.mrb[0].mxu0
    %v1888 = vadd.f32 %v133, %v1887
    %v1889 = vpop.f32.mrb[0].mxu0
    %1890 = vmatprep.mubr.f32.mxu0 0.0
    %1891 = vmatmul.mubr.f32.gmra.mrb[0].mxu0 %v1707
    %v1892 = vpop.f32.mrb[0].mxu0
    %v1893 = vadd.f32 %v133, %v1892
    %v1894 = vpop.f32.mrb[0].mxu0
    %1895 = vmatprep.mubr.f32.mxu0 0.0
    %1896 = vmatmul.mubr.f32.gmra.mrb[0].mxu0 %v1710
    %v1897 = vpop.f32.mrb[0].mxu0
    %v1898 = vadd.f32 %v133, %v1897
    %v1899 = vpop.f32.mrb[0].mxu0
    %1900 = vmatprep.mubr.f32.mxu0 0.0
    %1901 = vmatmul.mubr.f32.gmra.mrb[0].mxu0 %v1713
    %v1902 = vpop.f32.mrb[0].mxu0
    %v1903 = vadd.f32 %v133, %v1902
    %v1904 = vpop.f32.mrb[0].mxu0
    %1905 = vmatprep.mubr.f32.mxu0 0.0
    %1906 = vmatmul.mubr.f32.gmra.mrb[0].mxu0 %v1716
    %v1907 = vpop.f32.mrb[0].mxu0
    %v1908 = vadd.f32 %v133, %v1907
    %v1909 = vpop.f32.mrb[0].mxu0
    %1910 = vmatprep.mubr.f32.mxu0 0.0
    %1911 = vmatmul.mubr.f32.gmra.mrb[0].mxu0 %v1719
    %v1912 = vpop.f32.mrb[0].mxu0
    %v1913 = vadd.f32 %v133, %v1912
    %v1914 = vpop.f32.mrb[0].mxu0
    %1915 = vmatprep.mubr.f32.mxu0 0.0
    %1916 = vmatmul.mubr.f32.gmra.mrb[0].mxu0 %v1722
    %v1917 = vpop.f32.mrb[0].mxu0
    %v1918 = vadd.f32 %v133, %v1917
    %v1919 = vpop.f32.mrb[0].mxu0
    %1920 = vmatprep.mubr.f32.mxu0 0.0
    %1921 = vmatmul.mubr.f32.gmra.mrb[0].mxu0 %v1725
    %v1922 = vpop.f32.mrb[0].mxu0
    %v1923 = vadd.f32 %v133, %v1922
    %v1924 = vpop.f32.mrb[0].mxu0
    %1925 = vmatprep.mubr.f32.mxu0 0.0
    %1926 = vmatmul.mubr.f32.gmra.mrb[0].mxu0 %v1728
    %v1927 = vpop.f32.mrb[0].mxu0
    %v1928 = vadd.f32 %v133, %v1927
    %v1929 = vpop.f32.mrb[0].mxu0
    %1930 = vmatprep.mubr.f32.mxu0 0.0
    %1931 = vmatmul.mubr.f32.gmra.mrb[0].mxu0 %v1731
    %v1932 = vpop.f32.mrb[0].mxu0
    %v1933 = vadd.f32 %v133, %v1932
    %v1934 = vpop.f32.mrb[0].mxu0
    %1935 = vmatprep.mubr.f32.mxu0 0.0
    %1936 = vmatmul.mubr.f32.gmra.mrb[0].mxu0 %v1734
    %v1937 = vpop.f32.mrb[0].mxu0
    %v1938 = vadd.f32 %v133, %v1937
    %v1939 = vpop.f32.mrb[0].mxu0
    %1940 = vmatprep.mubr.f32.mxu0 0.0
    %1941 = vmatmul.mubr.f32.gmra.mrb[0].mxu0 %v1737
    %v1942 = vpop.f32.mrb[0].mxu0
    %v1943 = vadd.f32 %v133, %v1942
    %v1944 = vpop.f32.mrb[0].mxu0
    %1945 = vmatprep.mubr.f32.mxu0 0.0
    %1946 = vmatmul.mubr.f32.gmra.mrb[0].mxu0 %v1740
    %v1947 = vpop.f32.mrb[0].mxu0
    %v1948 = vadd.f32 %v133, %v1947
    %v1949 = vpop.f32.mrb[0].mxu0
    %1950 = vmatprep.mubr.f32.mxu0 0.0
    %1951 = vmatmul.mubr.f32.gmra.mrb[0].mxu0 %v1743
    %v1952 = vpop.f32.mrb[0].mxu0
    %v1953 = vadd.f32 %v133, %v1952
    %v1954 = vpop.f32.mrb[0].mxu0
    %1955 = vmatprep.mubr.f32.mxu0 0.0
    %1956 = vmatmul.mubr.f32.gmra.mrb[0].mxu0 %v1746
    %v1957 = vpop.f32.mrb[0].mxu0
    %v1958 = vadd.f32 %v133, %v1957
    %v1959 = vpop.f32.mrb[0].mxu0
    %1960 = vmatprep.mubr.f32.mxu0 0.0
    %1961 = vmatmul.mubr.f32.gmra.mrb[0].mxu0 %v1749
    %v1962 = vpop.f32.mrb[0].mxu0
    %v1963 = vadd.f32 %v133, %v1962
    %v1964 = vpop.f32.mrb[0].mxu0
    %1965 = vmatprep.mubr.f32.mxu0 0.0
    %1966 = vmatmul.mubr.f32.gmra.mrb[0].mxu0 %v1752
    %v1967 = vpop.f32.mrb[0].mxu0
    %v1968 = vadd.f32 %v133, %v1967
    %v1969 = vpop.f32.mrb[0].mxu0
    %1970 = vmatprep.mubr.f32.mxu0 0.0
    %1971 = vmatmul.mubr.f32.gmra.mrb[0].mxu0 %v1755
    %v1972 = vpop.f32.mrb[0].mxu0
    %v1973 = vadd.f32 %v133, %v1972
    %v1974 = vpop.f32.mrb[0].mxu0
    %1975 = vmatprep.mubr.f32.mxu0 0.0
    %1976 = vmatmul.mubr.f32.gmra.mrb[0].mxu0 %v1758
    %v1977 = vpop.f32.mrb[0].mxu0
    %v1978 = vadd.f32 %v133, %v1977
    %v1979 = vpop.f32.mrb[0].mxu0
    %1980 = vmatprep.mubr.f32.mxu0 0.0
    %1981 = vmatmul.mubr.f32.gmra.mrb[0].mxu0 %v1761
    %v1982 = vpop.f32.mrb[0].mxu0
    %v1983 = vadd.f32 %v133, %v1982
    %v1984 = vpop.f32.mrb[0].mxu0
    %1985 = vmatprep.mubr.f32.mxu0 0.0
    %1986 = vmatmul.mubr.f32.gmra.mrb[0].mxu0 %v1764
    %v1987 = vpop.f32.mrb[0].mxu0
    %v1988 = vadd.f32 %v133, %v1987
    %v1989 = vpop.f32.mrb[0].mxu0
    %1990 = vdwg.mxu0
    %vm1991 = vcmp.ge.f32.partialorder %v1833, 0.0
    %vm1992 = vcmp.ge.f32.partialorder %v1838, 0.0
    %vm1993 = vcmp.ge.f32.partialorder %v1843, 0.0
    %vm1994 = vcmp.ge.f32.partialorder %v1848, 0.0
    %vm1995 = vcmp.ge.f32.partialorder %v1853, 0.0
    %vm1996 = vcmp.ge.f32.partialorder %v1858, 0.0
    %vm1997 = vcmp.ge.f32.partialorder %v1863, 0.0
    %vm1998 = vcmp.ge.f32.partialorder %v1868, 0.0
    %vm1999 = vcmp.ge.f32.partialorder %v1873, 0.0
    %vm2000 = vcmp.ge.f32.partialorder %v1878, 0.0
    %vm2001 = vcmp.ge.f32.partialorder %v1883, 0.0
    %vm2002 = vcmp.ge.f32.partialorder %v1888, 0.0
    %vm2003 = vcmp.ge.f32.partialorder %v1893, 0.0
    %vm2004 = vcmp.ge.f32.partialorder %v1898, 0.0
    %vm2005 = vcmp.ge.f32.partialorder %v1903, 0.0
    %vm2006 = vcmp.ge.f32.partialorder %v1908, 0.0
    %vm2007 = vcmp.ge.f32.partialorder %v1913, 0.0
    %vm2008 = vcmp.ge.f32.partialorder %v1918, 0.0
    %vm2009 = vcmp.ge.f32.partialorder %v1923, 0.0
    %vm2010 = vcmp.ge.f32.partialorder %v1928, 0.0
    %vm2011 = vcmp.ge.f32.partialorder %v1933, 0.0
    %vm2012 = vcmp.ge.f32.partialorder %v1938, 0.0
    %vm2013 = vcmp.ge.f32.partialorder %v1943, 0.0
    %vm2014 = vcmp.ge.f32.partialorder %v1948, 0.0
    %vm2015 = vcmp.ge.f32.partialorder %v1953, 0.0
    %vm2016 = vcmp.ge.f32.partialorder %v1958, 0.0
    %vm2017 = vcmp.ge.f32.partialorder %v1963, 0.0
    %vm2018 = vcmp.ge.f32.partialorder %v1968, 0.0
    %vm2019 = vcmp.ge.f32.partialorder %v1973, 0.0
    %vm2020 = vcmp.ge.f32.partialorder %v1978, 0.0
    %vm2021 = vcmp.ge.f32.partialorder %v1983, 0.0
    %vm2022 = vcmp.ge.f32.partialorder %v1988, 0.0
    %v2023 = vmul.f32 %v495, %v1833
    %v2024 = vmul.f32 %v495, %v1838
    %v2025 = vmul.f32 %v495, %v1843
    %v2026 = vmul.f32 %v495, %v1848
    %v2027 = vmul.f32 %v495, %v1853
    %v2028 = vmul.f32 %v495, %v1858
    %v2029 = vmul.f32 %v495, %v1863
    %v2030 = vmul.f32 %v495, %v1868
    %v2031 = vmul.f32 %v495, %v1873
    %v2032 = vmul.f32 %v495, %v1878
    %v2033 = vmul.f32 %v495, %v1883
    %v2034 = vmul.f32 %v495, %v1888
    %v2035 = vmul.f32 %v495, %v1893
    %v2036 = vmul.f32 %v495, %v1898
    %v2037 = vmul.f32 %v495, %v1903
    %v2038 = vmul.f32 %v495, %v1908
    %v2039 = vmul.f32 %v495, %v1913
    %v2040 = vmul.f32 %v495, %v1918
    %v2041 = vmul.f32 %v495, %v1923
    %v2042 = vmul.f32 %v495, %v1928
    %v2043 = vmul.f32 %v495, %v1933
    %v2044 = vmul.f32 %v495, %v1938
    %v2045 = vmul.f32 %v495, %v1943
    %v2046 = vmul.f32 %v495, %v1948
    %v2047 = vmul.f32 %v495, %v1953
    %v2048 = vmul.f32 %v495, %v1958
    %v2049 = vmul.f32 %v495, %v1963
    %v2050 = vmul.f32 %v495, %v1968
    %v2051 = vmul.f32 %v495, %v1973
    %v2052 = vmul.f32 %v495, %v1978
    %v2053 = vmul.f32 %v495, %v1983
    %v2054 = vmul.f32 %v495, %v1988
    %v2055 = vsel %vm1991, %v1833, %v2023
    %v2056 = vsel %vm1992, %v1838, %v2024
    %v2057 = vsel %vm1993, %v1843, %v2025
    %v2058 = vsel %vm1994, %v1848, %v2026
    %v2059 = vsel %vm1995, %v1853, %v2027
    %v2060 = vsel %vm1996, %v1858, %v2028
    %v2061 = vsel %vm1997, %v1863, %v2029
    %v2062 = vsel %vm1998, %v1868, %v2030
    %v2063 = vsel %vm1999, %v1873, %v2031
    %v2064 = vsel %vm2000, %v1878, %v2032
    %v2065 = vsel %vm2001, %v1883, %v2033
    %v2066 = vsel %vm2002, %v1888, %v2034
    %v2067 = vsel %vm2003, %v1893, %v2035
    %v2068 = vsel %vm2004, %v1898, %v2036
    %v2069 = vsel %vm2005, %v1903, %v2037
    %v2070 = vsel %vm2006, %v1908, %v2038
    %v2071 = vsel %vm2007, %v1913, %v2039
    %v2072 = vsel %vm2008, %v1918, %v2040
    %v2073 = vsel %vm2009, %v1923, %v2041
    %v2074 = vsel %vm2010, %v1928, %v2042
    %v2075 = vsel %vm2011, %v1933, %v2043
    %v2076 = vsel %vm2012, %v1938, %v2044
    %v2077 = vsel %vm2013, %v1943, %v2045
    %v2078 = vsel %vm2014, %v1948, %v2046
    %v2079 = vsel %vm2015, %v1953, %v2047
    %v2080 = vsel %vm2016, %v1958, %v2048
    %v2081 = vsel %vm2017, %v1963, %v2049
    %v2082 = vsel %vm2018, %v1968, %v2050
    %v2083 = vsel %vm2019, %v1973, %v2051
    %v2084 = vsel %vm2020, %v1978, %v2052
    %v2085 = vsel %vm2021, %v1983, %v2053
    %v2086 = vsel %vm2022, %v1988, %v2054
    %2087 = vst.msk [vmem:[%s560 + $0x1] sm:$0xff] %vm15, %v2055
    %2088 = vst.msk [vmem:[%s560 + $0x9] sm:$0xff] %vm15, %v2056
    %2089 = vst.msk [vmem:[%s560 + $0x19] sm:$0xff] %vm15, %v2057
    %2090 = vst.msk [vmem:[%s560 + $0x21] sm:$0xff] %vm15, %v2058
    %2091 = vst.msk [vmem:[%s560 + $0x31] sm:$0xff] %vm15, %v2059
    %2092 = vst.msk [vmem:[%s560 + $0x39] sm:$0xff] %vm15, %v2060
    %2093 = vst.msk [vmem:[%s560 + $0x49] sm:$0xff] %vm15, %v2061
    %2094 = vst.msk [vmem:[%s560 + $0x51] sm:$0xff] %vm15, %v2062
    %2095 = vst.msk [vmem:[%s560 + $0x61] sm:$0xff] %vm15, %v2063
    %2096 = vst.msk [vmem:[%s560 + $0x69] sm:$0xff] %vm15, %v2064
    %2097 = vst.msk [vmem:[%s560 + $0x79] sm:$0xff] %vm15, %v2065
    %2098 = vst.msk [vmem:[%s560 + $0x81] sm:$0xff] %vm15, %v2066
    %2099 = vst.msk [vmem:[%s560 + $0x91] sm:$0xff] %vm15, %v2067
    %2100 = vst.msk [vmem:[%s560 + $0x99] sm:$0xff] %vm15, %v2068
    %2101 = vst.msk [vmem:[%s560 + $0xa9] sm:$0xff] %vm15, %v2069
    %2102 = vst.msk [vmem:[%s560 + $0xb1] sm:$0xff] %vm15, %v2070
    %2103 = vst.msk [vmem:[%s560 + $0xc1] sm:$0xff] %vm15, %v2071
    %2104 = vst.msk [vmem:[%s560 + $0xc9] sm:$0xff] %vm15, %v2072
    %2105 = vst.msk [vmem:[%s560 + $0xd9] sm:$0xff] %vm15, %v2073
    %2106 = vst.msk [vmem:[%s560 + $0xe1] sm:$0xff] %vm15, %v2074
    %2107 = vst.msk [vmem:[%s560 + $0xf1] sm:$0xff] %vm15, %v2075
    %2108 = vst.msk [vmem:[%s560 + $0xf9] sm:$0xff] %vm15, %v2076
    %2109 = vst.msk [vmem:[%s560 + $0x109] sm:$0xff] %vm15, %v2077
    %2110 = vst.msk [vmem:[%s560 + $0x111] sm:$0xff] %vm15, %v2078
    %2111 = vst.msk [vmem:[%s560 + $0x121] sm:$0xff] %vm15, %v2079
    %2112 = vst.msk [vmem:[%s560 + $0x129] sm:$0xff] %vm15, %v2080
    %2113 = vst.msk [vmem:[%s560 + $0x139] sm:$0xff] %vm15, %v2081
    %2114 = vst.msk [vmem:[%s560 + $0x141] sm:$0xff] %vm15, %v2082
    %2115 = vst.msk [vmem:[%s560 + $0x151] sm:$0xff] %vm15, %v2083
    %2116 = vst.msk [vmem:[%s560 + $0x159] sm:$0xff] %vm15, %v2084
    %2117 = vst.msk [vmem:[%s560 + $0x169] sm:$0xff] %vm15, %v2085
    %2118 = vst.msk [vmem:[%s560 + $0x171] sm:$0xff] %vm15, %v2086
    %v2119 = vld [vmem:[#allocation2] sm:$0xff]
    %v2120 = vld [vmem:[#allocation2 + $0x8] sm:$0xff]
    %v2121 = vld [vmem:[#allocation2 + $0x10] sm:$0x3]
    %v2122 = vld [vmem:[#allocation2 + $0x30] sm:$0xff]
    %v2123 = vld [vmem:[#allocation2 + $0x38] sm:$0xff]
    %v2124 = vld [vmem:[#allocation2 + $0x40] sm:$0x3]
    %v2125 = vld [vmem:[#allocation2 + $0x60] sm:$0xff]
    %v2126 = vld [vmem:[#allocation2 + $0x68] sm:$0xff]
    %v2127 = vld [vmem:[#allocation2 + $0x70] sm:$0x3]
    %v2128 = vld [vmem:[#allocation2 + $0x90] sm:$0xff]
    %v2129 = vld [vmem:[#allocation2 + $0x98] sm:$0xff]
    %v2130 = vld [vmem:[#allocation2 + $0xa0] sm:$0x3]
    %v2131 = vld [vmem:[#allocation2 + $0xc0] sm:$0xff]
    %v2132 = vld [vmem:[#allocation2 + $0xc8] sm:$0xff]
    %v2133 = vld [vmem:[#allocation2 + $0xd0] sm:$0x3]
    %v2134 = vld [vmem:[#allocation2 + $0xf0] sm:$0xff]
    %v2135 = vld [vmem:[#allocation2 + $0xf8] sm:$0xff]
    %v2136 = vld [vmem:[#allocation2 + $0x100] sm:$0x3]
    %v2137 = vld [vmem:[#allocation2 + $0x120] sm:$0xff]
    %v2138 = vld [vmem:[#allocation2 + $0x128] sm:$0xff]
    %v2139 = vld [vmem:[#allocation2 + $0x130] sm:$0x3]
    %v2140 = vld [vmem:[#allocation2 + $0x150] sm:$0xff]
    %v2141 = vld [vmem:[#allocation2 + $0x158] sm:$0xff]
    %v2142 = vld [vmem:[#allocation2 + $0x160] sm:$0x3]
    %v2143 = vmul.f32 %v2119, %v620
    %v2144 = vmul.f32 %v2120, %v620
    %v2145 = vmul.f32 %v2122, %v620
    %v2146 = vmul.f32 %v2123, %v620
    %v2147 = vmul.f32 %v2125, %v620
    %v2148 = vmul.f32 %v2126, %v620
    %v2149 = vmul.f32 %v2128, %v620
    %v2150 = vmul.f32 %v2129, %v620
    %v2151 = vmul.f32 %v2131, %v620
    %v2152 = vmul.f32 %v2132, %v620
    %v2153 = vmul.f32 %v2134, %v620
    %v2154 = vmul.f32 %v2135, %v620
    %v2155 = vmul.f32 %v2137, %v620
    %v2156 = vmul.f32 %v2138, %v620
    %v2157 = vmul.f32 %v2140, %v620
    %v2158 = vmul.f32 %v2141, %v620
    %v2159 = vadd.f32 %v2143, 0.0
    %v2160 = vadd.f32 %v2144, 0.0
    %v2161 = vadd.f32 %v2145, 0.0
    %v2162 = vadd.f32 %v2146, 0.0
    %v2163 = vadd.f32 %v2147, 0.0
    %v2164 = vadd.f32 %v2148, 0.0
    %v2165 = vadd.f32 %v2149, 0.0
    %v2166 = vadd.f32 %v2150, 0.0
    %v2167 = vadd.f32 %v2151, 0.0
    %v2168 = vadd.f32 %v2152, 0.0
    %v2169 = vadd.f32 %v2153, 0.0
    %v2170 = vadd.f32 %v2154, 0.0
    %v2171 = vadd.f32 %v2155, 0.0
    %v2172 = vadd.f32 %v2156, 0.0
    %v2173 = vadd.f32 %v2157, 0.0
    %v2174 = vadd.f32 %v2158, 0.0
    %v2175 = vmul.f32 %v2119, %v656
    %v2176 = vmul.f32 %v2120, %v656
    %v2177 = vmul.f32 %v2122, %v656
    %v2178 = vmul.f32 %v2123, %v656
    %v2179 = vmul.f32 %v2125, %v656
    %v2180 = vmul.f32 %v2126, %v656
    %v2181 = vmul.f32 %v2128, %v656
    %v2182 = vmul.f32 %v2129, %v656
    %v2183 = vmul.f32 %v2131, %v656
    %v2184 = vmul.f32 %v2132, %v656
    %v2185 = vmul.f32 %v2134, %v656
    %v2186 = vmul.f32 %v2135, %v656
    %v2187 = vmul.f32 %v2137, %v656
    %v2188 = vmul.f32 %v2138, %v656
    %v2189 = vmul.f32 %v2140, %v656
    %v2190 = vmul.f32 %v2141, %v656
    %v2207 = vrot.slane %v2175, 1
    %v2208 = vrot.slane %v2176, 1
    %v2209 = vsel %vm689, %v2207, %v2208
    %v2210 = vrot.slane %v2177, 1
    %v2211 = vrot.slane %v2178, 1
    %v2212 = vsel %vm689, %v2210, %v2211
    %v2213 = vrot.slane %v2179, 1
    %v2214 = vrot.slane %v2180, 1
    %v2215 = vsel %vm689, %v2213, %v2214
    %v2216 = vrot.slane %v2181, 1
    %v2217 = vrot.slane %v2182, 1
    %v2218 = vsel %vm689, %v2216, %v2217
    %v2219 = vrot.slane %v2183, 1
    %v2220 = vrot.slane %v2184, 1
    %v2221 = vsel %vm689, %v2219, %v2220
    %v2222 = vrot.slane %v2185, 1
    %v2223 = vrot.slane %v2186, 1
    %v2224 = vsel %vm689, %v2222, %v2223
    %v2225 = vrot.slane %v2187, 1
    %v2226 = vrot.slane %v2188, 1
    %v2227 = vsel %vm689, %v2225, %v2226
    %v2228 = vrot.slane %v2189, 1
    %v2229 = vrot.slane %v2190, 1
    %v2230 = vsel %vm689, %v2228, %v2229
    %v2247 = vadd.f32 %v2159, %v2209
    %v2248 = vadd.f32 %v2160, %v2208
    %v2249 = vadd.f32 %v2161, %v2212
    %v2250 = vadd.f32 %v2162, %v2211
    %v2251 = vadd.f32 %v2163, %v2215
    %v2252 = vadd.f32 %v2164, %v2214
    %v2253 = vadd.f32 %v2165, %v2218
    %v2254 = vadd.f32 %v2166, %v2217
    %v2255 = vadd.f32 %v2167, %v2221
    %v2256 = vadd.f32 %v2168, %v2220
    %v2257 = vadd.f32 %v2169, %v2224
    %v2258 = vadd.f32 %v2170, %v2223
    %v2259 = vadd.f32 %v2171, %v2227
    %v2260 = vadd.f32 %v2172, %v2226
    %v2261 = vadd.f32 %v2173, %v2230
    %v2262 = vadd.f32 %v2174, %v2229
    %v2263 = vmul.f32 %v2119, %v749
    %v2264 = vmul.f32 %v2120, %v749
    %v2265 = vmul.f32 %v2121, %v749
    %v2266 = vmul.f32 %v2122, %v749
    %v2267 = vmul.f32 %v2123, %v749
    %v2268 = vmul.f32 %v2124, %v749
    %v2269 = vmul.f32 %v2125, %v749
    %v2270 = vmul.f32 %v2126, %v749
    %v2271 = vmul.f32 %v2127, %v749
    %v2272 = vmul.f32 %v2128, %v749
    %v2273 = vmul.f32 %v2129, %v749
    %v2274 = vmul.f32 %v2130, %v749
    %v2275 = vmul.f32 %v2131, %v749
    %v2276 = vmul.f32 %v2132, %v749
    %v2277 = vmul.f32 %v2133, %v749
    %v2278 = vmul.f32 %v2134, %v749
    %v2279 = vmul.f32 %v2135, %v749
    %v2280 = vmul.f32 %v2136, %v749
    %v2281 = vmul.f32 %v2137, %v749
    %v2282 = vmul.f32 %v2138, %v749
    %v2283 = vmul.f32 %v2139, %v749
    %v2284 = vmul.f32 %v2140, %v749
    %v2285 = vmul.f32 %v2141, %v749
    %v2286 = vmul.f32 %v2142, %v749
    %v2311 = vrot.slane %v2263, 2
    %v2312 = vrot.slane %v2264, 2
    %v2313 = vsel %vm798, %v2311, %v2312
    %v2314 = vrot.slane %v2265, 2
    %v2315 = vsel %vm798, %v2312, %v2314
    %v2316 = vrot.slane %v2266, 2
    %v2317 = vrot.slane %v2267, 2
    %v2318 = vsel %vm798, %v2316, %v2317
    %v2319 = vrot.slane %v2268, 2
    %v2320 = vsel %vm798, %v2317, %v2319
    %v2321 = vrot.slane %v2269, 2
    %v2322 = vrot.slane %v2270, 2
    %v2323 = vsel %vm798, %v2321, %v2322
    %v2324 = vrot.slane %v2271, 2
    %v2325 = vsel %vm798, %v2322, %v2324
    %v2326 = vrot.slane %v2272, 2
    %v2327 = vrot.slane %v2273, 2
    %v2328 = vsel %vm798, %v2326, %v2327
    %v2329 = vrot.slane %v2274, 2
    %v2330 = vsel %vm798, %v2327, %v2329
    %v2331 = vrot.slane %v2275, 2
    %v2332 = vrot.slane %v2276, 2
    %v2333 = vsel %vm798, %v2331, %v2332
    %v2334 = vrot.slane %v2277, 2
    %v2335 = vsel %vm798, %v2332, %v2334
    %v2336 = vrot.slane %v2278, 2
    %v2337 = vrot.slane %v2279, 2
    %v2338 = vsel %vm798, %v2336, %v2337
    %v2339 = vrot.slane %v2280, 2
    %v2340 = vsel %vm798, %v2337, %v2339
    %v2341 = vrot.slane %v2281, 2
    %v2342 = vrot.slane %v2282, 2
    %v2343 = vsel %vm798, %v2341, %v2342
    %v2344 = vrot.slane %v2283, 2
    %v2345 = vsel %vm798, %v2342, %v2344
    %v2346 = vrot.slane %v2284, 2
    %v2347 = vrot.slane %v2285, 2
    %v2348 = vsel %vm798, %v2346, %v2347
    %v2349 = vrot.slane %v2286, 2
    %v2350 = vsel %vm798, %v2347, %v2349
    %v2367 = vadd.f32 %v2247, %v2313
    %v2368 = vadd.f32 %v2248, %v2315
    %v2369 = vadd.f32 %v2249, %v2318
    %v2370 = vadd.f32 %v2250, %v2320
    %v2371 = vadd.f32 %v2251, %v2323
    %v2372 = vadd.f32 %v2252, %v2325
    %v2373 = vadd.f32 %v2253, %v2328
    %v2374 = vadd.f32 %v2254, %v2330
    %v2375 = vadd.f32 %v2255, %v2333
    %v2376 = vadd.f32 %v2256, %v2335
    %v2377 = vadd.f32 %v2257, %v2338
    %v2378 = vadd.f32 %v2258, %v2340
    %v2379 = vadd.f32 %v2259, %v2343
    %v2380 = vadd.f32 %v2260, %v2345
    %v2381 = vadd.f32 %v2261, %v2348
    %v2382 = vadd.f32 %v2262, %v2350
    %v2383 = vld [vmem:[%s560] sm:$0xff]
    %v2384 = vld [vmem:[%s560 + $0x8] sm:$0xff]
    %v2385 = vld [vmem:[%s560 + $0x10] sm:$0x3]
    %v2386 = vld [vmem:[%s560 + $0x30] sm:$0xff]
    %v2387 = vld [vmem:[%s560 + $0x38] sm:$0xff]
    %v2388 = vld [vmem:[%s560 + $0x40] sm:$0x3]
    %v2389 = vld [vmem:[%s560 + $0x60] sm:$0xff]
    %v2390 = vld [vmem:[%s560 + $0x68] sm:$0xff]
    %v2391 = vld [vmem:[%s560 + $0x70] sm:$0x3]
    %v2392 = vld [vmem:[%s560 + $0x90] sm:$0xff]
    %v2393 = vld [vmem:[%s560 + $0x98] sm:$0xff]
    %v2394 = vld [vmem:[%s560 + $0xa0] sm:$0x3]
    %v2395 = vld [vmem:[%s560 + $0xc0] sm:$0xff]
    %v2396 = vld [vmem:[%s560 + $0xc8] sm:$0xff]
    %v2397 = vld [vmem:[%s560 + $0xd0] sm:$0x3]
    %v2398 = vld [vmem:[%s560 + $0xf0] sm:$0xff]
    %v2399 = vld [vmem:[%s560 + $0xf8] sm:$0xff]
    %v2400 = vld [vmem:[%s560 + $0x100] sm:$0x3]
    %v2401 = vld [vmem:[%s560 + $0x120] sm:$0xff]
    %v2402 = vld [vmem:[%s560 + $0x128] sm:$0xff]
    %v2403 = vld [vmem:[%s560 + $0x130] sm:$0x3]
    %v2404 = vld [vmem:[%s560 + $0x150] sm:$0xff]
    %v2405 = vld [vmem:[%s560 + $0x158] sm:$0xff]
    %v2406 = vld [vmem:[%s560 + $0x160] sm:$0x3]
    %v2407 = vmul.f32 %v2383, %v898
    %v2408 = vmul.f32 %v2384, %v898
    %v2409 = vmul.f32 %v2386, %v898
    %v2410 = vmul.f32 %v2387, %v898
    %v2411 = vmul.f32 %v2389, %v898
    %v2412 = vmul.f32 %v2390, %v898
    %v2413 = vmul.f32 %v2392, %v898
    %v2414 = vmul.f32 %v2393, %v898
    %v2415 = vmul.f32 %v2395, %v898
    %v2416 = vmul.f32 %v2396, %v898
    %v2417 = vmul.f32 %v2398, %v898
    %v2418 = vmul.f32 %v2399, %v898
    %v2419 = vmul.f32 %v2401, %v898
    %v2420 = vmul.f32 %v2402, %v898
    %v2421 = vmul.f32 %v2404, %v898
    %v2422 = vmul.f32 %v2405, %v898
    %v2423 = vadd.f32 %v2367, %v2407
    %v2424 = vadd.f32 %v2368, %v2408
    %v2425 = vadd.f32 %v2369, %v2409
    %v2426 = vadd.f32 %v2370, %v2410
    %v2427 = vadd.f32 %v2371, %v2411
    %v2428 = vadd.f32 %v2372, %v2412
    %v2429 = vadd.f32 %v2373, %v2413
    %v2430 = vadd.f32 %v2374, %v2414
    %v2431 = vadd.f32 %v2375, %v2415
    %v2432 = vadd.f32 %v2376, %v2416
    %v2433 = vadd.f32 %v2377, %v2417
    %v2434 = vadd.f32 %v2378, %v2418
    %v2435 = vadd.f32 %v2379, %v2419
    %v2436 = vadd.f32 %v2380, %v2420
    %v2437 = vadd.f32 %v2381, %v2421
    %v2438 = vadd.f32 %v2382, %v2422
    %v2439 = vmul.f32 %v2383, %v934
    %v2440 = vmul.f32 %v2384, %v934
    %v2441 = vmul.f32 %v2386, %v934
    %v2442 = vmul.f32 %v2387, %v934
    %v2443 = vmul.f32 %v2389, %v934
    %v2444 = vmul.f32 %v2390, %v934
    %v2445 = vmul.f32 %v2392, %v934
    %v2446 = vmul.f32 %v2393, %v934
    %v2447 = vmul.f32 %v2395, %v934
    %v2448 = vmul.f32 %v2396, %v934
    %v2449 = vmul.f32 %v2398, %v934
    %v2450 = vmul.f32 %v2399, %v934
    %v2451 = vmul.f32 %v2401, %v934
    %v2452 = vmul.f32 %v2402, %v934
    %v2453 = vmul.f32 %v2404, %v934
    %v2454 = vmul.f32 %v2405, %v934
    %v2471 = vrot.slane %v2439, 1
    %v2472 = vrot.slane %v2440, 1
    %v2473 = vsel %vm689, %v2471, %v2472
    %v2474 = vrot.slane %v2441, 1
    %v2475 = vrot.slane %v2442, 1
    %v2476 = vsel %vm689, %v2474, %v2475
    %v2477 = vrot.slane %v2443, 1
    %v2478 = vrot.slane %v2444, 1
    %v2479 = vsel %vm689, %v2477, %v2478
    %v2480 = vrot.slane %v2445, 1
    %v2481 = vrot.slane %v2446, 1
    %v2482 = vsel %vm689, %v2480, %v2481
    %v2483 = vrot.slane %v2447, 1
    %v2484 = vrot.slane %v2448, 1
    %v2485 = vsel %vm689, %v2483, %v2484
    %v2486 = vrot.slane %v2449, 1
    %v2487 = vrot.slane %v2450, 1
    %v2488 = vsel %vm689, %v2486, %v2487
    %v2489 = vrot.slane %v2451, 1
    %v2490 = vrot.slane %v2452, 1
    %v2491 = vsel %vm689, %v2489, %v2490
    %v2492 = vrot.slane %v2453, 1
    %v2493 = vrot.slane %v2454, 1
    %v2494 = vsel %vm689, %v2492, %v2493
    %v2511 = vadd.f32 %v2423, %v2473
    %v2512 = vadd.f32 %v2424, %v2472
    %v2513 = vadd.f32 %v2425, %v2476
    %v2514 = vadd.f32 %v2426, %v2475
    %v2515 = vadd.f32 %v2427, %v2479
    %v2516 = vadd.f32 %v2428, %v2478
    %v2517 = vadd.f32 %v2429, %v2482
    %v2518 = vadd.f32 %v2430, %v2481
    %v2519 = vadd.f32 %v2431, %v2485
    %v2520 = vadd.f32 %v2432, %v2484
    %v2521 = vadd.f32 %v2433, %v2488
    %v2522 = vadd.f32 %v2434, %v2487
    %v2523 = vadd.f32 %v2435, %v2491
    %v2524 = vadd.f32 %v2436, %v2490
    %v2525 = vadd.f32 %v2437, %v2494
    %v2526 = vadd.f32 %v2438, %v2493
    %v2527 = vmul.f32 %v2383, %v1026
    %v2528 = vmul.f32 %v2384, %v1026
    %v2529 = vmul.f32 %v2385, %v1026
    %v2530 = vmul.f32 %v2386, %v1026
    %v2531 = vmul.f32 %v2387, %v1026
    %v2532 = vmul.f32 %v2388, %v1026
    %v2533 = vmul.f32 %v2389, %v1026
    %v2534 = vmul.f32 %v2390, %v1026
    %v2535 = vmul.f32 %v2391, %v1026
    %v2536 = vmul.f32 %v2392, %v1026
    %v2537 = vmul.f32 %v2393, %v1026
    %v2538 = vmul.f32 %v2394, %v1026
    %v2539 = vmul.f32 %v2395, %v1026
    %v2540 = vmul.f32 %v2396, %v1026
    %v2541 = vmul.f32 %v2397, %v1026
    %v2542 = vmul.f32 %v2398, %v1026
    %v2543 = vmul.f32 %v2399, %v1026
    %v2544 = vmul.f32 %v2400, %v1026
    %v2545 = vmul.f32 %v2401, %v1026
    %v2546 = vmul.f32 %v2402, %v1026
    %v2547 = vmul.f32 %v2403, %v1026
    %v2548 = vmul.f32 %v2404, %v1026
    %v2549 = vmul.f32 %v2405, %v1026
    %v2550 = vmul.f32 %v2406, %v1026
    %v2575 = vrot.slane %v2527, 2
    %v2576 = vrot.slane %v2528, 2
    %v2577 = vsel %vm798, %v2575, %v2576
    %v2578 = vrot.slane %v2529, 2
    %v2579 = vsel %vm798, %v2576, %v2578
    %v2580 = vrot.slane %v2530, 2
    %v2581 = vrot.slane %v2531, 2
    %v2582 = vsel %vm798, %v2580, %v2581
    %v2583 = vrot.slane %v2532, 2
    %v2584 = vsel %vm798, %v2581, %v2583
    %v2585 = vrot.slane %v2533, 2
    %v2586 = vrot.slane %v2534, 2
    %v2587 = vsel %vm798, %v2585, %v2586
    %v2588 = vrot.slane %v2535, 2
    %v2589 = vsel %vm798, %v2586, %v2588
    %v2590 = vrot.slane %v2536, 2
    %v2591 = vrot.slane %v2537, 2
    %v2592 = vsel %vm798, %v2590, %v2591
    %v2593 = vrot.slane %v2538, 2
    %v2594 = vsel %vm798, %v2591, %v2593
    %v2595 = vrot.slane %v2539, 2
    %v2596 = vrot.slane %v2540, 2
    %v2597 = vsel %vm798, %v2595, %v2596
    %v2598 = vrot.slane %v2541, 2
    %v2599 = vsel %vm798, %v2596, %v2598
    %v2600 = vrot.slane %v2542, 2
    %v2601 = vrot.slane %v2543, 2
    %v2602 = vsel %vm798, %v2600, %v2601
    %v2603 = vrot.slane %v2544, 2
    %v2604 = vsel %vm798, %v2601, %v2603
    %v2605 = vrot.slane %v2545, 2
    %v2606 = vrot.slane %v2546, 2
    %v2607 = vsel %vm798, %v2605, %v2606
    %v2608 = vrot.slane %v2547, 2
    %v2609 = vsel %vm798, %v2606, %v2608
    %v2610 = vrot.slane %v2548, 2
    %v2611 = vrot.slane %v2549, 2
    %v2612 = vsel %vm798, %v2610, %v2611
    %v2613 = vrot.slane %v2550, 2
    %v2614 = vsel %vm798, %v2611, %v2613
    %v2631 = vadd.f32 %v2511, %v2577
    %v2632 = vadd.f32 %v2512, %v2579
    %v2633 = vadd.f32 %v2513, %v2582
    %v2634 = vadd.f32 %v2514, %v2584
    %v2635 = vadd.f32 %v2515, %v2587
    %v2636 = vadd.f32 %v2516, %v2589
    %v2637 = vadd.f32 %v2517, %v2592
    %v2638 = vadd.f32 %v2518, %v2594
    %v2639 = vadd.f32 %v2519, %v2597
    %v2640 = vadd.f32 %v2520, %v2599
    %v2641 = vadd.f32 %v2521, %v2602
    %v2642 = vadd.f32 %v2522, %v2604
    %v2643 = vadd.f32 %v2523, %v2607
    %v2644 = vadd.f32 %v2524, %v2609
    %v2645 = vadd.f32 %v2525, %v2612
    %v2646 = vadd.f32 %v2526, %v2614
    %v2647 = vld [vmem:[%s1147] sm:$0xff]
    %v2648 = vld [vmem:[%s1147 + $0x8] sm:$0xff]
    %v2649 = vld [vmem:[%s1147 + $0x10] sm:$0x3]
    %v2650 = vld [vmem:[%s1147 + $0x30] sm:$0xff]
    %v2651 = vld [vmem:[%s1147 + $0x38] sm:$0xff]
    %v2652 = vld [vmem:[%s1147 + $0x40] sm:$0x3]
    %v2653 = vld [vmem:[%s1147 + $0x60] sm:$0xff]
    %v2654 = vld [vmem:[%s1147 + $0x68] sm:$0xff]
    %v2655 = vld [vmem:[%s1147 + $0x70] sm:$0x3]
    %v2656 = vld [vmem:[%s1147 + $0x90] sm:$0xff]
    %v2657 = vld [vmem:[%s1147 + $0x98] sm:$0xff]
    %v2658 = vld [vmem:[%s1147 + $0xa0] sm:$0x3]
    %v2659 = vld [vmem:[%s1147 + $0xc0] sm:$0xff]
    %v2660 = vld [vmem:[%s1147 + $0xc8] sm:$0xff]
    %v2661 = vld [vmem:[%s1147 + $0xd0] sm:$0x3]
    %v2662 = vld [vmem:[%s1147 + $0xf0] sm:$0xff]
    %v2663 = vld [vmem:[%s1147 + $0xf8] sm:$0xff]
    %v2664 = vld [vmem:[%s1147 + $0x100] sm:$0x3]
    %v2665 = vld [vmem:[%s1147 + $0x120] sm:$0xff]
    %v2666 = vld [vmem:[%s1147 + $0x128] sm:$0xff]
    %v2667 = vld [vmem:[%s1147 + $0x130] sm:$0x3]
    %v2668 = vld [vmem:[%s1147 + $0x150] sm:$0xff]
    %v2669 = vld [vmem:[%s1147 + $0x158] sm:$0xff]
    %v2670 = vld [vmem:[%s1147 + $0x160] sm:$0x3]
    %v2671 = vmul.f32 %v2647, %v1175
    %v2672 = vmul.f32 %v2648, %v1175
    %v2673 = vmul.f32 %v2650, %v1175
    %v2674 = vmul.f32 %v2651, %v1175
    %v2675 = vmul.f32 %v2653, %v1175
    %v2676 = vmul.f32 %v2654, %v1175
    %v2677 = vmul.f32 %v2656, %v1175
    %v2678 = vmul.f32 %v2657, %v1175
    %v2679 = vmul.f32 %v2659, %v1175
    %v2680 = vmul.f32 %v2660, %v1175
    %v2681 = vmul.f32 %v2662, %v1175
    %v2682 = vmul.f32 %v2663, %v1175
    %v2683 = vmul.f32 %v2665, %v1175
    %v2684 = vmul.f32 %v2666, %v1175
    %v2685 = vmul.f32 %v2668, %v1175
    %v2686 = vmul.f32 %v2669, %v1175
    %v2687 = vadd.f32 %v2631, %v2671
    %v2688 = vadd.f32 %v2632, %v2672
    %v2689 = vadd.f32 %v2633, %v2673
    %v2690 = vadd.f32 %v2634, %v2674
    %v2691 = vadd.f32 %v2635, %v2675
    %v2692 = vadd.f32 %v2636, %v2676
    %v2693 = vadd.f32 %v2637, %v2677
    %v2694 = vadd.f32 %v2638, %v2678
    %v2695 = vadd.f32 %v2639, %v2679
    %v2696 = vadd.f32 %v2640, %v2680
    %v2697 = vadd.f32 %v2641, %v2681
    %v2698 = vadd.f32 %v2642, %v2682
    %v2699 = vadd.f32 %v2643, %v2683
    %v2700 = vadd.f32 %v2644, %v2684
    %v2701 = vadd.f32 %v2645, %v2685
    %v2702 = vadd.f32 %v2646, %v2686
    %v2703 = vmul.f32 %v2647, %v1211
    %v2704 = vmul.f32 %v2648, %v1211
    %v2705 = vmul.f32 %v2650, %v1211
    %v2706 = vmul.f32 %v2651, %v1211
    %v2707 = vmul.f32 %v2653, %v1211
    %v2708 = vmul.f32 %v2654, %v1211
    %v2709 = vmul.f32 %v2656, %v1211
    %v2710 = vmul.f32 %v2657, %v1211
    %v2711 = vmul.f32 %v2659, %v1211
    %v2712 = vmul.f32 %v2660, %v1211
    %v2713 = vmul.f32 %v2662, %v1211
    %v2714 = vmul.f32 %v2663, %v1211
    %v2715 = vmul.f32 %v2665, %v1211
    %v2716 = vmul.f32 %v2666, %v1211
    %v2717 = vmul.f32 %v2668, %v1211
    %v2718 = vmul.f32 %v2669, %v1211
    %v2735 = vrot.slane %v2703, 1
    %v2736 = vrot.slane %v2704, 1
    %v2737 = vsel %vm689, %v2735, %v2736
    %v2738 = vrot.slane %v2705, 1
    %v2739 = vrot.slane %v2706, 1
    %v2740 = vsel %vm689, %v2738, %v2739
    %v2741 = vrot.slane %v2707, 1
    %v2742 = vrot.slane %v2708, 1
    %v2743 = vsel %vm689, %v2741, %v2742
    %v2744 = vrot.slane %v2709, 1
    %v2745 = vrot.slane %v2710, 1
    %v2746 = vsel %vm689, %v2744, %v2745
    %v2747 = vrot.slane %v2711, 1
    %v2748 = vrot.slane %v2712, 1
    %v2749 = vsel %vm689, %v2747, %v2748
    %v2750 = vrot.slane %v2713, 1
    %v2751 = vrot.slane %v2714, 1
    %v2752 = vsel %vm689, %v2750, %v2751
    %v2753 = vrot.slane %v2715, 1
    %v2754 = vrot.slane %v2716, 1
    %v2755 = vsel %vm689, %v2753, %v2754
    %v2756 = vrot.slane %v2717, 1
    %v2757 = vrot.slane %v2718, 1
    %v2758 = vsel %vm689, %v2756, %v2757
    %v2775 = vadd.f32 %v2687, %v2737
    %v2776 = vadd.f32 %v2688, %v2736
    %v2777 = vadd.f32 %v2689, %v2740
    %v2778 = vadd.f32 %v2690, %v2739
    %v2779 = vadd.f32 %v2691, %v2743
    %v2780 = vadd.f32 %v2692, %v2742
    %v2781 = vadd.f32 %v2693, %v2746
    %v2782 = vadd.f32 %v2694, %v2745
    %v2783 = vadd.f32 %v2695, %v2749
    %v2784 = vadd.f32 %v2696, %v2748
    %v2785 = vadd.f32 %v2697, %v2752
    %v2786 = vadd.f32 %v2698, %v2751
    %v2787 = vadd.f32 %v2699, %v2755
    %v2788 = vadd.f32 %v2700, %v2754
    %v2789 = vadd.f32 %v2701, %v2758
    %v2790 = vadd.f32 %v2702, %v2757
    %v2791 = vmul.f32 %v2647, %v1303
    %v2792 = vmul.f32 %v2648, %v1303
    %v2793 = vmul.f32 %v2649, %v1303
    %v2794 = vmul.f32 %v2650, %v1303
    %v2795 = vmul.f32 %v2651, %v1303
    %v2796 = vmul.f32 %v2652, %v1303
    %v2797 = vmul.f32 %v2653, %v1303
    %v2798 = vmul.f32 %v2654, %v1303
    %v2799 = vmul.f32 %v2655, %v1303
    %v2800 = vmul.f32 %v2656, %v1303
    %v2801 = vmul.f32 %v2657, %v1303
    %v2802 = vmul.f32 %v2658, %v1303
    %v2803 = vmul.f32 %v2659, %v1303
    %v2804 = vmul.f32 %v2660, %v1303
    %v2805 = vmul.f32 %v2661, %v1303
    %v2806 = vmul.f32 %v2662, %v1303
    %v2807 = vmul.f32 %v2663, %v1303
    %v2808 = vmul.f32 %v2664, %v1303
    %v2809 = vmul.f32 %v2665, %v1303
    %v2810 = vmul.f32 %v2666, %v1303
    %v2811 = vmul.f32 %v2667, %v1303
    %v2812 = vmul.f32 %v2668, %v1303
    %v2813 = vmul.f32 %v2669, %v1303
    %v2814 = vmul.f32 %v2670, %v1303
    %v2839 = vrot.slane %v2791, 2
    %v2840 = vrot.slane %v2792, 2
    %v2841 = vsel %vm798, %v2839, %v2840
    %v2842 = vrot.slane %v2793, 2
    %v2843 = vsel %vm798, %v2840, %v2842
    %v2844 = vrot.slane %v2794, 2
    %v2845 = vrot.slane %v2795, 2
    %v2846 = vsel %vm798, %v2844, %v2845
    %v2847 = vrot.slane %v2796, 2
    %v2848 = vsel %vm798, %v2845, %v2847
    %v2849 = vrot.slane %v2797, 2
    %v2850 = vrot.slane %v2798, 2
    %v2851 = vsel %vm798, %v2849, %v2850
    %v2852 = vrot.slane %v2799, 2
    %v2853 = vsel %vm798, %v2850, %v2852
    %v2854 = vrot.slane %v2800, 2
    %v2855 = vrot.slane %v2801, 2
    %v2856 = vsel %vm798, %v2854, %v2855
    %v2857 = vrot.slane %v2802, 2
    %v2858 = vsel %vm798, %v2855, %v2857
    %v2859 = vrot.slane %v2803, 2
    %v2860 = vrot.slane %v2804, 2
    %v2861 = vsel %vm798, %v2859, %v2860
    %v2862 = vrot.slane %v2805, 2
    %v2863 = vsel %vm798, %v2860, %v2862
    %v2864 = vrot.slane %v2806, 2
    %v2865 = vrot.slane %v2807, 2
    %v2866 = vsel %vm798, %v2864, %v2865
    %v2867 = vrot.slane %v2808, 2
    %v2868 = vsel %vm798, %v2865, %v2867
    %v2869 = vrot.slane %v2809, 2
    %v2870 = vrot.slane %v2810, 2
    %v2871 = vsel %vm798, %v2869, %v2870
    %v2872 = vrot.slane %v2811, 2
    %v2873 = vsel %vm798, %v2870, %v2872
    %v2874 = vrot.slane %v2812, 2
    %v2875 = vrot.slane %v2813, 2
    %v2876 = vsel %vm798, %v2874, %v2875
    %v2877 = vrot.slane %v2814, 2
    %v2878 = vsel %vm798, %v2875, %v2877
    %v2895 = vadd.f32 %v2775, %v2841
    %v2896 = vadd.f32 %v2776, %v2843
    %v2897 = vadd.f32 %v2777, %v2846
    %v2898 = vadd.f32 %v2778, %v2848
    %v2899 = vadd.f32 %v2779, %v2851
    %v2900 = vadd.f32 %v2780, %v2853
    %v2901 = vadd.f32 %v2781, %v2856
    %v2902 = vadd.f32 %v2782, %v2858
    %v2903 = vadd.f32 %v2783, %v2861
    %v2904 = vadd.f32 %v2784, %v2863
    %v2905 = vadd.f32 %v2785, %v2866
    %v2906 = vadd.f32 %v2786, %v2868
    %v2907 = vadd.f32 %v2787, %v2871
    %v2908 = vadd.f32 %v2788, %v2873
    %v2909 = vadd.f32 %v2789, %v2876
    %v2910 = vadd.f32 %v2790, %v2878
    %2911 = vst.msk [vmem:[#allocation3] sm:$0xff] %vm15, %v2895
    %2912 = vst.msk [vmem:[#allocation3 + $0x8] sm:$0x7f] %vm1425, %v2896
    %2913 = vst.msk [vmem:[#allocation3 + $0x10] sm:$0xff] %vm15, %v2897
    %2914 = vst.msk [vmem:[#allocation3 + $0x18] sm:$0x7f] %vm1425, %v2898
    %2915 = vst.msk [vmem:[#allocation3 + $0x20] sm:$0xff] %vm15, %v2899
    %2916 = vst.msk [vmem:[#allocation3 + $0x28] sm:$0x7f] %vm1425, %v2900
    %2917 = vst.msk [vmem:[#allocation3 + $0x30] sm:$0xff] %vm15, %v2901
    %2918 = vst.msk [vmem:[#allocation3 + $0x38] sm:$0x7f] %vm1425, %v2902
    %2919 = vst.msk [vmem:[#allocation3 + $0x40] sm:$0xff] %vm15, %v2903
    %2920 = vst.msk [vmem:[#allocation3 + $0x48] sm:$0x7f] %vm1425, %v2904
    %2921 = vst.msk [vmem:[#allocation3 + $0x50] sm:$0xff] %vm15, %v2905
    %2922 = vst.msk [vmem:[#allocation3 + $0x58] sm:$0x7f] %vm1425, %v2906
    %2923 = vst.msk [vmem:[#allocation3 + $0x60] sm:$0xff] %vm15, %v2907
    %2924 = vst.msk [vmem:[#allocation3 + $0x68] sm:$0x7f] %vm1425, %v2908
    %2925 = vst.msk [vmem:[#allocation3 + $0x70] sm:$0xff] %vm15, %v2909
    %2926 = vst.msk [vmem:[#allocation3 + $0x78] sm:$0x7f] %vm1425, %v2910
    %v2927 = vld [vmem:[#allocation3] ss:$2 sm:$0xff]
    %v2928 = vld [vmem:[%s1442] ss:$2 sm:$0xff]
    %v2929 = vld [vmem:[%s1444] ss:$2 sm:$0xff]
    %v2930 = vld [vmem:[%s1446] ss:$2 sm:$0xff]
    %v2931 = vld [vmem:[%s1448] ss:$2 sm:$0xff]
    %v2932 = vld [vmem:[%s1450] ss:$2 sm:$0xff]
    %v2933 = vld [vmem:[%s1452] ss:$2 sm:$0xff]
    %v2934 = vld [vmem:[%s1454] ss:$2 sm:$0xff]
    %v2935 = vadd.f32 %v2927, %v1459
    %v2936 = vadd.f32 %v2928, %v1459
    %v2937 = vadd.f32 %v2929, %v1459
    %v2938 = vadd.f32 %v2930, %v1459
    %v2939 = vadd.f32 %v2931, %v1459
    %v2940 = vadd.f32 %v2932, %v1459
    %v2941 = vadd.f32 %v2933, %v1459
    %v2942 = vadd.f32 %v2934, %v1459
    %vm2943 = vcmp.ge.f32.partialorder %v2935, 0.0
    %vm2944 = vcmp.ge.f32.partialorder %v2936, 0.0
    %vm2945 = vcmp.ge.f32.partialorder %v2937, 0.0
    %vm2946 = vcmp.ge.f32.partialorder %v2938, 0.0
    %vm2947 = vcmp.ge.f32.partialorder %v2939, 0.0
    %vm2948 = vcmp.ge.f32.partialorder %v2940, 0.0
    %vm2949 = vcmp.ge.f32.partialorder %v2941, 0.0
    %vm2950 = vcmp.ge.f32.partialorder %v2942, 0.0
    %v2951 = vmul.f32 %v1479, %v2935
    %v2952 = vmul.f32 %v1479, %v2936
    %v2953 = vmul.f32 %v1479, %v2937
    %v2954 = vmul.f32 %v1479, %v2938
    %v2955 = vmul.f32 %v1479, %v2939
    %v2956 = vmul.f32 %v1479, %v2940
    %v2957 = vmul.f32 %v1479, %v2941
    %v2958 = vmul.f32 %v1479, %v2942
    %v2959 = vsel %vm2943, %v2935, %v2951
    %v2960 = vsel %vm2944, %v2936, %v2952
    %v2961 = vsel %vm2945, %v2937, %v2953
    %v2962 = vsel %vm2946, %v2938, %v2954
    %v2963 = vsel %vm2947, %v2939, %v2955
    %v2964 = vsel %vm2948, %v2940, %v2956
    %v2965 = vsel %vm2949, %v2941, %v2957
    %v2966 = vsel %vm2950, %v2942, %v2958
    %v2968 = vsel %vm15, %v2959, 0
    %v2971 = vsel %vm15, %v2960, 0
    %v2974 = vsel %vm15, %v2961, 0
    %v2977 = vsel %vm15, %v2962, 0
    %v2980 = vsel %vm15, %v2963, 0
    %v2983 = vsel %vm15, %v2964, 0
    %v2986 = vsel %vm15, %v2965, 0
    %v2989 = vsel %vm15, %v2966, 0
    %2991 = vmatprep.subr.mxu0 0.0
    %2992 = vmatpush1.xpose.msra.mxu0 %v2968
    %2993 = vmatprep.subr.mxu0 0.0
    %2994 = vmatpush1.xpose.msra.mxu0 %v2971
    %2995 = vmatprep.subr.mxu0 0.0
    %2996 = vmatpush1.xpose.msra.mxu0 %v2974
    %2997 = vmatprep.subr.mxu0 0.0
    %2998 = vmatpush1.xpose.msra.mxu0 %v2977
    %2999 = vmatprep.subr.mxu0 0.0
    %3000 = vmatpush1.xpose.msra.mxu0 %v2980
    %3001 = vmatprep.subr.mxu0 0.0
    %3002 = vmatpush1.xpose.msra.mxu0 %v2983
    %3003 = vmatprep.subr.mxu0 0.0
    %3004 = vmatpush1.xpose.msra.mxu0 %v2986
    %3005 = vmatprep.subr.mxu0 0.0
    %3006 = vmatpush1.xpose.msra.mxu0 %v2989
    %3007 = vmatprep.subr.mxu0 0.0
    %3008 = vmatpush1.xpose.msra.mxu0 0.0
    %3009 = vmatprep.subr.mxu0 0.0
    %3010 = vmatpush1.xpose.msra.mxu0 0.0
    %3011 = vmatprep.subr.mxu0 0.0
    %3012 = vmatpush1.xpose.msra.mxu0 0.0
    %3013 = vmatprep.subr.mxu0 0.0
    %3014 = vmatpush1.xpose.msra.mxu0 0.0
    %3015 = vmatprep.subr.mxu0 0.0
    %3016 = vmatpush1.xpose.msra.mxu0 0.0
    %3017 = vmatprep.subr.mxu0 0.0
    %3018 = vmatpush1.xpose.msra.mxu0 0.0
    %3019 = vmatprep.subr.mxu0 0.0
    %3020 = vmatpush1.xpose.msra.mxu0 0.0
    %3021 = vmatprep.subr.mxu0 0.0
    %3022 = vmatpush1.xpose.msra.mxu0 0.0
    %3023 = vmatprep.subr.mxu0 0.0
    %3024 = vmatpush1.xpose.msra.mxu0 0.0
    %3025 = vmatprep.subr.mxu0 0.0
    %3026 = vmatpush1.xpose.msra.mxu0 0.0
    %3027 = vmatprep.subr.mxu0 0.0
    %3028 = vmatpush1.xpose.msra.mxu0 0.0
    %3029 = vmatprep.subr.mxu0 0.0
    %3030 = vmatpush1.xpose.msra.mxu0 0.0
    %3031 = vmatprep.subr.mxu0 0.0
    %3032 = vmatpush1.xpose.msra.mxu0 0.0
    %3033 = vmatprep.subr.mxu0 0.0
    %3034 = vmatpush1.xpose.msra.mxu0 0.0
    %3035 = vmatprep.subr.mxu0 0.0
    %3036 = vmatpush1.xpose.msra.mxu0 0.0
    %3037 = vmatprep.subr.mxu0 0.0
    %3038 = vmatpush1.xpose.msra.mxu0 0.0
    %3039 = vmatprep.subr.mxu0 0.0
    %3040 = vmatpush1.xpose.msra.mxu0 0.0
    %3041 = vmatprep.subr.mxu0 0.0
    %3042 = vmatpush1.xpose.msra.mxu0 0.0
    %3043 = vmatprep.subr.mxu0 0.0
    %3044 = vmatpush1.xpose.msra.mxu0 0.0
    %3045 = vmatprep.subr.mxu0 0.0
    %3046 = vmatpush1.xpose.msra.mxu0 0.0
    %3047 = vmatprep.subr.mxu0 0.0
    %3048 = vmatpush1.xpose.msra.mxu0 0.0
    %3049 = vmatprep.subr.mxu0 0.0
    %3050 = vmatpush1.xpose.msra.mxu0 0.0
    %3051 = vmatprep.subr.mxu0 0.0
    %3052 = vmatpush1.xpose.msra.mxu0 0.0
    %3053 = vmatprep.subr.mxu0 0.0
    %3054 = vmatpush1.xpose.msra.mxu0 0.0
    %3055 = vmatprep.mubr.f32.mxu0 0.0
    %3056 = vmatmul.mubr.f32.gmra.mrb[0].mxu0 %v1507
    %v3057 = vpop.f32.mrb[0].mxu0
    %v3058 = vadd.f32 %v1499, %v3057
    %v3059 = vpop.f32.mrb[0].mxu0
    %3060 = vdwg.mxu0
    %3062 = vrot.lane.b32.xlu0 %v3058, 64
    %v3063 = vpop.permute.xlu0 %3062
    %vm3065 = vcmask 1048064
    %3066 = vst.msk [vmem:[#allocation4] sm:$0xff] %vm3065, %v3063
    // Predicated region
    $region14: #{tpu_custom_call.1} parent=1 // pred_check
      _
    $region15: #{tpu_custom_call.1} parent=1 // pred_check_branch
      %3068 = sbr.rel (0) target = $region17
    $region16: #{tpu_custom_call.1} parent=1 // pred_region
      %s3070 = ssub.s32 128, 128
      %3071 = vsyncadd [#allocation5], %s3070
      %s3073 = sshll.u32 [#allocation4], 4
      %s3074 = int_to_ptr.vmem [resolvable:$true] %s3073
      %3076 = dma.vmem_to_hbm [thread:$0]  %s3074, 128, %s3, [#allocation5]
    $region17: #{tpu_custom_call.1} parent=1 // pred_fallthru
      _
    // Predicated region
    $region18: #{tpu_custom_call.1} parent=1 // pred_check
      _
    $region19: #{tpu_custom_call.1} parent=1 // pred_check_branch
      %3078 = sbr.rel (0) target = $region21
    $region20: #{tpu_custom_call.1} parent=1 // pred_region
      %3079 = dma.done [#allocation5], 128
    $region21: #{tpu_custom_call.1} parent=1 // pred_fallthru
      _
    %3080 = vsyncpa [#allocation5], 1

</llo_original>
